<compile_context>
chip_gen: v7x
topology: tpu7x:2x2x1
jax: 0.10.0
libtpu: 0.0.40
codegen_flags: <defaults>
</compile_context>

<pallas_src>
import functools
import math

import jax
import jax.numpy as jnp
from jax import lax
from jax.experimental import pallas as pl
from jax.experimental.pallas import tpu as pltpu


def _mha_kernel(xq_ref, xk_ref, xv_ref,
                wq_ref, bq_ref, wk_ref, bk_ref, wv_ref, bv_ref,
                wm_ref, bm_ref,
                o_ref,
                ctx_ref,
                *, num_heads, head_dim, n_valid):
    """One batch element per grid step.

    Shapes (Np = padded sequence length, D = d_model, dim = head_dim):
      x*_ref  : (1, Np, D)  inputs, channels-last, compute dtype
      w*_ref  : (D, D)      projection weights, (in, out) with out channels
                            permuted head-contiguously; compute dtype
      b*_ref  : (1, D)      projection bias (head-contiguous), f32
      wm_ref  : (D, D)      merge weights, (out, in) with in channels permuted
                            head-contiguously; compute dtype
      bm_ref  : (D, 1)      merge bias, f32
      o_ref   : (1, D, Np)  output, f32
      ctx_ref : (Np, D)     f32 VMEM scratch — per-head context, head-contiguous
    """
    cdt = wq_ref.dtype
    np_len = xq_ref.shape[1]
    scale = 1.0 / math.sqrt(head_dim)

    # ---- full-D projections: one big MXU matmul each (all heads at once). ----
    q_all = jnp.dot(xq_ref[0], wq_ref[...], preferred_element_type=jnp.float32) + bq_ref[...]
    k_all = jnp.dot(xk_ref[0], wk_ref[...], preferred_element_type=jnp.float32) + bk_ref[...]
    v_all = jnp.dot(xv_ref[0], wv_ref[...], preferred_element_type=jnp.float32) + bv_ref[...]

    # Fold the 1/sqrt(dim) scale into q (saves an (Np,Np) VPU multiply per head).
    q_c = (q_all * scale).astype(cdt)
    k_c = k_all.astype(cdt)
    v_c = v_all.astype(cdt)

    # Additive key-padding mask, hoisted out of the head loop.
    if n_valid < np_len:
        kbias = jnp.where(
            lax.broadcasted_iota(jnp.int32, (1, np_len), 1) < n_valid,
            0.0, -1e30).astype(jnp.float32)
    else:
        kbias = None

    # ---- per-head attention (H is small & static → unrolled loop). ----
    for h in range(num_heads):
        lo = h * head_dim
        hi = lo + head_dim
        qh = q_c[:, lo:hi]                    # (Np, dim)
        kh = k_c[:, lo:hi]
        vh = v_c[:, lo:hi]

        # scores[n, m] = sum_d q[n, d] * k[m, d]   (already scaled via q)
        scores = lax.dot_general(qh, kh, (((1,), (1,)), ((), ())),
                                 preferred_element_type=jnp.float32)   # (Np, Np)
        if kbias is not None:
            scores = scores + kbias

        m = jnp.max(scores, axis=-1, keepdims=True)
        e = jnp.exp(scores - m)
        denom = jnp.sum(e, axis=-1, keepdims=True)
        prob = e * pl.reciprocal(denom, approx=True)

        # ctx[n, d] = sum_m prob[n, m] * v[m, d]
        ctx_h = jnp.dot(prob.astype(cdt), vh, preferred_element_type=jnp.float32)
        ctx_ref[:, lo:hi] = ctx_h             # head-contiguous lanes

    # ---- single merge matmul over all heads. ----
    ctx_all = ctx_ref[...].astype(cdt)                                   # (Np, D)
    out = lax.dot_general(wm_ref[...], ctx_all, (((1,), (1,)), ((), ())),
                          preferred_element_type=jnp.float32) + bm_ref[...]   # (D, Np)
    o_ref[0] = out.astype(o_ref.dtype)


def multi_headed_attention(xq, xk, xv, params, num_heads,
                           compute_dtype=jnp.float32):
    """params: dict with Wq, bq, Wk, bk, Wv, bv, Wm, bm (Conv1d k=1 weights)."""
    B, D, N = xq.shape
    assert D % num_heads == 0
    dim = D // num_heads
    H = num_heads

    # Lane-dense padded sequence length (multiple of 128).
    Np = ((N + 127) // 128) * 128

    # --- plain-JAX glue: layout / permutation only (no hot-path compute) ---
    def to_nld(x):     # (B, D, N) -> (B, Np, D)
        x_t = jnp.transpose(x, (0, 2, 1))
        if Np != N:
            x_t = jnp.pad(x_t, ((0, 0), (0, Np - N), (0, 0)))
        return x_t.astype(compute_dtype)

    # Conv1d output channel c = d*H + h; permute rows to head-contiguous
    # (h, d) order and transpose to (in, out) so the kernel does x @ W.
    def proj_w(W):     # (D, D) -> (D_in, D_out_perm)
        Wp = jnp.transpose(W.reshape(dim, H, D), (1, 0, 2)).reshape(D, D)
        return jnp.transpose(Wp, (1, 0)).astype(compute_dtype)

    def proj_b(b):     # (D,) -> (1, D) head-contiguous
        return jnp.transpose(b.reshape(dim, H), (1, 0)).reshape(1, D).astype(jnp.float32)

    def merge_w(W):    # (D, D): permute *input* channels to head-contiguous order
        return jnp.transpose(W.reshape(D, dim, H), (0, 2, 1)).reshape(D, D).astype(compute_dtype)

    xq_t, xk_t, xv_t = to_nld(xq), to_nld(xk), to_nld(xv)
    wq = proj_w(params["Wq"]); bq = proj_b(params["bq"])
    wk = proj_w(params["Wk"]); bk = proj_b(params["bk"])
    wv = proj_w(params["Wv"]); bv = proj_b(params["bv"])
    wm = merge_w(params["Wm"])
    bm = params["bm"].reshape(D, 1).astype(jnp.float32)

    x_spec = pl.BlockSpec((1, Np, D), lambda b: (b, 0, 0))
    w_spec = pl.BlockSpec((D, D), lambda b: (0, 0))     # constant index → resident
    pb_spec = pl.BlockSpec((1, D), lambda b: (0, 0))
    mb_spec = pl.BlockSpec((D, 1), lambda b: (0, 0))
    out_spec = pl.BlockSpec((1, D, Np), lambda b: (b, 0, 0))

    kernel = functools.partial(_mha_kernel, num_heads=H, head_dim=dim, n_valid=N)

    out = pl.pallas_call(
        kernel,
        out_shape=jax.ShapeDtypeStruct((B, D, Np), jnp.float32),
        grid_spec=pltpu.PrefetchScalarGridSpec(
            num_scalar_prefetch=0,
            grid=(B,),
            in_specs=[x_spec, x_spec, x_spec,
                      w_spec, pb_spec, w_spec, pb_spec, w_spec, pb_spec,
                      w_spec, mb_spec],
            out_specs=out_spec,
            scratch_shapes=[pltpu.VMEM((Np, D), jnp.float32)],
        ),
        compiler_params=pltpu.CompilerParams(
            dimension_semantics=("parallel",),
            vmem_limit_bytes=32 * 1024 * 1024,
        ),
    )(xq_t, xk_t, xv_t, wq, bq, wk, bk, wv, bv, wm, bm)

    return out[:, :, :N]


def _reference(xq, xk, xv, params, num_heads):
    """Pure-JAX mirror of the PyTorch forward (for validation)."""
    B, D, N = xq.shape
    dim = D // num_heads

    def conv1x1(x, W, b):
        return jnp.einsum("oc,bcn->bon", W, x) + b[None, :, None]

    q = conv1x1(xq, params["Wq"], params["bq"]).reshape(B, dim, num_heads, N)
    k = conv1x1(xk, params["Wk"], params["bk"]).reshape(B, dim, num_heads, N)
    v = conv1x1(xv, params["Wv"], params["bv"]).reshape(B, dim, num_heads, N)
    scores = jnp.einsum("bdhn,bdhm->bhnm", q, k) / dim ** 0.5
    prob = jax.nn.softmax(scores, axis=-1)
    ctx = jnp.einsum("bhnm,bdhm->bdhn", prob, v).reshape(B, D, N)
    return conv1x1(ctx, params["Wm"], params["bm"])


if __name__ == "__main__":
    # Small shapes consistent with the module: batch=2, d_model=32, heads=4, seq=16.
    B, D, N, H = 2, 32, 16, 4

    key = jax.random.PRNGKey(0)
    ks = jax.random.split(key, 11)
    scale = 1.0 / math.sqrt(D)
    params = {
        # Conv1d(D, D, kernel_size=1) weights -> (D, D), biases -> (D,)
        "Wq": jax.random.normal(ks[0], (D, D), jnp.float32) * scale,
        "bq": jax.random.normal(ks[1], (D,), jnp.float32) * scale,
        "Wk": jax.random.normal(ks[2], (D, D), jnp.float32) * scale,
        "bk": jax.random.normal(ks[3], (D,), jnp.float32) * scale,
        "Wv": jax.random.normal(ks[4], (D, D), jnp.float32) * scale,
        "bv": jax.random.normal(ks[5], (D,), jnp.float32) * scale,
        "Wm": jax.random.normal(ks[6], (D, D), jnp.float32) * scale,
        "bm": jax.random.normal(ks[7], (D,), jnp.float32) * scale,
    }

    xq = jax.random.normal(ks[8], (B, D, N), jnp.float32)
    xk = jax.random.normal(ks[9], (B, D, N), jnp.float32)
    xv = jax.random.normal(ks[10], (B, D, N), jnp.float32)

    ref = _reference(xq, xk, xv, params, num_heads=H)

    # f32 compute path (tight check; approx reciprocal only deviation).
    out_f32 = multi_headed_attention(xq, xk, xv, params, num_heads=H,
                                     compute_dtype=jnp.float32)
    out_f32 = jax.block_until_ready(out_f32)
    assert out_f32.shape == (B, D, N)
    assert jnp.allclose(out_f32, ref, rtol=5e-3, atol=5e-3), "f32 mismatch vs reference"

    # bf16 compute path (MXU-native on all generations; loose check).
    out_bf16 = multi_headed_attention(xq, xk, xv, params, num_heads=H,
                                      compute_dtype=jnp.bfloat16)
    out_bf16 = jax.block_until_ready(out_bf16)
    assert out_bf16.shape == (B, D, N)
    assert jnp.allclose(out_bf16, ref, rtol=1e-1, atol=1e-1), "bf16 mismatch vs reference"

    print("KERNEL_OK")
</pallas_src>

<mosaic_0001>
module attributes {stable_mosaic.version = 11 : i64} {
  func.func @_mha_kernel(%arg0: i32, %arg1: memref<1x128x32xf32, #tpu.memory_space<vmem>>, %arg2: memref<1x128x32xf32, #tpu.memory_space<vmem>>, %arg3: memref<1x128x32xf32, #tpu.memory_space<vmem>>, %arg4: memref<32x32xf32, #tpu.memory_space<vmem>>, %arg5: memref<1x32xf32, #tpu.memory_space<vmem>>, %arg6: memref<32x32xf32, #tpu.memory_space<vmem>>, %arg7: memref<1x32xf32, #tpu.memory_space<vmem>>, %arg8: memref<32x32xf32, #tpu.memory_space<vmem>>, %arg9: memref<1x32xf32, #tpu.memory_space<vmem>>, %arg10: memref<32x32xf32, #tpu.memory_space<vmem>>, %arg11: memref<32x1xf32, #tpu.memory_space<vmem>>, %arg12: memref<1x32x128xf32, #tpu.memory_space<vmem>>, %arg13: memref<128x32xf32, #tpu.memory_space<vmem>>) attributes {dimension_semantics = [#tpu.dimension_semantics<parallel>], iteration_bounds = array<i64: 2>, scalar_prefetch = 0 : i64, scratch_operands = 1 : i64, tpu.core_type = #tpu.core_type<tc>, window_params = [{transform_indices = @transform_0, window_bounds = array<i64: 1, 128, 32>}, {transform_indices = @transform_1, window_bounds = array<i64: 1, 128, 32>}, {transform_indices = @transform_2, window_bounds = array<i64: 1, 128, 32>}, {pipeline_mode = #tpu.pipeline_mode<synchronous>, transform_indices = @transform_3, window_bounds = array<i64: 32, 32>}, {pipeline_mode = #tpu.pipeline_mode<synchronous>, transform_indices = @transform_4, window_bounds = array<i64: 1, 32>}, {pipeline_mode = #tpu.pipeline_mode<synchronous>, transform_indices = @transform_5, window_bounds = array<i64: 32, 32>}, {pipeline_mode = #tpu.pipeline_mode<synchronous>, transform_indices = @transform_6, window_bounds = array<i64: 1, 32>}, {pipeline_mode = #tpu.pipeline_mode<synchronous>, transform_indices = @transform_7, window_bounds = array<i64: 32, 32>}, {pipeline_mode = #tpu.pipeline_mode<synchronous>, transform_indices = @transform_8, window_bounds = array<i64: 1, 32>}, {pipeline_mode = #tpu.pipeline_mode<synchronous>, transform_indices = @transform_9, window_bounds = array<i64: 32, 32>}, {pipeline_mode = #tpu.pipeline_mode<synchronous>, transform_indices = @transform_10, window_bounds = array<i64: 32, 1>}, {transform_indices = @transform_11, window_bounds = array<i64: 1, 32, 128>}]} {
    %c0 = arith.constant 0 : index
    %c0_0 = arith.constant 0 : index
    %c0_1 = arith.constant 0 : index
    %0 = vector.load %arg1[%c0, %c0_0, %c0_1] : memref<1x128x32xf32, #tpu.memory_space<vmem>>, vector<1x128x32xf32>
    %1 = vector.shape_cast %0 : vector<1x128x32xf32> to vector<128x32xf32>
    %c0_2 = arith.constant 0 : index
    %c0_3 = arith.constant 0 : index
    %2 = vector.load %arg4[%c0_2, %c0_3] : memref<32x32xf32, #tpu.memory_space<vmem>>, vector<32x32xf32>
    %cst = arith.constant dense<0.000000e+00> : vector<128x32xf32>
    %3 = tpu.matmul %1, %2, %cst {dimension_numbers = #tpu.dot_dimension_numbers<[1], [0], [0], [1], [0, 0, 1, 1], [], []>} : vector<128x32xf32>, vector<32x32xf32>, vector<128x32xf32> -> vector<128x32xf32>
    %c0_4 = arith.constant 0 : index
    %c0_5 = arith.constant 0 : index
    %4 = vector.load %arg5[%c0_4, %c0_5] : memref<1x32xf32, #tpu.memory_space<vmem>>, vector<1x32xf32>
    %5 = vector.broadcast %4 : vector<1x32xf32> to vector<128x32xf32>
    %6 = arith.addf %3, %5 : vector<128x32xf32>
    %c0_6 = arith.constant 0 : index
    %c0_7 = arith.constant 0 : index
    %c0_8 = arith.constant 0 : index
    %7 = vector.load %arg2[%c0_6, %c0_7, %c0_8] : memref<1x128x32xf32, #tpu.memory_space<vmem>>, vector<1x128x32xf32>
    %8 = vector.shape_cast %7 : vector<1x128x32xf32> to vector<128x32xf32>
    %c0_9 = arith.constant 0 : index
    %c0_10 = arith.constant 0 : index
    %9 = vector.load %arg6[%c0_9, %c0_10] : memref<32x32xf32, #tpu.memory_space<vmem>>, vector<32x32xf32>
    %cst_11 = arith.constant dense<0.000000e+00> : vector<128x32xf32>
    %10 = tpu.matmul %8, %9, %cst_11 {dimension_numbers = #tpu.dot_dimension_numbers<[1], [0], [0], [1], [0, 0, 1, 1], [], []>} : vector<128x32xf32>, vector<32x32xf32>, vector<128x32xf32> -> vector<128x32xf32>
    %c0_12 = arith.constant 0 : index
    %c0_13 = arith.constant 0 : index
    %11 = vector.load %arg7[%c0_12, %c0_13] : memref<1x32xf32, #tpu.memory_space<vmem>>, vector<1x32xf32>
    %12 = vector.broadcast %11 : vector<1x32xf32> to vector<128x32xf32>
    %13 = arith.addf %10, %12 : vector<128x32xf32>
    %c0_14 = arith.constant 0 : index
    %c0_15 = arith.constant 0 : index
    %c0_16 = arith.constant 0 : index
    %14 = vector.load %arg3[%c0_14, %c0_15, %c0_16] : memref<1x128x32xf32, #tpu.memory_space<vmem>>, vector<1x128x32xf32>
    %15 = vector.shape_cast %14 : vector<1x128x32xf32> to vector<128x32xf32>
    %c0_17 = arith.constant 0 : index
    %c0_18 = arith.constant 0 : index
    %16 = vector.load %arg8[%c0_17, %c0_18] : memref<32x32xf32, #tpu.memory_space<vmem>>, vector<32x32xf32>
    %cst_19 = arith.constant dense<0.000000e+00> : vector<128x32xf32>
    %17 = tpu.matmul %15, %16, %cst_19 {dimension_numbers = #tpu.dot_dimension_numbers<[1], [0], [0], [1], [0, 0, 1, 1], [], []>} : vector<128x32xf32>, vector<32x32xf32>, vector<128x32xf32> -> vector<128x32xf32>
    %c0_20 = arith.constant 0 : index
    %c0_21 = arith.constant 0 : index
    %18 = vector.load %arg9[%c0_20, %c0_21] : memref<1x32xf32, #tpu.memory_space<vmem>>, vector<1x32xf32>
    %19 = vector.broadcast %18 : vector<1x32xf32> to vector<128x32xf32>
    %20 = arith.addf %17, %19 : vector<128x32xf32>
    %cst_22 = arith.constant 0.353553385 : f32
    %21 = vector.broadcast %cst_22 : f32 to vector<128x32xf32>
    %22 = arith.mulf %6, %21 : vector<128x32xf32>
    %23 = tpu.iota {dimensions = array<i32: 1>} : vector<1x128xi32>
    %c16_i32 = arith.constant 16 : i32
    %24 = vector.broadcast %c16_i32 : i32 to vector<1x128xi32>
    %25 = arith.cmpi slt, %23, %24 : vector<1x128xi32>
    %cst_23 = arith.constant 0.000000e+00 : f32
    %cst_24 = arith.constant -1.000000e+30 : f32
    %26 = vector.broadcast %cst_23 : f32 to vector<1x128xf32>
    %27 = vector.broadcast %cst_24 : f32 to vector<1x128xf32>
    %28 = arith.select %25, %26, %27 : vector<1x128xi1>, vector<1x128xf32>
    %29 = vector.extract_strided_slice %22 {offsets = [0, 0], sizes = [128, 8], strides = [1, 1]} : vector<128x32xf32> to vector<128x8xf32>
    %30 = vector.extract_strided_slice %13 {offsets = [0, 0], sizes = [128, 8], strides = [1, 1]} : vector<128x32xf32> to vector<128x8xf32>
    %31 = vector.extract_strided_slice %20 {offsets = [0, 0], sizes = [128, 8], strides = [1, 1]} : vector<128x32xf32> to vector<128x8xf32>
    %cst_25 = arith.constant dense<0.000000e+00> : vector<128x128xf32>
    %32 = tpu.matmul %29, %30, %cst_25 {dimension_numbers = #tpu.dot_dimension_numbers<[1], [1], [0], [0], [0, 0, 1, 0], [], []>} : vector<128x8xf32>, vector<128x8xf32>, vector<128x128xf32> -> vector<128x128xf32>
    %33 = vector.broadcast %28 : vector<1x128xf32> to vector<128x128xf32>
    %34 = arith.addf %32, %33 : vector<128x128xf32>
    %cst_26 = arith.constant dense<0xFF800000> : vector<128xf32>
    %35 = vector.multi_reduction <maximumf>, %34, %cst_26 [1] : vector<128x128xf32> to vector<128xf32>
    %36 = vector.shape_cast %35 : vector<128xf32> to vector<128x1xf32>
    %37 = vector.broadcast %36 : vector<128x1xf32> to vector<128x128xf32>
    %38 = arith.subf %34, %37 : vector<128x128xf32>
    %39 = math.exp %38 : vector<128x128xf32>
    %cst_27 = arith.constant dense<0.000000e+00> : vector<128xf32>
    %40 = vector.multi_reduction <add>, %39, %cst_27 [1] : vector<128x128xf32> to vector<128xf32>
    %41 = vector.shape_cast %40 : vector<128xf32> to vector<128x1xf32>
    %42 = tpu.reciprocal %41 {approx = true} : vector<128x1xf32> -> vector<128x1xf32>
    %43 = vector.broadcast %42 : vector<128x1xf32> to vector<128x128xf32>
    %44 = arith.mulf %39, %43 : vector<128x128xf32>
    %cst_28 = arith.constant dense<0.000000e+00> : vector<128x8xf32>
    %45 = tpu.matmul %44, %31, %cst_28 {dimension_numbers = #tpu.dot_dimension_numbers<[1], [0], [0], [1], [0, 0, 1, 1], [], []>} : vector<128x128xf32>, vector<128x8xf32>, vector<128x8xf32> -> vector<128x8xf32>
    %c0_29 = arith.constant 0 : index
    %c0_30 = arith.constant 0 : index
    %46 = vector.load %arg13[%c0_29, %c0_30] : memref<128x32xf32, #tpu.memory_space<vmem>>, vector<128x8xf32>
    tpu.vector_store %arg13[%c0_29, %c0_30], %45 {strides = array<i32>} : memref<128x32xf32, #tpu.memory_space<vmem>>, vector<128x8xf32>,
    %47 = vector.extract_strided_slice %22 {offsets = [0, 8], sizes = [128, 8], strides = [1, 1]} : vector<128x32xf32> to vector<128x8xf32>
    %48 = vector.extract_strided_slice %13 {offsets = [0, 8], sizes = [128, 8], strides = [1, 1]} : vector<128x32xf32> to vector<128x8xf32>
    %49 = vector.extract_strided_slice %20 {offsets = [0, 8], sizes = [128, 8], strides = [1, 1]} : vector<128x32xf32> to vector<128x8xf32>
    %cst_31 = arith.constant dense<0.000000e+00> : vector<128x128xf32>
    %50 = tpu.matmul %47, %48, %cst_31 {dimension_numbers = #tpu.dot_dimension_numbers<[1], [1], [0], [0], [0, 0, 1, 0], [], []>} : vector<128x8xf32>, vector<128x8xf32>, vector<128x128xf32> -> vector<128x128xf32>
    %51 = vector.broadcast %28 : vector<1x128xf32> to vector<128x128xf32>
    %52 = arith.addf %50, %51 : vector<128x128xf32>
    %cst_32 = arith.constant dense<0xFF800000> : vector<128xf32>
    %53 = vector.multi_reduction <maximumf>, %52, %cst_32 [1] : vector<128x128xf32> to vector<128xf32>
    %54 = vector.shape_cast %53 : vector<128xf32> to vector<128x1xf32>
    %55 = vector.broadcast %54 : vector<128x1xf32> to vector<128x128xf32>
    %56 = arith.subf %52, %55 : vector<128x128xf32>
    %57 = math.exp %56 : vector<128x128xf32>
    %cst_33 = arith.constant dense<0.000000e+00> : vector<128xf32>
    %58 = vector.multi_reduction <add>, %57, %cst_33 [1] : vector<128x128xf32> to vector<128xf32>
    %59 = vector.shape_cast %58 : vector<128xf32> to vector<128x1xf32>
    %60 = tpu.reciprocal %59 {approx = true} : vector<128x1xf32> -> vector<128x1xf32>
    %61 = vector.broadcast %60 : vector<128x1xf32> to vector<128x128xf32>
    %62 = arith.mulf %57, %61 : vector<128x128xf32>
    %cst_34 = arith.constant dense<0.000000e+00> : vector<128x8xf32>
    %63 = tpu.matmul %62, %49, %cst_34 {dimension_numbers = #tpu.dot_dimension_numbers<[1], [0], [0], [1], [0, 0, 1, 1], [], []>} : vector<128x128xf32>, vector<128x8xf32>, vector<128x8xf32> -> vector<128x8xf32>
    %c0_35 = arith.constant 0 : index
    %c8 = arith.constant 8 : index
    %64 = vector.load %arg13[%c0_35, %c8] : memref<128x32xf32, #tpu.memory_space<vmem>>, vector<128x8xf32>
    tpu.vector_store %arg13[%c0_35, %c8], %63 {strides = array<i32>} : memref<128x32xf32, #tpu.memory_space<vmem>>, vector<128x8xf32>,
    %65 = vector.extract_strided_slice %22 {offsets = [0, 16], sizes = [128, 8], strides = [1, 1]} : vector<128x32xf32> to vector<128x8xf32>
    %66 = vector.extract_strided_slice %13 {offsets = [0, 16], sizes = [128, 8], strides = [1, 1]} : vector<128x32xf32> to vector<128x8xf32>
    %67 = vector.extract_strided_slice %20 {offsets = [0, 16], sizes = [128, 8], strides = [1, 1]} : vector<128x32xf32> to vector<128x8xf32>
    %cst_36 = arith.constant dense<0.000000e+00> : vector<128x128xf32>
    %68 = tpu.matmul %65, %66, %cst_36 {dimension_numbers = #tpu.dot_dimension_numbers<[1], [1], [0], [0], [0, 0, 1, 0], [], []>} : vector<128x8xf32>, vector<128x8xf32>, vector<128x128xf32> -> vector<128x128xf32>
    %69 = vector.broadcast %28 : vector<1x128xf32> to vector<128x128xf32>
    %70 = arith.addf %68, %69 : vector<128x128xf32>
    %cst_37 = arith.constant dense<0xFF800000> : vector<128xf32>
    %71 = vector.multi_reduction <maximumf>, %70, %cst_37 [1] : vector<128x128xf32> to vector<128xf32>
    %72 = vector.shape_cast %71 : vector<128xf32> to vector<128x1xf32>
    %73 = vector.broadcast %72 : vector<128x1xf32> to vector<128x128xf32>
    %74 = arith.subf %70, %73 : vector<128x128xf32>
    %75 = math.exp %74 : vector<128x128xf32>
    %cst_38 = arith.constant dense<0.000000e+00> : vector<128xf32>
    %76 = vector.multi_reduction <add>, %75, %cst_38 [1] : vector<128x128xf32> to vector<128xf32>
    %77 = vector.shape_cast %76 : vector<128xf32> to vector<128x1xf32>
    %78 = tpu.reciprocal %77 {approx = true} : vector<128x1xf32> -> vector<128x1xf32>
    %79 = vector.broadcast %78 : vector<128x1xf32> to vector<128x128xf32>
    %80 = arith.mulf %75, %79 : vector<128x128xf32>
    %cst_39 = arith.constant dense<0.000000e+00> : vector<128x8xf32>
    %81 = tpu.matmul %80, %67, %cst_39 {dimension_numbers = #tpu.dot_dimension_numbers<[1], [0], [0], [1], [0, 0, 1, 1], [], []>} : vector<128x128xf32>, vector<128x8xf32>, vector<128x8xf32> -> vector<128x8xf32>
    %c0_40 = arith.constant 0 : index
    %c16 = arith.constant 16 : index
    %82 = vector.load %arg13[%c0_40, %c16] : memref<128x32xf32, #tpu.memory_space<vmem>>, vector<128x8xf32>
    tpu.vector_store %arg13[%c0_40, %c16], %81 {strides = array<i32>} : memref<128x32xf32, #tpu.memory_space<vmem>>, vector<128x8xf32>,
    %83 = vector.extract_strided_slice %22 {offsets = [0, 24], sizes = [128, 8], strides = [1, 1]} : vector<128x32xf32> to vector<128x8xf32>
    %84 = vector.extract_strided_slice %13 {offsets = [0, 24], sizes = [128, 8], strides = [1, 1]} : vector<128x32xf32> to vector<128x8xf32>
    %85 = vector.extract_strided_slice %20 {offsets = [0, 24], sizes = [128, 8], strides = [1, 1]} : vector<128x32xf32> to vector<128x8xf32>
    %cst_41 = arith.constant dense<0.000000e+00> : vector<128x128xf32>
    %86 = tpu.matmul %83, %84, %cst_41 {dimension_numbers = #tpu.dot_dimension_numbers<[1], [1], [0], [0], [0, 0, 1, 0], [], []>} : vector<128x8xf32>, vector<128x8xf32>, vector<128x128xf32> -> vector<128x128xf32>
    %87 = vector.broadcast %28 : vector<1x128xf32> to vector<128x128xf32>
    %88 = arith.addf %86, %87 : vector<128x128xf32>
    %cst_42 = arith.constant dense<0xFF800000> : vector<128xf32>
    %89 = vector.multi_reduction <maximumf>, %88, %cst_42 [1] : vector<128x128xf32> to vector<128xf32>
    %90 = vector.shape_cast %89 : vector<128xf32> to vector<128x1xf32>
    %91 = vector.broadcast %90 : vector<128x1xf32> to vector<128x128xf32>
    %92 = arith.subf %88, %91 : vector<128x128xf32>
    %93 = math.exp %92 : vector<128x128xf32>
    %cst_43 = arith.constant dense<0.000000e+00> : vector<128xf32>
    %94 = vector.multi_reduction <add>, %93, %cst_43 [1] : vector<128x128xf32> to vector<128xf32>
    %95 = vector.shape_cast %94 : vector<128xf32> to vector<128x1xf32>
    %96 = tpu.reciprocal %95 {approx = true} : vector<128x1xf32> -> vector<128x1xf32>
    %97 = vector.broadcast %96 : vector<128x1xf32> to vector<128x128xf32>
    %98 = arith.mulf %93, %97 : vector<128x128xf32>
    %cst_44 = arith.constant dense<0.000000e+00> : vector<128x8xf32>
    %99 = tpu.matmul %98, %85, %cst_44 {dimension_numbers = #tpu.dot_dimension_numbers<[1], [0], [0], [1], [0, 0, 1, 1], [], []>} : vector<128x128xf32>, vector<128x8xf32>, vector<128x8xf32> -> vector<128x8xf32>
    %c0_45 = arith.constant 0 : index
    %c24 = arith.constant 24 : index
    %100 = vector.load %arg13[%c0_45, %c24] : memref<128x32xf32, #tpu.memory_space<vmem>>, vector<128x8xf32>
    tpu.vector_store %arg13[%c0_45, %c24], %99 {strides = array<i32>} : memref<128x32xf32, #tpu.memory_space<vmem>>, vector<128x8xf32>,
    %c0_46 = arith.constant 0 : index
    %c0_47 = arith.constant 0 : index
    %101 = vector.load %arg13[%c0_46, %c0_47] : memref<128x32xf32, #tpu.memory_space<vmem>>, vector<128x32xf32>
    %c0_48 = arith.constant 0 : index
    %c0_49 = arith.constant 0 : index
    %102 = vector.load %arg10[%c0_48, %c0_49] : memref<32x32xf32, #tpu.memory_space<vmem>>, vector<32x32xf32>
    %cst_50 = arith.constant dense<0.000000e+00> : vector<32x128xf32>
    %103 = tpu.matmul %102, %101, %cst_50 {dimension_numbers = #tpu.dot_dimension_numbers<[1], [1], [0], [0], [0, 0, 1, 0], [], []>} : vector<32x32xf32>, vector<128x32xf32>, vector<32x128xf32> -> vector<32x128xf32>
    %c0_51 = arith.constant 0 : index
    %c0_52 = arith.constant 0 : index
    %104 = vector.load %arg11[%c0_51, %c0_52] : memref<32x1xf32, #tpu.memory_space<vmem>>, vector<32x1xf32>
    %105 = vector.broadcast %104 : vector<32x1xf32> to vector<32x128xf32>
    %106 = arith.addf %103, %105 : vector<32x128xf32>
    %c0_53 = arith.constant 0 : index
    %c0_54 = arith.constant 0 : index
    %c0_55 = arith.constant 0 : index
    %107 = vector.load %arg12[%c0_53, %c0_54, %c0_55] : memref<1x32x128xf32, #tpu.memory_space<vmem>>, vector<1x32x128xf32>
    %108 = vector.shape_cast %107 : vector<1x32x128xf32> to vector<32x128xf32>
    %109 = vector.shape_cast %106 : vector<32x128xf32> to vector<1x32x128xf32>
    tpu.vector_store %arg12[%c0_53, %c0_54, %c0_55], %109 {strides = array<i32>} : memref<1x32x128xf32, #tpu.memory_space<vmem>>, vector<1x32x128xf32>,
    return
  }
  func.func @transform_0(%arg0: i32) -> (i32, i32, i32) {
    %c0_i32 = arith.constant 0 : i32
    %c0_i32_0 = arith.constant 0 : i32
    %c0_i32_1 = arith.constant 0 : i32
    return %arg0, %c0_i32, %c0_i32_0 : i32, i32, i32
  }
  func.func @transform_1(%arg0: i32) -> (i32, i32, i32) {
    %c0_i32 = arith.constant 0 : i32
    %c0_i32_0 = arith.constant 0 : i32
    %c0_i32_1 = arith.constant 0 : i32
    return %arg0, %c0_i32, %c0_i32_0 : i32, i32, i32
  }
  func.func @transform_2(%arg0: i32) -> (i32, i32, i32) {
    %c0_i32 = arith.constant 0 : i32
    %c0_i32_0 = arith.constant 0 : i32
    %c0_i32_1 = arith.constant 0 : i32
    return %arg0, %c0_i32, %c0_i32_0 : i32, i32, i32
  }
  func.func @transform_3(%arg0: i32) -> (i32, i32) {
    %c0_i32 = arith.constant 0 : i32
    %c0_i32_0 = arith.constant 0 : i32
    %c0_i32_1 = arith.constant 0 : i32
    return %c0_i32, %c0_i32_0 : i32, i32
  }
  func.func @transform_4(%arg0: i32) -> (i32, i32) {
    %c0_i32 = arith.constant 0 : i32
    %c0_i32_0 = arith.constant 0 : i32
    %c0_i32_1 = arith.constant 0 : i32
    return %c0_i32, %c0_i32_0 : i32, i32
  }
  func.func @transform_5(%arg0: i32) -> (i32, i32) {
    %c0_i32 = arith.constant 0 : i32
    %c0_i32_0 = arith.constant 0 : i32
    %c0_i32_1 = arith.constant 0 : i32
    return %c0_i32, %c0_i32_0 : i32, i32
  }
  func.func @transform_6(%arg0: i32) -> (i32, i32) {
    %c0_i32 = arith.constant 0 : i32
    %c0_i32_0 = arith.constant 0 : i32
    %c0_i32_1 = arith.constant 0 : i32
    return %c0_i32, %c0_i32_0 : i32, i32
  }
  func.func @transform_7(%arg0: i32) -> (i32, i32) {
    %c0_i32 = arith.constant 0 : i32
    %c0_i32_0 = arith.constant 0 : i32
    %c0_i32_1 = arith.constant 0 : i32
    return %c0_i32, %c0_i32_0 : i32, i32
  }
  func.func @transform_8(%arg0: i32) -> (i32, i32) {
    %c0_i32 = arith.constant 0 : i32
    %c0_i32_0 = arith.constant 0 : i32
    %c0_i32_1 = arith.constant 0 : i32
    return %c0_i32, %c0_i32_0 : i32, i32
  }
  func.func @transform_9(%arg0: i32) -> (i32, i32) {
    %c0_i32 = arith.constant 0 : i32
    %c0_i32_0 = arith.constant 0 : i32
    %c0_i32_1 = arith.constant 0 : i32
    return %c0_i32, %c0_i32_0 : i32, i32
  }
  func.func @transform_10(%arg0: i32) -> (i32, i32) {
    %c0_i32 = arith.constant 0 : i32
    %c0_i32_0 = arith.constant 0 : i32
    %c0_i32_1 = arith.constant 0 : i32
    return %c0_i32, %c0_i32_0 : i32, i32
  }
  func.func @transform_11(%arg0: i32) -> (i32, i32, i32) {
    %c0_i32 = arith.constant 0 : i32
    %c0_i32_0 = arith.constant 0 : i32
    %c0_i32_1 = arith.constant 0 : i32
    return %arg0, %c0_i32, %c0_i32_0 : i32, i32, i32
  }
}

</mosaic_0001>

<llo_original>
// kernel: tpu_custom_call.1
$region0: #{tpu_custom_call.1}
  #allocation0 [shape = 'u32[]', space=smem, size = 0x4, offset = 0x4, fixed_abs, tag = 'smem constant byte address 0x4 - core index']
  #allocation1 [shape = 'u32[144,128]{1,0:T(1,128)}', space=vmem, size = 0x12000, scoped, tag = 'internal scratch']
  #allocation2 [shape = 'f32[128,32]{1,0:T(8,128)}', space=vmem, size = 0x10000, scoped, tag = 'scratch operand']
  %s0 = inlined_call_operand.vmem [shape: f32[2,128,32], index: 0, kind: input, shape index: {}]
  %s1 = inlined_call_operand.vmem [shape: f32[2,128,32], index: 1, kind: input, shape index: {}]
  %s2 = inlined_call_operand.vmem [shape: f32[2,128,32], index: 2, kind: input, shape index: {}]
  %s3 = inlined_call_operand.vmem [shape: f32[32,32], index: 3, kind: input, shape index: {}]
  %s4 = inlined_call_operand.vmem [shape: f32[1,32], index: 4, kind: input, shape index: {}]
  %s5 = inlined_call_operand.vmem [shape: f32[32,32], index: 5, kind: input, shape index: {}]
  %s6 = inlined_call_operand.vmem [shape: f32[1,32], index: 6, kind: input, shape index: {}]
  %s7 = inlined_call_operand.vmem [shape: f32[32,32], index: 7, kind: input, shape index: {}]
  %s8 = inlined_call_operand.vmem [shape: f32[1,32], index: 8, kind: input, shape index: {}]
  %s9 = inlined_call_operand.vmem [shape: f32[32,32], index: 9, kind: input, shape index: {}]
  %s10 = inlined_call_operand.vmem [shape: f32[32,1], index: 10, kind: input, shape index: {}]
  %s11 = inlined_call_operand.hbm [shape: f32[2,32,128], index: 11, kind: output, shape index: {}]
  %s12 = sld [smem:[#allocation0]]
  $region77: #{tpu_custom_call.1} parent=0
    _
  %s14 = ssub.s32 1, %s12
  %s15 = scalar_select 0, %s14, %s12
  $region1: #{tpu_custom_call.1} parent=0
    #allocation3 [shape = 'u8[32768]{0}', space=vmem, size = 0x8000, scoped, tag = 'output window, operand 0']
    #allocation4 [shape = 's32[2]{0}', space=sflag, size = 0x8, scoped, tag = 'scoped memory for tpu_custom_call.1']
    %16 = vsyncpa [#allocation4], 0
    %s17 = scalar_lea.sflag [#allocation4], 1
    %18 = vsyncpa %s17, 0
    loop: start=0, step=1, limit=4
    $region2: #{tpu_custom_call.1} parent=1 // loop_pre_header
      _
    $region3: #{tpu_custom_call.1} parent=1 // loop_header
      %s20 = sphi 0, %s24
      %p21 = scmp.ge.s32.totalorder %s20, 4
      %s30 = sphi 0, %s32
      %s33 = sphi 0, %s30
      %s34 = sphi 0, %s33
      %s50 = sphi 0, %s34
      %s56 = sphi 0, %s58
      %s59 = sphi 0, %s56
      %s60 = sphi 0, %s59
      %s76 = sphi 0, %s60
      %s82 = sphi 0, %s84
      %s85 = sphi 0, %s82
      %s86 = sphi 0, %s85
      %s102 = sphi 0, %s86
      %s106 = sphi 0, %s106
      %s108 = sphi 0, %s106
      %s109 = sphi 0, %s108
      %s123 = sphi 0, %s109
      %s127 = sphi 0, %s127
      %s129 = sphi 0, %s127
      %s130 = sphi 0, %s129
      %s144 = sphi 0, %s130
      %s148 = sphi 0, %s148
      %s150 = sphi 0, %s148
      %s151 = sphi 0, %s150
      %s165 = sphi 0, %s151
      %s169 = sphi 0, %s169
      %s171 = sphi 0, %s169
      %s172 = sphi 0, %s171
      %s186 = sphi 0, %s172
      %s190 = sphi 0, %s190
      %s192 = sphi 0, %s190
      %s193 = sphi 0, %s192
      %s207 = sphi 0, %s193
      %s211 = sphi 0, %s211
      %s213 = sphi 0, %s211
      %s214 = sphi 0, %s213
      %s228 = sphi 0, %s214
      %s232 = sphi 0, %s232
      %s234 = sphi 0, %s232
      %s235 = sphi 0, %s234
      %s249 = sphi 0, %s235
      %s253 = sphi 0, %s253
      %s255 = sphi 0, %s253
      %s256 = sphi 0, %s255
      %s270 = sphi 0, %s256
      %s276 = sphi 0, %s278
      %s279 = sphi 0, %s276
      %s280 = sphi 0, %s279
      %s296 = sphi 0, %s280
    $region4: #{tpu_custom_call.1} parent=1 // loop_header_branch
      %23 = sbr.rel (%p21) target = $region8
    $region5: #{tpu_custom_call.1} parent=1 // loop_body
      %s25 = ssub.s32 %s20, 1
      %s26 = ssub.s32 %s20, 2
      %s27 = sadd.s32 %s20, 1
      %s28 = ssub.s32 %s20, %s27
      %p29 = scmp.eq.s32.totalorder %s28, 0
      %s31 = sadd.s32 %s30, 1
      %s32 = scalar_select %p29, %s30, %s31
      %p35 = pneg %p29
      %p36 = scmp.eq.s32.totalorder %s20, 1
      %p37 = por %p35, %p36
      %p38 = scmp.ne.s32.totalorder %s30, %s33
      %p39 = scmp.eq.s32.totalorder %s20, 0
      %p40 = por %p38, %p39
      %p41 = scmp.ne.s32.totalorder %s30, %s33
      %p42 = scmp.eq.s32.totalorder %s25, 1
      %p43 = por %p41, %p42
      %p44 = scmp.ne.s32.totalorder %s33, %s34
      %p45 = scmp.eq.s32.totalorder %s25, 0
      %p46 = por %p44, %p45
      %p47 = scmp.ne.s32.totalorder %s33, %s34
      %p48 = scmp.eq.s32.totalorder %s26, 1
      %p49 = por %p47, %p48
      %p51 = scmp.ne.s32.totalorder %s34, %s50
      %p52 = scmp.eq.s32.totalorder %s26, 0
      %p53 = por %p51, %p52
      %s54 = ssub.s32 %s20, %s27
      %p55 = scmp.eq.s32.totalorder %s54, 0
      %s57 = sadd.s32 %s56, 1
      %s58 = scalar_select %p55, %s56, %s57
      %p61 = pneg %p55
      %p62 = scmp.eq.s32.totalorder %s20, 1
      %p63 = por %p61, %p62
      %p64 = scmp.ne.s32.totalorder %s56, %s59
      %p65 = scmp.eq.s32.totalorder %s20, 0
      %p66 = por %p64, %p65
      %p67 = scmp.ne.s32.totalorder %s56, %s59
      %p68 = scmp.eq.s32.totalorder %s25, 1
      %p69 = por %p67, %p68
      %p70 = scmp.ne.s32.totalorder %s59, %s60
      %p71 = scmp.eq.s32.totalorder %s25, 0
      %p72 = por %p70, %p71
      %p73 = scmp.ne.s32.totalorder %s59, %s60
      %p74 = scmp.eq.s32.totalorder %s26, 1
      %p75 = por %p73, %p74
      %p77 = scmp.ne.s32.totalorder %s60, %s76
      %p78 = scmp.eq.s32.totalorder %s26, 0
      %p79 = por %p77, %p78
      %s80 = ssub.s32 %s20, %s27
      %p81 = scmp.eq.s32.totalorder %s80, 0
      %s83 = sadd.s32 %s82, 1
      %s84 = scalar_select %p81, %s82, %s83
      %p87 = pneg %p81
      %p88 = scmp.eq.s32.totalorder %s20, 1
      %p89 = por %p87, %p88
      %p90 = scmp.ne.s32.totalorder %s82, %s85
      %p91 = scmp.eq.s32.totalorder %s20, 0
      %p92 = por %p90, %p91
      %p93 = scmp.ne.s32.totalorder %s82, %s85
      %p94 = scmp.eq.s32.totalorder %s25, 1
      %p95 = por %p93, %p94
      %p96 = scmp.ne.s32.totalorder %s85, %s86
      %p97 = scmp.eq.s32.totalorder %s25, 0
      %p98 = por %p96, %p97
      %p99 = scmp.ne.s32.totalorder %s85, %s86
      %p100 = scmp.eq.s32.totalorder %s26, 1
      %p101 = por %p99, %p100
      %p103 = scmp.ne.s32.totalorder %s86, %s102
      %p104 = scmp.eq.s32.totalorder %s26, 0
      %p105 = por %p103, %p104
      %s107 = sadd.s32 %s106, 1
      %p110 = scmp.eq.s32.totalorder %s20, 1
      %p111 = scmp.ne.s32.totalorder %s106, %s108
      %p112 = scmp.eq.s32.totalorder %s20, 0
      %p113 = por %p111, %p112
      %p114 = scmp.ne.s32.totalorder %s106, %s108
      %p115 = scmp.eq.s32.totalorder %s25, 1
      %p116 = por %p114, %p115
      %p117 = scmp.ne.s32.totalorder %s108, %s109
      %p118 = scmp.eq.s32.totalorder %s25, 0
      %p119 = por %p117, %p118
      %p120 = scmp.ne.s32.totalorder %s108, %s109
      %p121 = scmp.eq.s32.totalorder %s26, 1
      %p122 = por %p120, %p121
      %p124 = scmp.ne.s32.totalorder %s109, %s123
      %p125 = scmp.eq.s32.totalorder %s26, 0
      %p126 = por %p124, %p125
      %s128 = sadd.s32 %s127, 1
      %p131 = scmp.eq.s32.totalorder %s20, 1
      %p132 = scmp.ne.s32.totalorder %s127, %s129
      %p133 = scmp.eq.s32.totalorder %s20, 0
      %p134 = por %p132, %p133
      %p135 = scmp.ne.s32.totalorder %s127, %s129
      %p136 = scmp.eq.s32.totalorder %s25, 1
      %p137 = por %p135, %p136
      %p138 = scmp.ne.s32.totalorder %s129, %s130
      %p139 = scmp.eq.s32.totalorder %s25, 0
      %p140 = por %p138, %p139
      %p141 = scmp.ne.s32.totalorder %s129, %s130
      %p142 = scmp.eq.s32.totalorder %s26, 1
      %p143 = por %p141, %p142
      %p145 = scmp.ne.s32.totalorder %s130, %s144
      %p146 = scmp.eq.s32.totalorder %s26, 0
      %p147 = por %p145, %p146
      %s149 = sadd.s32 %s148, 1
      %p152 = scmp.eq.s32.totalorder %s20, 1
      %p153 = scmp.ne.s32.totalorder %s148, %s150
      %p154 = scmp.eq.s32.totalorder %s20, 0
      %p155 = por %p153, %p154
      %p156 = scmp.ne.s32.totalorder %s148, %s150
      %p157 = scmp.eq.s32.totalorder %s25, 1
      %p158 = por %p156, %p157
      %p159 = scmp.ne.s32.totalorder %s150, %s151
      %p160 = scmp.eq.s32.totalorder %s25, 0
      %p161 = por %p159, %p160
      %p162 = scmp.ne.s32.totalorder %s150, %s151
      %p163 = scmp.eq.s32.totalorder %s26, 1
      %p164 = por %p162, %p163
      %p166 = scmp.ne.s32.totalorder %s151, %s165
      %p167 = scmp.eq.s32.totalorder %s26, 0
      %p168 = por %p166, %p167
      %s170 = sadd.s32 %s169, 1
      %p173 = scmp.eq.s32.totalorder %s20, 1
      %p174 = scmp.ne.s32.totalorder %s169, %s171
      %p175 = scmp.eq.s32.totalorder %s20, 0
      %p176 = por %p174, %p175
      %p177 = scmp.ne.s32.totalorder %s169, %s171
      %p178 = scmp.eq.s32.totalorder %s25, 1
      %p179 = por %p177, %p178
      %p180 = scmp.ne.s32.totalorder %s171, %s172
      %p181 = scmp.eq.s32.totalorder %s25, 0
      %p182 = por %p180, %p181
      %p183 = scmp.ne.s32.totalorder %s171, %s172
      %p184 = scmp.eq.s32.totalorder %s26, 1
      %p185 = por %p183, %p184
      %p187 = scmp.ne.s32.totalorder %s172, %s186
      %p188 = scmp.eq.s32.totalorder %s26, 0
      %p189 = por %p187, %p188
      %s191 = sadd.s32 %s190, 1
      %p194 = scmp.eq.s32.totalorder %s20, 1
      %p195 = scmp.ne.s32.totalorder %s190, %s192
      %p196 = scmp.eq.s32.totalorder %s20, 0
      %p197 = por %p195, %p196
      %p198 = scmp.ne.s32.totalorder %s190, %s192
      %p199 = scmp.eq.s32.totalorder %s25, 1
      %p200 = por %p198, %p199
      %p201 = scmp.ne.s32.totalorder %s192, %s193
      %p202 = scmp.eq.s32.totalorder %s25, 0
      %p203 = por %p201, %p202
      %p204 = scmp.ne.s32.totalorder %s192, %s193
      %p205 = scmp.eq.s32.totalorder %s26, 1
      %p206 = por %p204, %p205
      %p208 = scmp.ne.s32.totalorder %s193, %s207
      %p209 = scmp.eq.s32.totalorder %s26, 0
      %p210 = por %p208, %p209
      %s212 = sadd.s32 %s211, 1
      %p215 = scmp.eq.s32.totalorder %s20, 1
      %p216 = scmp.ne.s32.totalorder %s211, %s213
      %p217 = scmp.eq.s32.totalorder %s20, 0
      %p218 = por %p216, %p217
      %p219 = scmp.ne.s32.totalorder %s211, %s213
      %p220 = scmp.eq.s32.totalorder %s25, 1
      %p221 = por %p219, %p220
      %p222 = scmp.ne.s32.totalorder %s213, %s214
      %p223 = scmp.eq.s32.totalorder %s25, 0
      %p224 = por %p222, %p223
      %p225 = scmp.ne.s32.totalorder %s213, %s214
      %p226 = scmp.eq.s32.totalorder %s26, 1
      %p227 = por %p225, %p226
      %p229 = scmp.ne.s32.totalorder %s214, %s228
      %p230 = scmp.eq.s32.totalorder %s26, 0
      %p231 = por %p229, %p230
      %s233 = sadd.s32 %s232, 1
      %p236 = scmp.eq.s32.totalorder %s20, 1
      %p237 = scmp.ne.s32.totalorder %s232, %s234
      %p238 = scmp.eq.s32.totalorder %s20, 0
      %p239 = por %p237, %p238
      %p240 = scmp.ne.s32.totalorder %s232, %s234
      %p241 = scmp.eq.s32.totalorder %s25, 1
      %p242 = por %p240, %p241
      %p243 = scmp.ne.s32.totalorder %s234, %s235
      %p244 = scmp.eq.s32.totalorder %s25, 0
      %p245 = por %p243, %p244
      %p246 = scmp.ne.s32.totalorder %s234, %s235
      %p247 = scmp.eq.s32.totalorder %s26, 1
      %p248 = por %p246, %p247
      %p250 = scmp.ne.s32.totalorder %s235, %s249
      %p251 = scmp.eq.s32.totalorder %s26, 0
      %p252 = por %p250, %p251
      %s254 = sadd.s32 %s253, 1
      %p257 = scmp.eq.s32.totalorder %s20, 1
      %p258 = scmp.ne.s32.totalorder %s253, %s255
      %p259 = scmp.eq.s32.totalorder %s20, 0
      %p260 = por %p258, %p259
      %p261 = scmp.ne.s32.totalorder %s253, %s255
      %p262 = scmp.eq.s32.totalorder %s25, 1
      %p263 = por %p261, %p262
      %p264 = scmp.ne.s32.totalorder %s255, %s256
      %p265 = scmp.eq.s32.totalorder %s25, 0
      %p266 = por %p264, %p265
      %p267 = scmp.ne.s32.totalorder %s255, %s256
      %p268 = scmp.eq.s32.totalorder %s26, 1
      %p269 = por %p267, %p268
      %p271 = scmp.ne.s32.totalorder %s256, %s270
      %p272 = scmp.eq.s32.totalorder %s26, 0
      %p273 = por %p271, %p272
      %s274 = ssub.s32 %s20, %s27
      %p275 = scmp.eq.s32.totalorder %s274, 0
      %s277 = sadd.s32 %s276, 1
      %s278 = scalar_select %p275, %s276, %s277
      %p281 = pneg %p275
      %p282 = scmp.eq.s32.totalorder %s20, 1
      %p283 = por %p281, %p282
      %p284 = scmp.ne.s32.totalorder %s276, %s279
      %p285 = scmp.eq.s32.totalorder %s20, 0
      %p286 = por %p284, %p285
      %p287 = scmp.ne.s32.totalorder %s276, %s279
      %p288 = scmp.eq.s32.totalorder %s25, 1
      %p289 = por %p287, %p288
      %p290 = scmp.ne.s32.totalorder %s279, %s280
      %p291 = scmp.eq.s32.totalorder %s25, 0
      %p292 = por %p290, %p291
      %p293 = scmp.ne.s32.totalorder %s279, %s280
      %p294 = scmp.eq.s32.totalorder %s26, 1
      %p295 = por %p293, %p294
      %p297 = scmp.ne.s32.totalorder %s280, %s296
      %p298 = scmp.eq.s32.totalorder %s26, 0
      %p299 = por %p297, %p298
      %p300 = scmp.le.s32.totalorder 1, %s20
      %p301 = scmp.lt.s32.totalorder %s20, 3
      %p302 = pnand %p300, %p301
      %p303 = pneg %p302
      // Predicated region
      $region9: #{tpu_custom_call.1} parent=5 // pred_check
        _
      $region10: #{tpu_custom_call.1} parent=5 // pred_check_branch
        %305 = sbr.rel (%p302) target = $region12
      $region11: #{tpu_custom_call.1} parent=5 // pred_region
        %s306 = ssub.s32 %s20, 1
        // Predicated region
        $region13: #{tpu_custom_call.1} parent=11 // pred_check
          %p307 = pneg %p119
        $region14: #{tpu_custom_call.1} parent=11 // pred_check_branch
          %309 = sbr.rel (%p307) target = $region16
        $region15: #{tpu_custom_call.1} parent=11 // pred_region
          _
        $region16: #{tpu_custom_call.1} parent=11 // pred_fallthru
          _
        // Predicated region
        $region17: #{tpu_custom_call.1} parent=11 // pred_check
          %p310 = pneg %p140
        $region18: #{tpu_custom_call.1} parent=11 // pred_check_branch
          %312 = sbr.rel (%p310) target = $region20
        $region19: #{tpu_custom_call.1} parent=11 // pred_region
          _
        $region20: #{tpu_custom_call.1} parent=11 // pred_fallthru
          _
        // Predicated region
        $region21: #{tpu_custom_call.1} parent=11 // pred_check
          %p313 = pneg %p161
        $region22: #{tpu_custom_call.1} parent=11 // pred_check_branch
          %315 = sbr.rel (%p313) target = $region24
        $region23: #{tpu_custom_call.1} parent=11 // pred_region
          _
        $region24: #{tpu_custom_call.1} parent=11 // pred_fallthru
          _
        // Predicated region
        $region25: #{tpu_custom_call.1} parent=11 // pred_check
          %p316 = pneg %p182
        $region26: #{tpu_custom_call.1} parent=11 // pred_check_branch
          %318 = sbr.rel (%p316) target = $region28
        $region27: #{tpu_custom_call.1} parent=11 // pred_region
          _
        $region28: #{tpu_custom_call.1} parent=11 // pred_fallthru
          _
        // Predicated region
        $region29: #{tpu_custom_call.1} parent=11 // pred_check
          %p319 = pneg %p203
        $region30: #{tpu_custom_call.1} parent=11 // pred_check_branch
          %321 = sbr.rel (%p319) target = $region32
        $region31: #{tpu_custom_call.1} parent=11 // pred_region
          _
        $region32: #{tpu_custom_call.1} parent=11 // pred_fallthru
          _
        // Predicated region
        $region33: #{tpu_custom_call.1} parent=11 // pred_check
          %p322 = pneg %p224
        $region34: #{tpu_custom_call.1} parent=11 // pred_check_branch
          %324 = sbr.rel (%p322) target = $region36
        $region35: #{tpu_custom_call.1} parent=11 // pred_region
          _
        $region36: #{tpu_custom_call.1} parent=11 // pred_fallthru
          _
        // Predicated region
        $region37: #{tpu_custom_call.1} parent=11 // pred_check
          %p325 = pneg %p245
        $region38: #{tpu_custom_call.1} parent=11 // pred_check_branch
          %327 = sbr.rel (%p325) target = $region40
        $region39: #{tpu_custom_call.1} parent=11 // pred_region
          _
        $region40: #{tpu_custom_call.1} parent=11 // pred_fallthru
          _
        // Predicated region
        $region41: #{tpu_custom_call.1} parent=11 // pred_check
          %p328 = pneg %p266
        $region42: #{tpu_custom_call.1} parent=11 // pred_check_branch
          %330 = sbr.rel (%p328) target = $region44
        $region43: #{tpu_custom_call.1} parent=11 // pred_region
          _
        $region44: #{tpu_custom_call.1} parent=11 // pred_fallthru
          _
      $region12: #{tpu_custom_call.1} parent=5 // pred_fallthru
        _
      %p331 = scmp.lt.s32.totalorder %s20, 2
      // Predicated region
      $region45: #{tpu_custom_call.1} parent=5 // pred_check
        %p332 = pneg %p331
      $region46: #{tpu_custom_call.1} parent=5 // pred_check_branch
        %334 = sbr.rel (%p332) target = $region48
      $region47: #{tpu_custom_call.1} parent=5 // pred_region
        // Predicated region
        $region49: #{tpu_custom_call.1} parent=47 // pred_check
          %p335 = pneg %p40
        $region50: #{tpu_custom_call.1} parent=47 // pred_check_branch
          %337 = sbr.rel (%p335) target = $region52
        $region51: #{tpu_custom_call.1} parent=47 // pred_region
          %p338 = scmp.lt.s32.totalorder %s20, 1
          %s339 = scalar_select %p338, %s20, 1
          %s340 = smul.addr %s339, 16
          %s341 = smul.addr %s340, 8
          %s342 = scalar_lea.vmem %s0, %s341
        $region52: #{tpu_custom_call.1} parent=47 // pred_fallthru
          _
        // Predicated region
        $region53: #{tpu_custom_call.1} parent=47 // pred_check
          %p343 = pneg %p66
        $region54: #{tpu_custom_call.1} parent=47 // pred_check_branch
          %345 = sbr.rel (%p343) target = $region56
        $region55: #{tpu_custom_call.1} parent=47 // pred_region
          %p346 = scmp.lt.s32.totalorder %s20, 1
          %s347 = scalar_select %p346, %s20, 1
          %s348 = smul.addr %s347, 16
          %s349 = smul.addr %s348, 8
          %s350 = scalar_lea.vmem %s1, %s349
        $region56: #{tpu_custom_call.1} parent=47 // pred_fallthru
          _
        // Predicated region
        $region57: #{tpu_custom_call.1} parent=47 // pred_check
          %p351 = pneg %p92
        $region58: #{tpu_custom_call.1} parent=47 // pred_check_branch
          %353 = sbr.rel (%p351) target = $region60
        $region59: #{tpu_custom_call.1} parent=47 // pred_region
          %p354 = scmp.lt.s32.totalorder %s20, 1
          %s355 = scalar_select %p354, %s20, 1
          %s356 = smul.addr %s355, 16
          %s357 = smul.addr %s356, 8
          %s358 = scalar_lea.vmem %s2, %s357
        $region60: #{tpu_custom_call.1} parent=47 // pred_fallthru
          _
      $region48: #{tpu_custom_call.1} parent=5 // pred_fallthru
        _
      %p359 = scmp.le.s32.totalorder 1, %s20
      %p360 = scmp.lt.s32.totalorder %s20, 3
      %p361 = pnand %p359, %p360
      %p362 = pneg %p361
      // Predicated region
      $region61: #{tpu_custom_call.1} parent=5 // pred_check
        _
      $region62: #{tpu_custom_call.1} parent=5 // pred_check_branch
        %364 = sbr.rel (%p361) target = $region64
      $region63: #{tpu_custom_call.1} parent=5 // pred_region
        %s365 = ssub.s32 %s20, 1
        %p366 = scmp.lt.s32.totalorder %s25, 1
        %s367 = scalar_select %p366, %s25, 1
        %s368 = smul.addr %s367, 16
        %s369 = smul.addr %s368, 8
        %s370 = scalar_lea.vmem %s0, %s369
        %p371 = pneg %p46
        %p372 = pneg %p43
        %p373 = scmp.lt.s32.totalorder %s25, 1
        %s374 = scalar_select %p373, %s25, 1
        %s375 = smul.addr %s374, 16
        %s376 = smul.addr %s375, 8
        %s377 = scalar_lea.vmem %s1, %s376
        %p378 = pneg %p72
        %p379 = pneg %p69
        %p380 = scmp.lt.s32.totalorder %s25, 1
        %s381 = scalar_select %p380, %s25, 1
        %s382 = smul.addr %s381, 16
        %s383 = smul.addr %s382, 8
        %s384 = scalar_lea.vmem %s2, %s383
        %p385 = pneg %p98
        %p386 = pneg %p95
        %p387 = pneg %p119
        %p388 = pneg %p116
        %p389 = pneg %p140
        %p390 = pneg %p137
        %p391 = pneg %p161
        %p392 = pneg %p158
        %p393 = pneg %p182
        %p394 = pneg %p179
        %p395 = pneg %p203
        %p396 = pneg %p200
        %p397 = pneg %p224
        %p398 = pneg %p221
        %p399 = pneg %p245
        %p400 = pneg %p242
        %p401 = pneg %p266
        %p402 = pneg %p263
        %p403 = pneg %p292
        %p404 = pneg %p289
        %s405 = sand.u32 %s279, 1
        %s406 = scalar_lea.sflag [#allocation4], %s405
        %s407 = sand.u32 %s279, 1
        %s408 = smul.addr %s407, 32
        %s409 = scalar_lea.vmem [#allocation3], %s408
        %p410 = scmp.lt.s32.totalorder %s25, 1
        %s411 = scalar_select %p410, %s25, 1
        %s412 = smul.addr %s411, 16
        %s413 = smul.addr %s412, 8
        %s414 = scalar_lea.vmem %s0, %s413
        %p415 = scmp.lt.s32.totalorder %s25, 1
        %s416 = scalar_select %p415, %s25, 1
        %s417 = smul.addr %s416, 16
        %s418 = smul.addr %s417, 8
        %s419 = scalar_lea.vmem %s1, %s418
        %p420 = scmp.lt.s32.totalorder %s25, 1
        %s421 = scalar_select %p420, %s25, 1
        %s422 = smul.addr %s421, 16
        %s423 = smul.addr %s422, 8
        %s424 = scalar_lea.vmem %s2, %s423
        %v425 = vld [vmem:[%s414] sm:$0xff]
        %v426 = vld [vmem:[%s414 + $0x8] sm:$0xff]
        %v427 = vld [vmem:[%s414 + $0x10] sm:$0xff]
        %v428 = vld [vmem:[%s414 + $0x18] sm:$0xff]
        %v429 = vld [vmem:[%s414 + $0x20] sm:$0xff]
        %v430 = vld [vmem:[%s414 + $0x28] sm:$0xff]
        %v431 = vld [vmem:[%s414 + $0x30] sm:$0xff]
        %v432 = vld [vmem:[%s414 + $0x38] sm:$0xff]
        %v433 = vld [vmem:[%s414 + $0x40] sm:$0xff]
        %v434 = vld [vmem:[%s414 + $0x48] sm:$0xff]
        %v435 = vld [vmem:[%s414 + $0x50] sm:$0xff]
        %v436 = vld [vmem:[%s414 + $0x58] sm:$0xff]
        %v437 = vld [vmem:[%s414 + $0x60] sm:$0xff]
        %v438 = vld [vmem:[%s414 + $0x68] sm:$0xff]
        %v439 = vld [vmem:[%s414 + $0x70] sm:$0xff]
        %v440 = vld [vmem:[%s414 + $0x78] sm:$0xff]
        %v441 = vld [vmem:[%s3] sm:$0xff]
        %v442 = vld [vmem:[%s3 + $0x8] sm:$0xff]
        %v443 = vld [vmem:[%s3 + $0x10] sm:$0xff]
        %v444 = vld [vmem:[%s3 + $0x18] sm:$0xff]
        %v445 = vld [vmem:[%s4] sm:$0x1]
        %v447 = vlaneseq
        %v448 = vshrl.u32 %v447, 7
        %v449 = vsub.s32 0, %v448
        %v450 = vrot.slane %v445, %v449
        %vm452 = vcmask 261120
        %v454 = vsel %vm452, %v425, 0
        %v457 = vsel %vm452, %v426, 0
        %v460 = vsel %vm452, %v427, 0
        %v463 = vsel %vm452, %v428, 0
        %v466 = vsel %vm452, %v429, 0
        %v469 = vsel %vm452, %v430, 0
        %v472 = vsel %vm452, %v431, 0
        %v475 = vsel %vm452, %v432, 0
        %v478 = vsel %vm452, %v433, 0
        %v481 = vsel %vm452, %v434, 0
        %v484 = vsel %vm452, %v435, 0
        %v487 = vsel %vm452, %v436, 0
        %v490 = vsel %vm452, %v437, 0
        %v493 = vsel %vm452, %v438, 0
        %v496 = vsel %vm452, %v439, 0
        %v499 = vsel %vm452, %v440, 0
        %501 = vmatprep.subr.mxu0 0.0
        %502 = vmatpush1.msra.mxu0 %v441
        %503 = vmatprep.subr.mxu0 0.0
        %504 = vmatpush1.msra.mxu0 %v442
        %505 = vmatprep.subr.mxu0 0.0
        %506 = vmatpush1.msra.mxu0 %v443
        %507 = vmatprep.subr.mxu0 0.0
        %508 = vmatpush1.msra.mxu0 %v444
        %509 = vmatprep.subr.mxu0 0.0
        %510 = vmatpush1.msra.mxu0 0.0
        %511 = vmatprep.subr.mxu0 0.0
        %512 = vmatpush1.msra.mxu0 0.0
        %513 = vmatprep.subr.mxu0 0.0
        %514 = vmatpush1.msra.mxu0 0.0
        %515 = vmatprep.subr.mxu0 0.0
        %516 = vmatpush1.msra.mxu0 0.0
        %517 = vmatprep.subr.mxu0 0.0
        %518 = vmatpush1.msra.mxu0 0.0
        %519 = vmatprep.subr.mxu0 0.0
        %520 = vmatpush1.msra.mxu0 0.0
        %521 = vmatprep.subr.mxu0 0.0
        %522 = vmatpush1.msra.mxu0 0.0
        %523 = vmatprep.subr.mxu0 0.0
        %524 = vmatpush1.msra.mxu0 0.0
        %525 = vmatprep.subr.mxu0 0.0
        %526 = vmatpush1.msra.mxu0 0.0
        %527 = vmatprep.subr.mxu0 0.0
        %528 = vmatpush1.msra.mxu0 0.0
        %529 = vmatprep.subr.mxu0 0.0
        %530 = vmatpush1.msra.mxu0 0.0
        %531 = vmatprep.subr.mxu0 0.0
        %532 = vmatpush1.msra.mxu0 0.0
        %533 = vmatprep.subr.mxu0 0.0
        %534 = vmatpush1.msra.mxu0 0.0
        %535 = vmatprep.subr.mxu0 0.0
        %536 = vmatpush1.msra.mxu0 0.0
        %537 = vmatprep.subr.mxu0 0.0
        %538 = vmatpush1.msra.mxu0 0.0
        %539 = vmatprep.subr.mxu0 0.0
        %540 = vmatpush1.msra.mxu0 0.0
        %541 = vmatprep.subr.mxu0 0.0
        %542 = vmatpush1.msra.mxu0 0.0
        %543 = vmatprep.subr.mxu0 0.0
        %544 = vmatpush1.msra.mxu0 0.0
        %545 = vmatprep.subr.mxu0 0.0
        %546 = vmatpush1.msra.mxu0 0.0
        %547 = vmatprep.subr.mxu0 0.0
        %548 = vmatpush1.msra.mxu0 0.0
        %549 = vmatprep.subr.mxu0 0.0
        %550 = vmatpush1.msra.mxu0 0.0
        %551 = vmatprep.subr.mxu0 0.0
        %552 = vmatpush1.msra.mxu0 0.0
        %553 = vmatprep.subr.mxu0 0.0
        %554 = vmatpush1.msra.mxu0 0.0
        %555 = vmatprep.subr.mxu0 0.0
        %556 = vmatpush1.msra.mxu0 0.0
        %557 = vmatprep.subr.mxu0 0.0
        %558 = vmatpush1.msra.mxu0 0.0
        %559 = vmatprep.subr.mxu0 0.0
        %560 = vmatpush1.msra.mxu0 0.0
        %561 = vmatprep.subr.mxu0 0.0
        %562 = vmatpush1.msra.mxu0 0.0
        %563 = vmatprep.subr.mxu0 0.0
        %564 = vmatpush1.msra.mxu0 0.0
        %565 = vmatprep.mubr.f32.mxu0 0.0
        %566 = vmatmul.mubr.f32.gmra.mrb[0].mxu0 %v454
        %v567 = vpop.f32.mrb[0].mxu0
        %v568 = vadd.f32 %v450, %v567
        %v569 = vpop.f32.mrb[0].mxu0
        %570 = vmatprep.mubr.f32.mxu0 0.0
        %571 = vmatmul.mubr.f32.gmra.mrb[0].mxu0 %v457
        %v572 = vpop.f32.mrb[0].mxu0
        %v573 = vadd.f32 %v450, %v572
        %v574 = vpop.f32.mrb[0].mxu0
        %575 = vmatprep.mubr.f32.mxu0 0.0
        %576 = vmatmul.mubr.f32.gmra.mrb[0].mxu0 %v460
        %v577 = vpop.f32.mrb[0].mxu0
        %v578 = vadd.f32 %v450, %v577
        %v579 = vpop.f32.mrb[0].mxu0
        %580 = vmatprep.mubr.f32.mxu0 0.0
        %581 = vmatmul.mubr.f32.gmra.mrb[0].mxu0 %v463
        %v582 = vpop.f32.mrb[0].mxu0
        %v583 = vadd.f32 %v450, %v582
        %v584 = vpop.f32.mrb[0].mxu0
        %585 = vmatprep.mubr.f32.mxu0 0.0
        %586 = vmatmul.mubr.f32.gmra.mrb[0].mxu0 %v466
        %v587 = vpop.f32.mrb[0].mxu0
        %v588 = vadd.f32 %v450, %v587
        %v589 = vpop.f32.mrb[0].mxu0
        %590 = vmatprep.mubr.f32.mxu0 0.0
        %591 = vmatmul.mubr.f32.gmra.mrb[0].mxu0 %v469
        %v592 = vpop.f32.mrb[0].mxu0
        %v593 = vadd.f32 %v450, %v592
        %v594 = vpop.f32.mrb[0].mxu0
        %595 = vmatprep.mubr.f32.mxu0 0.0
        %596 = vmatmul.mubr.f32.gmra.mrb[0].mxu0 %v472
        %v597 = vpop.f32.mrb[0].mxu0
        %v598 = vadd.f32 %v450, %v597
        %v599 = vpop.f32.mrb[0].mxu0
        %600 = vmatprep.mubr.f32.mxu0 0.0
        %601 = vmatmul.mubr.f32.gmra.mrb[0].mxu0 %v475
        %v602 = vpop.f32.mrb[0].mxu0
        %v603 = vadd.f32 %v450, %v602
        %v604 = vpop.f32.mrb[0].mxu0
        %605 = vmatprep.mubr.f32.mxu0 0.0
        %606 = vmatmul.mubr.f32.gmra.mrb[0].mxu0 %v478
        %v607 = vpop.f32.mrb[0].mxu0
        %v608 = vadd.f32 %v450, %v607
        %v609 = vpop.f32.mrb[0].mxu0
        %610 = vmatprep.mubr.f32.mxu0 0.0
        %611 = vmatmul.mubr.f32.gmra.mrb[0].mxu0 %v481
        %v612 = vpop.f32.mrb[0].mxu0
        %v613 = vadd.f32 %v450, %v612
        %v614 = vpop.f32.mrb[0].mxu0
        %615 = vmatprep.mubr.f32.mxu0 0.0
        %616 = vmatmul.mubr.f32.gmra.mrb[0].mxu0 %v484
        %v617 = vpop.f32.mrb[0].mxu0
        %v618 = vadd.f32 %v450, %v617
        %v619 = vpop.f32.mrb[0].mxu0
        %620 = vmatprep.mubr.f32.mxu0 0.0
        %621 = vmatmul.mubr.f32.gmra.mrb[0].mxu0 %v487
        %v622 = vpop.f32.mrb[0].mxu0
        %v623 = vadd.f32 %v450, %v622
        %v624 = vpop.f32.mrb[0].mxu0
        %625 = vmatprep.mubr.f32.mxu0 0.0
        %626 = vmatmul.mubr.f32.gmra.mrb[0].mxu0 %v490
        %v627 = vpop.f32.mrb[0].mxu0
        %v628 = vadd.f32 %v450, %v627
        %v629 = vpop.f32.mrb[0].mxu0
        %630 = vmatprep.mubr.f32.mxu0 0.0
        %631 = vmatmul.mubr.f32.gmra.mrb[0].mxu0 %v493
        %v632 = vpop.f32.mrb[0].mxu0
        %v633 = vadd.f32 %v450, %v632
        %v634 = vpop.f32.mrb[0].mxu0
        %635 = vmatprep.mubr.f32.mxu0 0.0
        %636 = vmatmul.mubr.f32.gmra.mrb[0].mxu0 %v496
        %v637 = vpop.f32.mrb[0].mxu0
        %v638 = vadd.f32 %v450, %v637
        %v639 = vpop.f32.mrb[0].mxu0
        %640 = vmatprep.mubr.f32.mxu0 0.0
        %641 = vmatmul.mubr.f32.gmra.mrb[0].mxu0 %v499
        %v642 = vpop.f32.mrb[0].mxu0
        %v643 = vadd.f32 %v450, %v642
        %v644 = vpop.f32.mrb[0].mxu0
        %645 = vdwg.mxu0
        %v646 = vld [vmem:[%s419] sm:$0xff]
        %v647 = vld [vmem:[%s419 + $0x8] sm:$0xff]
        %v648 = vld [vmem:[%s419 + $0x10] sm:$0xff]
        %v649 = vld [vmem:[%s419 + $0x18] sm:$0xff]
        %v650 = vld [vmem:[%s419 + $0x20] sm:$0xff]
        %v651 = vld [vmem:[%s419 + $0x28] sm:$0xff]
        %v652 = vld [vmem:[%s419 + $0x30] sm:$0xff]
        %v653 = vld [vmem:[%s419 + $0x38] sm:$0xff]
        %v654 = vld [vmem:[%s419 + $0x40] sm:$0xff]
        %v655 = vld [vmem:[%s419 + $0x48] sm:$0xff]
        %v656 = vld [vmem:[%s419 + $0x50] sm:$0xff]
        %v657 = vld [vmem:[%s419 + $0x58] sm:$0xff]
        %v658 = vld [vmem:[%s419 + $0x60] sm:$0xff]
        %v659 = vld [vmem:[%s419 + $0x68] sm:$0xff]
        %v660 = vld [vmem:[%s419 + $0x70] sm:$0xff]
        %v661 = vld [vmem:[%s419 + $0x78] sm:$0xff]
        %v662 = vld [vmem:[%s5] sm:$0xff]
        %v663 = vld [vmem:[%s5 + $0x8] sm:$0xff]
        %v664 = vld [vmem:[%s5 + $0x10] sm:$0xff]
        %v665 = vld [vmem:[%s5 + $0x18] sm:$0xff]
        %v666 = vld [vmem:[%s6] sm:$0x1]
        %v668 = vlaneseq
        %v669 = vshrl.u32 %v668, 7
        %v670 = vsub.s32 0, %v669
        %v671 = vrot.slane %v666, %v670
        %v674 = vsel %vm452, %v646, 0
        %v677 = vsel %vm452, %v647, 0
        %v680 = vsel %vm452, %v648, 0
        %v683 = vsel %vm452, %v649, 0
        %v686 = vsel %vm452, %v650, 0
        %v689 = vsel %vm452, %v651, 0
        %v692 = vsel %vm452, %v652, 0
        %v695 = vsel %vm452, %v653, 0
        %v698 = vsel %vm452, %v654, 0
        %v701 = vsel %vm452, %v655, 0
        %v704 = vsel %vm452, %v656, 0
        %v707 = vsel %vm452, %v657, 0
        %v710 = vsel %vm452, %v658, 0
        %v713 = vsel %vm452, %v659, 0
        %v716 = vsel %vm452, %v660, 0
        %v719 = vsel %vm452, %v661, 0
        %721 = vmatprep.subr.mxu0 0.0
        %722 = vmatpush1.msra.mxu0 %v662
        %723 = vmatprep.subr.mxu0 0.0
        %724 = vmatpush1.msra.mxu0 %v663
        %725 = vmatprep.subr.mxu0 0.0
        %726 = vmatpush1.msra.mxu0 %v664
        %727 = vmatprep.subr.mxu0 0.0
        %728 = vmatpush1.msra.mxu0 %v665
        %729 = vmatprep.subr.mxu0 0.0
        %730 = vmatpush1.msra.mxu0 0.0
        %731 = vmatprep.subr.mxu0 0.0
        %732 = vmatpush1.msra.mxu0 0.0
        %733 = vmatprep.subr.mxu0 0.0
        %734 = vmatpush1.msra.mxu0 0.0
        %735 = vmatprep.subr.mxu0 0.0
        %736 = vmatpush1.msra.mxu0 0.0
        %737 = vmatprep.subr.mxu0 0.0
        %738 = vmatpush1.msra.mxu0 0.0
        %739 = vmatprep.subr.mxu0 0.0
        %740 = vmatpush1.msra.mxu0 0.0
        %741 = vmatprep.subr.mxu0 0.0
        %742 = vmatpush1.msra.mxu0 0.0
        %743 = vmatprep.subr.mxu0 0.0
        %744 = vmatpush1.msra.mxu0 0.0
        %745 = vmatprep.subr.mxu0 0.0
        %746 = vmatpush1.msra.mxu0 0.0
        %747 = vmatprep.subr.mxu0 0.0
        %748 = vmatpush1.msra.mxu0 0.0
        %749 = vmatprep.subr.mxu0 0.0
        %750 = vmatpush1.msra.mxu0 0.0
        %751 = vmatprep.subr.mxu0 0.0
        %752 = vmatpush1.msra.mxu0 0.0
        %753 = vmatprep.subr.mxu0 0.0
        %754 = vmatpush1.msra.mxu0 0.0
        %755 = vmatprep.subr.mxu0 0.0
        %756 = vmatpush1.msra.mxu0 0.0
        %757 = vmatprep.subr.mxu0 0.0
        %758 = vmatpush1.msra.mxu0 0.0
        %759 = vmatprep.subr.mxu0 0.0
        %760 = vmatpush1.msra.mxu0 0.0
        %761 = vmatprep.subr.mxu0 0.0
        %762 = vmatpush1.msra.mxu0 0.0
        %763 = vmatprep.subr.mxu0 0.0
        %764 = vmatpush1.msra.mxu0 0.0
        %765 = vmatprep.subr.mxu0 0.0
        %766 = vmatpush1.msra.mxu0 0.0
        %767 = vmatprep.subr.mxu0 0.0
        %768 = vmatpush1.msra.mxu0 0.0
        %769 = vmatprep.subr.mxu0 0.0
        %770 = vmatpush1.msra.mxu0 0.0
        %771 = vmatprep.subr.mxu0 0.0
        %772 = vmatpush1.msra.mxu0 0.0
        %773 = vmatprep.subr.mxu0 0.0
        %774 = vmatpush1.msra.mxu0 0.0
        %775 = vmatprep.subr.mxu0 0.0
        %776 = vmatpush1.msra.mxu0 0.0
        %777 = vmatprep.subr.mxu0 0.0
        %778 = vmatpush1.msra.mxu0 0.0
        %779 = vmatprep.subr.mxu0 0.0
        %780 = vmatpush1.msra.mxu0 0.0
        %781 = vmatprep.subr.mxu0 0.0
        %782 = vmatpush1.msra.mxu0 0.0
        %783 = vmatprep.subr.mxu0 0.0
        %784 = vmatpush1.msra.mxu0 0.0
        %785 = vmatprep.mubr.f32.mxu0 0.0
        %786 = vmatmul.mubr.f32.gmra.mrb[0].mxu0 %v674
        %v787 = vpop.f32.mrb[0].mxu0
        %v788 = vadd.f32 %v671, %v787
        %v789 = vpop.f32.mrb[0].mxu0
        %790 = vmatprep.mubr.f32.mxu0 0.0
        %791 = vmatmul.mubr.f32.gmra.mrb[0].mxu0 %v677
        %v792 = vpop.f32.mrb[0].mxu0
        %v793 = vadd.f32 %v671, %v792
        %v794 = vpop.f32.mrb[0].mxu0
        %795 = vmatprep.mubr.f32.mxu0 0.0
        %796 = vmatmul.mubr.f32.gmra.mrb[0].mxu0 %v680
        %v797 = vpop.f32.mrb[0].mxu0
        %v798 = vadd.f32 %v671, %v797
        %v799 = vpop.f32.mrb[0].mxu0
        %800 = vmatprep.mubr.f32.mxu0 0.0
        %801 = vmatmul.mubr.f32.gmra.mrb[0].mxu0 %v683
        %v802 = vpop.f32.mrb[0].mxu0
        %v803 = vadd.f32 %v671, %v802
        %v804 = vpop.f32.mrb[0].mxu0
        %805 = vmatprep.mubr.f32.mxu0 0.0
        %806 = vmatmul.mubr.f32.gmra.mrb[0].mxu0 %v686
        %v807 = vpop.f32.mrb[0].mxu0
        %v808 = vadd.f32 %v671, %v807
        %v809 = vpop.f32.mrb[0].mxu0
        %810 = vmatprep.mubr.f32.mxu0 0.0
        %811 = vmatmul.mubr.f32.gmra.mrb[0].mxu0 %v689
        %v812 = vpop.f32.mrb[0].mxu0
        %v813 = vadd.f32 %v671, %v812
        %v814 = vpop.f32.mrb[0].mxu0
        %815 = vmatprep.mubr.f32.mxu0 0.0
        %816 = vmatmul.mubr.f32.gmra.mrb[0].mxu0 %v692
        %v817 = vpop.f32.mrb[0].mxu0
        %v818 = vadd.f32 %v671, %v817
        %v819 = vpop.f32.mrb[0].mxu0
        %820 = vmatprep.mubr.f32.mxu0 0.0
        %821 = vmatmul.mubr.f32.gmra.mrb[0].mxu0 %v695
        %v822 = vpop.f32.mrb[0].mxu0
        %v823 = vadd.f32 %v671, %v822
        %v824 = vpop.f32.mrb[0].mxu0
        %825 = vmatprep.mubr.f32.mxu0 0.0
        %826 = vmatmul.mubr.f32.gmra.mrb[0].mxu0 %v698
        %v827 = vpop.f32.mrb[0].mxu0
        %v828 = vadd.f32 %v671, %v827
        %v829 = vpop.f32.mrb[0].mxu0
        %830 = vmatprep.mubr.f32.mxu0 0.0
        %831 = vmatmul.mubr.f32.gmra.mrb[0].mxu0 %v701
        %v832 = vpop.f32.mrb[0].mxu0
        %v833 = vadd.f32 %v671, %v832
        %v834 = vpop.f32.mrb[0].mxu0
        %835 = vmatprep.mubr.f32.mxu0 0.0
        %836 = vmatmul.mubr.f32.gmra.mrb[0].mxu0 %v704
        %v837 = vpop.f32.mrb[0].mxu0
        %v838 = vadd.f32 %v671, %v837
        %v839 = vpop.f32.mrb[0].mxu0
        %840 = vmatprep.mubr.f32.mxu0 0.0
        %841 = vmatmul.mubr.f32.gmra.mrb[0].mxu0 %v707
        %v842 = vpop.f32.mrb[0].mxu0
        %v843 = vadd.f32 %v671, %v842
        %v844 = vpop.f32.mrb[0].mxu0
        %845 = vmatprep.mubr.f32.mxu0 0.0
        %846 = vmatmul.mubr.f32.gmra.mrb[0].mxu0 %v710
        %v847 = vpop.f32.mrb[0].mxu0
        %v848 = vadd.f32 %v671, %v847
        %v849 = vpop.f32.mrb[0].mxu0
        %850 = vmatprep.mubr.f32.mxu0 0.0
        %851 = vmatmul.mubr.f32.gmra.mrb[0].mxu0 %v713
        %v852 = vpop.f32.mrb[0].mxu0
        %v853 = vadd.f32 %v671, %v852
        %v854 = vpop.f32.mrb[0].mxu0
        %855 = vmatprep.mubr.f32.mxu0 0.0
        %856 = vmatmul.mubr.f32.gmra.mrb[0].mxu0 %v716
        %v857 = vpop.f32.mrb[0].mxu0
        %v858 = vadd.f32 %v671, %v857
        %v859 = vpop.f32.mrb[0].mxu0
        %860 = vmatprep.mubr.f32.mxu0 0.0
        %861 = vmatmul.mubr.f32.gmra.mrb[0].mxu0 %v719
        %v862 = vpop.f32.mrb[0].mxu0
        %v863 = vadd.f32 %v671, %v862
        %v864 = vpop.f32.mrb[0].mxu0
        %865 = vdwg.mxu0
        %v866 = vld [vmem:[%s424] sm:$0xff]
        %v867 = vld [vmem:[%s424 + $0x8] sm:$0xff]
        %v868 = vld [vmem:[%s424 + $0x10] sm:$0xff]
        %v869 = vld [vmem:[%s424 + $0x18] sm:$0xff]
        %v870 = vld [vmem:[%s424 + $0x20] sm:$0xff]
        %v871 = vld [vmem:[%s424 + $0x28] sm:$0xff]
        %v872 = vld [vmem:[%s424 + $0x30] sm:$0xff]
        %v873 = vld [vmem:[%s424 + $0x38] sm:$0xff]
        %v874 = vld [vmem:[%s424 + $0x40] sm:$0xff]
        %v875 = vld [vmem:[%s424 + $0x48] sm:$0xff]
        %v876 = vld [vmem:[%s424 + $0x50] sm:$0xff]
        %v877 = vld [vmem:[%s424 + $0x58] sm:$0xff]
        %v878 = vld [vmem:[%s424 + $0x60] sm:$0xff]
        %v879 = vld [vmem:[%s424 + $0x68] sm:$0xff]
        %v880 = vld [vmem:[%s424 + $0x70] sm:$0xff]
        %v881 = vld [vmem:[%s424 + $0x78] sm:$0xff]
        %v882 = vld [vmem:[%s7] sm:$0xff]
        %v883 = vld [vmem:[%s7 + $0x8] sm:$0xff]
        %v884 = vld [vmem:[%s7 + $0x10] sm:$0xff]
        %v885 = vld [vmem:[%s7 + $0x18] sm:$0xff]
        %v886 = vld [vmem:[%s8] sm:$0x1]
        %v888 = vlaneseq
        %v889 = vshrl.u32 %v888, 7
        %v890 = vsub.s32 0, %v889
        %v891 = vrot.slane %v886, %v890
        %v894 = vsel %vm452, %v866, 0
        %v897 = vsel %vm452, %v867, 0
        %v900 = vsel %vm452, %v868, 0
        %v903 = vsel %vm452, %v869, 0
        %v906 = vsel %vm452, %v870, 0
        %v909 = vsel %vm452, %v871, 0
        %v912 = vsel %vm452, %v872, 0
        %v915 = vsel %vm452, %v873, 0
        %v918 = vsel %vm452, %v874, 0
        %v921 = vsel %vm452, %v875, 0
        %v924 = vsel %vm452, %v876, 0
        %v927 = vsel %vm452, %v877, 0
        %v930 = vsel %vm452, %v878, 0
        %v933 = vsel %vm452, %v879, 0
        %v936 = vsel %vm452, %v880, 0
        %v939 = vsel %vm452, %v881, 0
        %941 = vmatprep.subr.mxu0 0.0
        %942 = vmatpush1.msra.mxu0 %v882
        %943 = vmatprep.subr.mxu0 0.0
        %944 = vmatpush1.msra.mxu0 %v883
        %945 = vmatprep.subr.mxu0 0.0
        %946 = vmatpush1.msra.mxu0 %v884
        %947 = vmatprep.subr.mxu0 0.0
        %948 = vmatpush1.msra.mxu0 %v885
        %949 = vmatprep.subr.mxu0 0.0
        %950 = vmatpush1.msra.mxu0 0.0
        %951 = vmatprep.subr.mxu0 0.0
        %952 = vmatpush1.msra.mxu0 0.0
        %953 = vmatprep.subr.mxu0 0.0
        %954 = vmatpush1.msra.mxu0 0.0
        %955 = vmatprep.subr.mxu0 0.0
        %956 = vmatpush1.msra.mxu0 0.0
        %957 = vmatprep.subr.mxu0 0.0
        %958 = vmatpush1.msra.mxu0 0.0
        %959 = vmatprep.subr.mxu0 0.0
        %960 = vmatpush1.msra.mxu0 0.0
        %961 = vmatprep.subr.mxu0 0.0
        %962 = vmatpush1.msra.mxu0 0.0
        %963 = vmatprep.subr.mxu0 0.0
        %964 = vmatpush1.msra.mxu0 0.0
        %965 = vmatprep.subr.mxu0 0.0
        %966 = vmatpush1.msra.mxu0 0.0
        %967 = vmatprep.subr.mxu0 0.0
        %968 = vmatpush1.msra.mxu0 0.0
        %969 = vmatprep.subr.mxu0 0.0
        %970 = vmatpush1.msra.mxu0 0.0
        %971 = vmatprep.subr.mxu0 0.0
        %972 = vmatpush1.msra.mxu0 0.0
        %973 = vmatprep.subr.mxu0 0.0
        %974 = vmatpush1.msra.mxu0 0.0
        %975 = vmatprep.subr.mxu0 0.0
        %976 = vmatpush1.msra.mxu0 0.0
        %977 = vmatprep.subr.mxu0 0.0
        %978 = vmatpush1.msra.mxu0 0.0
        %979 = vmatprep.subr.mxu0 0.0
        %980 = vmatpush1.msra.mxu0 0.0
        %981 = vmatprep.subr.mxu0 0.0
        %982 = vmatpush1.msra.mxu0 0.0
        %983 = vmatprep.subr.mxu0 0.0
        %984 = vmatpush1.msra.mxu0 0.0
        %985 = vmatprep.subr.mxu0 0.0
        %986 = vmatpush1.msra.mxu0 0.0
        %987 = vmatprep.subr.mxu0 0.0
        %988 = vmatpush1.msra.mxu0 0.0
        %989 = vmatprep.subr.mxu0 0.0
        %990 = vmatpush1.msra.mxu0 0.0
        %991 = vmatprep.subr.mxu0 0.0
        %992 = vmatpush1.msra.mxu0 0.0
        %993 = vmatprep.subr.mxu0 0.0
        %994 = vmatpush1.msra.mxu0 0.0
        %995 = vmatprep.subr.mxu0 0.0
        %996 = vmatpush1.msra.mxu0 0.0
        %997 = vmatprep.subr.mxu0 0.0
        %998 = vmatpush1.msra.mxu0 0.0
        %999 = vmatprep.subr.mxu0 0.0
        %1000 = vmatpush1.msra.mxu0 0.0
        %1001 = vmatprep.subr.mxu0 0.0
        %1002 = vmatpush1.msra.mxu0 0.0
        %1003 = vmatprep.subr.mxu0 0.0
        %1004 = vmatpush1.msra.mxu0 0.0
        %1005 = vmatprep.mubr.f32.mxu0 0.0
        %1006 = vmatmul.mubr.f32.gmra.mrb[0].mxu0 %v894
        %v1007 = vpop.f32.mrb[0].mxu0
        %v1008 = vadd.f32 %v891, %v1007
        %v1009 = vpop.f32.mrb[0].mxu0
        %1010 = vmatprep.mubr.f32.mxu0 0.0
        %1011 = vmatmul.mubr.f32.gmra.mrb[0].mxu0 %v897
        %v1012 = vpop.f32.mrb[0].mxu0
        %v1013 = vadd.f32 %v891, %v1012
        %v1014 = vpop.f32.mrb[0].mxu0
        %1015 = vmatprep.mubr.f32.mxu0 0.0
        %1016 = vmatmul.mubr.f32.gmra.mrb[0].mxu0 %v900
        %v1017 = vpop.f32.mrb[0].mxu0
        %v1018 = vadd.f32 %v891, %v1017
        %v1019 = vpop.f32.mrb[0].mxu0
        %1020 = vmatprep.mubr.f32.mxu0 0.0
        %1021 = vmatmul.mubr.f32.gmra.mrb[0].mxu0 %v903
        %v1022 = vpop.f32.mrb[0].mxu0
        %v1023 = vadd.f32 %v891, %v1022
        %v1024 = vpop.f32.mrb[0].mxu0
        %1025 = vmatprep.mubr.f32.mxu0 0.0
        %1026 = vmatmul.mubr.f32.gmra.mrb[0].mxu0 %v906
        %v1027 = vpop.f32.mrb[0].mxu0
        %v1028 = vadd.f32 %v891, %v1027
        %v1029 = vpop.f32.mrb[0].mxu0
        %1030 = vmatprep.mubr.f32.mxu0 0.0
        %1031 = vmatmul.mubr.f32.gmra.mrb[0].mxu0 %v909
        %v1032 = vpop.f32.mrb[0].mxu0
        %v1033 = vadd.f32 %v891, %v1032
        %v1034 = vpop.f32.mrb[0].mxu0
        %1035 = vmatprep.mubr.f32.mxu0 0.0
        %1036 = vmatmul.mubr.f32.gmra.mrb[0].mxu0 %v912
        %v1037 = vpop.f32.mrb[0].mxu0
        %v1038 = vadd.f32 %v891, %v1037
        %v1039 = vpop.f32.mrb[0].mxu0
        %1040 = vmatprep.mubr.f32.mxu0 0.0
        %1041 = vmatmul.mubr.f32.gmra.mrb[0].mxu0 %v915
        %v1042 = vpop.f32.mrb[0].mxu0
        %v1043 = vadd.f32 %v891, %v1042
        %v1044 = vpop.f32.mrb[0].mxu0
        %1045 = vmatprep.mubr.f32.mxu0 0.0
        %1046 = vmatmul.mubr.f32.gmra.mrb[0].mxu0 %v918
        %v1047 = vpop.f32.mrb[0].mxu0
        %v1048 = vadd.f32 %v891, %v1047
        %v1049 = vpop.f32.mrb[0].mxu0
        %1050 = vmatprep.mubr.f32.mxu0 0.0
        %1051 = vmatmul.mubr.f32.gmra.mrb[0].mxu0 %v921
        %v1052 = vpop.f32.mrb[0].mxu0
        %v1053 = vadd.f32 %v891, %v1052
        %v1054 = vpop.f32.mrb[0].mxu0
        %1055 = vmatprep.mubr.f32.mxu0 0.0
        %1056 = vmatmul.mubr.f32.gmra.mrb[0].mxu0 %v924
        %v1057 = vpop.f32.mrb[0].mxu0
        %v1058 = vadd.f32 %v891, %v1057
        %v1059 = vpop.f32.mrb[0].mxu0
        %1060 = vmatprep.mubr.f32.mxu0 0.0
        %1061 = vmatmul.mubr.f32.gmra.mrb[0].mxu0 %v927
        %v1062 = vpop.f32.mrb[0].mxu0
        %v1063 = vadd.f32 %v891, %v1062
        %v1064 = vpop.f32.mrb[0].mxu0
        %1065 = vmatprep.mubr.f32.mxu0 0.0
        %1066 = vmatmul.mubr.f32.gmra.mrb[0].mxu0 %v930
        %v1067 = vpop.f32.mrb[0].mxu0
        %v1068 = vadd.f32 %v891, %v1067
        %v1069 = vpop.f32.mrb[0].mxu0
        %1070 = vmatprep.mubr.f32.mxu0 0.0
        %1071 = vmatmul.mubr.f32.gmra.mrb[0].mxu0 %v933
        %v1072 = vpop.f32.mrb[0].mxu0
        %v1073 = vadd.f32 %v891, %v1072
        %v1074 = vpop.f32.mrb[0].mxu0
        %1075 = vmatprep.mubr.f32.mxu0 0.0
        %1076 = vmatmul.mubr.f32.gmra.mrb[0].mxu0 %v936
        %v1077 = vpop.f32.mrb[0].mxu0
        %v1078 = vadd.f32 %v891, %v1077
        %v1079 = vpop.f32.mrb[0].mxu0
        %1080 = vmatprep.mubr.f32.mxu0 0.0
        %1081 = vmatmul.mubr.f32.gmra.mrb[0].mxu0 %v939
        %v1082 = vpop.f32.mrb[0].mxu0
        %v1083 = vadd.f32 %v891, %v1082
        %v1084 = vpop.f32.mrb[0].mxu0
        %1085 = vdwg.mxu0
        %v1086 = vmul.f32 %v568, 0.35355338
        %v1087 = vmul.f32 %v573, 0.35355338
        %v1088 = vmul.f32 %v578, 0.35355338
        %v1089 = vmul.f32 %v583, 0.35355338
        %v1090 = vmul.f32 %v588, 0.35355338
        %v1091 = vmul.f32 %v593, 0.35355338
        %v1092 = vmul.f32 %v598, 0.35355338
        %v1093 = vmul.f32 %v603, 0.35355338
        %v1094 = vmul.f32 %v608, 0.35355338
        %v1095 = vmul.f32 %v613, 0.35355338
        %v1096 = vmul.f32 %v618, 0.35355338
        %v1097 = vmul.f32 %v623, 0.35355338
        %v1098 = vmul.f32 %v628, 0.35355338
        %v1099 = vmul.f32 %v633, 0.35355338
        %v1100 = vmul.f32 %v638, 0.35355338
        %v1101 = vmul.f32 %v643, 0.35355338
        %v1102 = vlaneseq
        %v1103 = vand.u32 %v1102, 127
        %vm1104 = vcmp.lt.s32.totalorder %v1103, 16
        %v1105 = vsel %vm1104, 0.0, -1e+30
        %vm1106 = vcmask 64512
        %v1108 = vsel %vm1106, %v1086, 0
        %v1111 = vsel %vm1106, %v1087, 0
        %v1114 = vsel %vm1106, %v1088, 0
        %v1117 = vsel %vm1106, %v1089, 0
        %v1120 = vsel %vm1106, %v1090, 0
        %v1123 = vsel %vm1106, %v1091, 0
        %v1126 = vsel %vm1106, %v1092, 0
        %v1129 = vsel %vm1106, %v1093, 0
        %v1132 = vsel %vm1106, %v1094, 0
        %v1135 = vsel %vm1106, %v1095, 0
        %v1138 = vsel %vm1106, %v1096, 0
        %v1141 = vsel %vm1106, %v1097, 0
        %v1144 = vsel %vm1106, %v1098, 0
        %v1147 = vsel %vm1106, %v1099, 0
        %v1150 = vsel %vm1106, %v1100, 0
        %v1153 = vsel %vm1106, %v1101, 0
        %v1156 = vsel %vm1106, %v788, 0
        %v1159 = vsel %vm1106, %v793, 0
        %v1162 = vsel %vm1106, %v798, 0
        %v1165 = vsel %vm1106, %v803, 0
        %v1168 = vsel %vm1106, %v808, 0
        %v1171 = vsel %vm1106, %v813, 0
        %v1174 = vsel %vm1106, %v818, 0
        %v1177 = vsel %vm1106, %v823, 0
        %v1180 = vsel %vm1106, %v828, 0
        %v1183 = vsel %vm1106, %v833, 0
        %v1186 = vsel %vm1106, %v838, 0
        %v1189 = vsel %vm1106, %v843, 0
        %v1192 = vsel %vm1106, %v848, 0
        %v1195 = vsel %vm1106, %v853, 0
        %v1198 = vsel %vm1106, %v858, 0
        %v1201 = vsel %vm1106, %v863, 0
        %1203 = vmatprep.subr.mxu0 0.0
        %1204 = vmatpush1.xpose.msra.mxu0 %v1156
        %1205 = vmatprep.subr.mxu0 0.0
        %1206 = vmatpush1.xpose.msra.mxu0 %v1159
        %1207 = vmatprep.subr.mxu0 0.0
        %1208 = vmatpush1.xpose.msra.mxu0 %v1162
        %1209 = vmatprep.subr.mxu0 0.0
        %1210 = vmatpush1.xpose.msra.mxu0 %v1165
        %1211 = vmatprep.subr.mxu0 0.0
        %1212 = vmatpush1.xpose.msra.mxu0 %v1168
        %1213 = vmatprep.subr.mxu0 0.0
        %1214 = vmatpush1.xpose.msra.mxu0 %v1171
        %1215 = vmatprep.subr.mxu0 0.0
        %1216 = vmatpush1.xpose.msra.mxu0 %v1174
        %1217 = vmatprep.subr.mxu0 0.0
        %1218 = vmatpush1.xpose.msra.mxu0 %v1177
        %1219 = vmatprep.subr.mxu0 0.0
        %1220 = vmatpush1.xpose.msra.mxu0 %v1180
        %1221 = vmatprep.subr.mxu0 0.0
        %1222 = vmatpush1.xpose.msra.mxu0 %v1183
        %1223 = vmatprep.subr.mxu0 0.0
        %1224 = vmatpush1.xpose.msra.mxu0 %v1186
        %1225 = vmatprep.subr.mxu0 0.0
        %1226 = vmatpush1.xpose.msra.mxu0 %v1189
        %1227 = vmatprep.subr.mxu0 0.0
        %1228 = vmatpush1.xpose.msra.mxu0 %v1192
        %1229 = vmatprep.subr.mxu0 0.0
        %1230 = vmatpush1.xpose.msra.mxu0 %v1195
        %1231 = vmatprep.subr.mxu0 0.0
        %1232 = vmatpush1.xpose.msra.mxu0 %v1198
        %1233 = vmatprep.subr.mxu0 0.0
        %1234 = vmatpush1.xpose.msra.mxu0 %v1201
        %1235 = vmatprep.subr.mxu0 0.0
        %1236 = vmatpush1.xpose.msra.mxu0 0.0
        %1237 = vmatprep.subr.mxu0 0.0
        %1238 = vmatpush1.xpose.msra.mxu0 0.0
        %1239 = vmatprep.subr.mxu0 0.0
        %1240 = vmatpush1.xpose.msra.mxu0 0.0
        %1241 = vmatprep.subr.mxu0 0.0
        %1242 = vmatpush1.xpose.msra.mxu0 0.0
        %1243 = vmatprep.subr.mxu0 0.0
        %1244 = vmatpush1.xpose.msra.mxu0 0.0
        %1245 = vmatprep.subr.mxu0 0.0
        %1246 = vmatpush1.xpose.msra.mxu0 0.0
        %1247 = vmatprep.subr.mxu0 0.0
        %1248 = vmatpush1.xpose.msra.mxu0 0.0
        %1249 = vmatprep.subr.mxu0 0.0
        %1250 = vmatpush1.xpose.msra.mxu0 0.0
        %1251 = vmatprep.subr.mxu0 0.0
        %1252 = vmatpush1.xpose.msra.mxu0 0.0
        %1253 = vmatprep.subr.mxu0 0.0
        %1254 = vmatpush1.xpose.msra.mxu0 0.0
        %1255 = vmatprep.subr.mxu0 0.0
        %1256 = vmatpush1.xpose.msra.mxu0 0.0
        %1257 = vmatprep.subr.mxu0 0.0
        %1258 = vmatpush1.xpose.msra.mxu0 0.0
        %1259 = vmatprep.subr.mxu0 0.0
        %1260 = vmatpush1.xpose.msra.mxu0 0.0
        %1261 = vmatprep.subr.mxu0 0.0
        %1262 = vmatpush1.xpose.msra.mxu0 0.0
        %1263 = vmatprep.subr.mxu0 0.0
        %1264 = vmatpush1.xpose.msra.mxu0 0.0
        %1265 = vmatprep.subr.mxu0 0.0
        %1266 = vmatpush1.xpose.msra.mxu0 0.0
        %1267 = vmatprep.mubr.f32.mxu0 0.0
        %1268 = vmatmul.mubr.f32.gmra.mrb[0].mxu0 %v1108
        %v1269 = vpop.f32.mrb[0].mxu0
        %v1270 = vadd.f32 %v1105, %v1269
        %v1271 = vpop.f32.mrb[0].mxu0
        %1272 = vmatprep.mubr.f32.mxu0 0.0
        %1273 = vmatmul.mubr.f32.gmra.mrb[0].mxu0 %v1111
        %v1274 = vpop.f32.mrb[0].mxu0
        %v1275 = vadd.f32 %v1105, %v1274
        %v1276 = vpop.f32.mrb[0].mxu0
        %1277 = vmatprep.mubr.f32.mxu0 0.0
        %1278 = vmatmul.mubr.f32.gmra.mrb[0].mxu0 %v1114
        %v1279 = vpop.f32.mrb[0].mxu0
        %v1280 = vadd.f32 %v1105, %v1279
        %v1281 = vpop.f32.mrb[0].mxu0
        %1282 = vmatprep.mubr.f32.mxu0 0.0
        %1283 = vmatmul.mubr.f32.gmra.mrb[0].mxu0 %v1117
        %v1284 = vpop.f32.mrb[0].mxu0
        %v1285 = vadd.f32 %v1105, %v1284
        %v1286 = vpop.f32.mrb[0].mxu0
        %1287 = vmatprep.mubr.f32.mxu0 0.0
        %1288 = vmatmul.mubr.f32.gmra.mrb[0].mxu0 %v1120
        %v1289 = vpop.f32.mrb[0].mxu0
        %v1290 = vadd.f32 %v1105, %v1289
        %v1291 = vpop.f32.mrb[0].mxu0
        %1292 = vmatprep.mubr.f32.mxu0 0.0
        %1293 = vmatmul.mubr.f32.gmra.mrb[0].mxu0 %v1123
        %v1294 = vpop.f32.mrb[0].mxu0
        %v1295 = vadd.f32 %v1105, %v1294
        %v1296 = vpop.f32.mrb[0].mxu0
        %1297 = vmatprep.mubr.f32.mxu0 0.0
        %1298 = vmatmul.mubr.f32.gmra.mrb[0].mxu0 %v1126
        %v1299 = vpop.f32.mrb[0].mxu0
        %v1300 = vadd.f32 %v1105, %v1299
        %v1301 = vpop.f32.mrb[0].mxu0
        %1302 = vmatprep.mubr.f32.mxu0 0.0
        %1303 = vmatmul.mubr.f32.gmra.mrb[0].mxu0 %v1129
        %v1304 = vpop.f32.mrb[0].mxu0
        %v1305 = vadd.f32 %v1105, %v1304
        %v1306 = vpop.f32.mrb[0].mxu0
        %1307 = vmatprep.mubr.f32.mxu0 0.0
        %1308 = vmatmul.mubr.f32.gmra.mrb[0].mxu0 %v1132
        %v1309 = vpop.f32.mrb[0].mxu0
        %v1310 = vadd.f32 %v1105, %v1309
        %v1311 = vpop.f32.mrb[0].mxu0
        %1312 = vmatprep.mubr.f32.mxu0 0.0
        %1313 = vmatmul.mubr.f32.gmra.mrb[0].mxu0 %v1135
        %v1314 = vpop.f32.mrb[0].mxu0
        %v1315 = vadd.f32 %v1105, %v1314
        %v1316 = vpop.f32.mrb[0].mxu0
        %1317 = vmatprep.mubr.f32.mxu0 0.0
        %1318 = vmatmul.mubr.f32.gmra.mrb[0].mxu0 %v1138
        %v1319 = vpop.f32.mrb[0].mxu0
        %v1320 = vadd.f32 %v1105, %v1319
        %v1321 = vpop.f32.mrb[0].mxu0
        %1322 = vmatprep.mubr.f32.mxu0 0.0
        %1323 = vmatmul.mubr.f32.gmra.mrb[0].mxu0 %v1141
        %v1324 = vpop.f32.mrb[0].mxu0
        %v1325 = vadd.f32 %v1105, %v1324
        %v1326 = vpop.f32.mrb[0].mxu0
        %1327 = vmatprep.mubr.f32.mxu0 0.0
        %1328 = vmatmul.mubr.f32.gmra.mrb[0].mxu0 %v1144
        %v1329 = vpop.f32.mrb[0].mxu0
        %v1330 = vadd.f32 %v1105, %v1329
        %v1331 = vpop.f32.mrb[0].mxu0
        %1332 = vmatprep.mubr.f32.mxu0 0.0
        %1333 = vmatmul.mubr.f32.gmra.mrb[0].mxu0 %v1147
        %v1334 = vpop.f32.mrb[0].mxu0
        %v1335 = vadd.f32 %v1105, %v1334
        %v1336 = vpop.f32.mrb[0].mxu0
        %1337 = vmatprep.mubr.f32.mxu0 0.0
        %1338 = vmatmul.mubr.f32.gmra.mrb[0].mxu0 %v1150
        %v1339 = vpop.f32.mrb[0].mxu0
        %v1340 = vadd.f32 %v1105, %v1339
        %v1341 = vpop.f32.mrb[0].mxu0
        %1342 = vmatprep.mubr.f32.mxu0 0.0
        %1343 = vmatmul.mubr.f32.gmra.mrb[0].mxu0 %v1153
        %v1344 = vpop.f32.mrb[0].mxu0
        %v1345 = vadd.f32 %v1105, %v1344
        %v1346 = vpop.f32.mrb[0].mxu0
        %1347 = vdwg.mxu0
        %1348 = vmax.xlane.f32.xlu0 %v1270
        %v1349 = vpop.xlane.xlu0 %1348
        %1350 = vmax.xlane.f32.xlu0 %v1275
        %v1351 = vpop.xlane.xlu0 %1350
        %1352 = vmax.xlane.f32.xlu0 %v1280
        %v1353 = vpop.xlane.xlu0 %1352
        %1354 = vmax.xlane.f32.xlu0 %v1285
        %v1355 = vpop.xlane.xlu0 %1354
        %1356 = vmax.xlane.f32.xlu0 %v1290
        %v1357 = vpop.xlane.xlu0 %1356
        %1358 = vmax.xlane.f32.xlu0 %v1295
        %v1359 = vpop.xlane.xlu0 %1358
        %1360 = vmax.xlane.f32.xlu0 %v1300
        %v1361 = vpop.xlane.xlu0 %1360
        %1362 = vmax.xlane.f32.xlu0 %v1305
        %v1363 = vpop.xlane.xlu0 %1362
        %1364 = vmax.xlane.f32.xlu0 %v1310
        %v1365 = vpop.xlane.xlu0 %1364
        %1366 = vmax.xlane.f32.xlu0 %v1315
        %v1367 = vpop.xlane.xlu0 %1366
        %1368 = vmax.xlane.f32.xlu0 %v1320
        %v1369 = vpop.xlane.xlu0 %1368
        %1370 = vmax.xlane.f32.xlu0 %v1325
        %v1371 = vpop.xlane.xlu0 %1370
        %1372 = vmax.xlane.f32.xlu0 %v1330
        %v1373 = vpop.xlane.xlu0 %1372
        %1374 = vmax.xlane.f32.xlu0 %v1335
        %v1375 = vpop.xlane.xlu0 %1374
        %1376 = vmax.xlane.f32.xlu0 %v1340
        %v1377 = vpop.xlane.xlu0 %1376
        %1378 = vmax.xlane.f32.xlu0 %v1345
        %v1379 = vpop.xlane.xlu0 %1378
        %v1380 = vsub.f32 %v1270, %v1349
        %v1381 = vsub.f32 %v1275, %v1351
        %v1382 = vsub.f32 %v1280, %v1353
        %v1383 = vsub.f32 %v1285, %v1355
        %v1384 = vsub.f32 %v1290, %v1357
        %v1385 = vsub.f32 %v1295, %v1359
        %v1386 = vsub.f32 %v1300, %v1361
        %v1387 = vsub.f32 %v1305, %v1363
        %v1388 = vsub.f32 %v1310, %v1365
        %v1389 = vsub.f32 %v1315, %v1367
        %v1390 = vsub.f32 %v1320, %v1369
        %v1391 = vsub.f32 %v1325, %v1371
        %v1392 = vsub.f32 %v1330, %v1373
        %v1393 = vsub.f32 %v1335, %v1375
        %v1394 = vsub.f32 %v1340, %v1377
        %v1395 = vsub.f32 %v1345, %v1379
        %v1396 = vmul.f32 %v1380, 1.442695
        %v1397 = vpow.pop %v1396
        %v1398 = vmul.f32 %v1381, 1.442695
        %v1399 = vpow.pop %v1398
        %v1400 = vmul.f32 %v1382, 1.442695
        %v1401 = vpow.pop %v1400
        %v1402 = vmul.f32 %v1383, 1.442695
        %v1403 = vpow.pop %v1402
        %v1404 = vmul.f32 %v1384, 1.442695
        %v1405 = vpow.pop %v1404
        %v1406 = vmul.f32 %v1385, 1.442695
        %v1407 = vpow.pop %v1406
        %v1408 = vmul.f32 %v1386, 1.442695
        %v1409 = vpow.pop %v1408
        %v1410 = vmul.f32 %v1387, 1.442695
        %v1411 = vpow.pop %v1410
        %v1412 = vmul.f32 %v1388, 1.442695
        %v1413 = vpow.pop %v1412
        %v1414 = vmul.f32 %v1389, 1.442695
        %v1415 = vpow.pop %v1414
        %v1416 = vmul.f32 %v1390, 1.442695
        %v1417 = vpow.pop %v1416
        %v1418 = vmul.f32 %v1391, 1.442695
        %v1419 = vpow.pop %v1418
        %v1420 = vmul.f32 %v1392, 1.442695
        %v1421 = vpow.pop %v1420
        %v1422 = vmul.f32 %v1393, 1.442695
        %v1423 = vpow.pop %v1422
        %v1424 = vmul.f32 %v1394, 1.442695
        %v1425 = vpow.pop %v1424
        %v1426 = vmul.f32 %v1395, 1.442695
        %v1427 = vpow.pop %v1426
        %1428 = vadd.xlane.f32.xlu0 %v1397
        %v1429 = vpop.xlane.xlu0 %1428
        %1430 = vadd.xlane.f32.xlu0 %v1399
        %v1431 = vpop.xlane.xlu0 %1430
        %1432 = vadd.xlane.f32.xlu0 %v1401
        %v1433 = vpop.xlane.xlu0 %1432
        %1434 = vadd.xlane.f32.xlu0 %v1403
        %v1435 = vpop.xlane.xlu0 %1434
        %1436 = vadd.xlane.f32.xlu0 %v1405
        %v1437 = vpop.xlane.xlu0 %1436
        %1438 = vadd.xlane.f32.xlu0 %v1407
        %v1439 = vpop.xlane.xlu0 %1438
        %1440 = vadd.xlane.f32.xlu0 %v1409
        %v1441 = vpop.xlane.xlu0 %1440
        %1442 = vadd.xlane.f32.xlu0 %v1411
        %v1443 = vpop.xlane.xlu0 %1442
        %1444 = vadd.xlane.f32.xlu0 %v1413
        %v1445 = vpop.xlane.xlu0 %1444
        %1446 = vadd.xlane.f32.xlu0 %v1415
        %v1447 = vpop.xlane.xlu0 %1446
        %1448 = vadd.xlane.f32.xlu0 %v1417
        %v1449 = vpop.xlane.xlu0 %1448
        %1450 = vadd.xlane.f32.xlu0 %v1419
        %v1451 = vpop.xlane.xlu0 %1450
        %1452 = vadd.xlane.f32.xlu0 %v1421
        %v1453 = vpop.xlane.xlu0 %1452
        %1454 = vadd.xlane.f32.xlu0 %v1423
        %v1455 = vpop.xlane.xlu0 %1454
        %1456 = vadd.xlane.f32.xlu0 %v1425
        %v1457 = vpop.xlane.xlu0 %1456
        %1458 = vadd.xlane.f32.xlu0 %v1427
        %v1459 = vpop.xlane.xlu0 %1458
        %v1460 = vrcp.pop %v1429
        %v1461 = vrcp.pop %v1431
        %v1462 = vrcp.pop %v1433
        %v1463 = vrcp.pop %v1435
        %v1464 = vrcp.pop %v1437
        %v1465 = vrcp.pop %v1439
        %v1466 = vrcp.pop %v1441
        %v1467 = vrcp.pop %v1443
        %v1468 = vrcp.pop %v1445
        %v1469 = vrcp.pop %v1447
        %v1470 = vrcp.pop %v1449
        %v1471 = vrcp.pop %v1451
        %v1472 = vrcp.pop %v1453
        %v1473 = vrcp.pop %v1455
        %v1474 = vrcp.pop %v1457
        %v1475 = vrcp.pop %v1459
        %v1476 = vmul.f32 %v1397, %v1460
        %v1477 = vmul.f32 %v1399, %v1461
        %v1478 = vmul.f32 %v1401, %v1462
        %v1479 = vmul.f32 %v1403, %v1463
        %v1480 = vmul.f32 %v1405, %v1464
        %v1481 = vmul.f32 %v1407, %v1465
        %v1482 = vmul.f32 %v1409, %v1466
        %v1483 = vmul.f32 %v1411, %v1467
        %v1484 = vmul.f32 %v1413, %v1468
        %v1485 = vmul.f32 %v1415, %v1469
        %v1486 = vmul.f32 %v1417, %v1470
        %v1487 = vmul.f32 %v1419, %v1471
        %v1488 = vmul.f32 %v1421, %v1472
        %v1489 = vmul.f32 %v1423, %v1473
        %v1490 = vmul.f32 %v1425, %v1474
        %v1491 = vmul.f32 %v1427, %v1475
        %1492 = vmatprep.subr.mxu0 0.0
        %1493 = vmatpush1.msra.mxu0 %v1008
        %1494 = vmatprep.subr.mxu0 0.0
        %1495 = vmatpush1.msra.mxu0 %v1013
        %1496 = vmatprep.subr.mxu0 0.0
        %1497 = vmatpush1.msra.mxu0 %v1018
        %1498 = vmatprep.subr.mxu0 0.0
        %1499 = vmatpush1.msra.mxu0 %v1023
        %1500 = vmatprep.subr.mxu0 0.0
        %1501 = vmatpush1.msra.mxu0 %v1028
        %1502 = vmatprep.subr.mxu0 0.0
        %1503 = vmatpush1.msra.mxu0 %v1033
        %1504 = vmatprep.subr.mxu0 0.0
        %1505 = vmatpush1.msra.mxu0 %v1038
        %1506 = vmatprep.subr.mxu0 0.0
        %1507 = vmatpush1.msra.mxu0 %v1043
        %1508 = vmatprep.subr.mxu0 0.0
        %1509 = vmatpush1.msra.mxu0 %v1048
        %1510 = vmatprep.subr.mxu0 0.0
        %1511 = vmatpush1.msra.mxu0 %v1053
        %1512 = vmatprep.subr.mxu0 0.0
        %1513 = vmatpush1.msra.mxu0 %v1058
        %1514 = vmatprep.subr.mxu0 0.0
        %1515 = vmatpush1.msra.mxu0 %v1063
        %1516 = vmatprep.subr.mxu0 0.0
        %1517 = vmatpush1.msra.mxu0 %v1068
        %1518 = vmatprep.subr.mxu0 0.0
        %1519 = vmatpush1.msra.mxu0 %v1073
        %1520 = vmatprep.subr.mxu0 0.0
        %1521 = vmatpush1.msra.mxu0 %v1078
        %1522 = vmatprep.subr.mxu0 0.0
        %1523 = vmatpush1.msra.mxu0 %v1083
        %1524 = vmatprep.subr.mxu0 0.0
        %1525 = vmatpush1.msra.mxu0 0.0
        %1526 = vmatprep.subr.mxu0 0.0
        %1527 = vmatpush1.msra.mxu0 0.0
        %1528 = vmatprep.subr.mxu0 0.0
        %1529 = vmatpush1.msra.mxu0 0.0
        %1530 = vmatprep.subr.mxu0 0.0
        %1531 = vmatpush1.msra.mxu0 0.0
        %1532 = vmatprep.subr.mxu0 0.0
        %1533 = vmatpush1.msra.mxu0 0.0
        %1534 = vmatprep.subr.mxu0 0.0
        %1535 = vmatpush1.msra.mxu0 0.0
        %1536 = vmatprep.subr.mxu0 0.0
        %1537 = vmatpush1.msra.mxu0 0.0
        %1538 = vmatprep.subr.mxu0 0.0
        %1539 = vmatpush1.msra.mxu0 0.0
        %1540 = vmatprep.subr.mxu0 0.0
        %1541 = vmatpush1.msra.mxu0 0.0
        %1542 = vmatprep.subr.mxu0 0.0
        %1543 = vmatpush1.msra.mxu0 0.0
        %1544 = vmatprep.subr.mxu0 0.0
        %1545 = vmatpush1.msra.mxu0 0.0
        %1546 = vmatprep.subr.mxu0 0.0
        %1547 = vmatpush1.msra.mxu0 0.0
        %1548 = vmatprep.subr.mxu0 0.0
        %1549 = vmatpush1.msra.mxu0 0.0
        %1550 = vmatprep.subr.mxu0 0.0
        %1551 = vmatpush1.msra.mxu0 0.0
        %1552 = vmatprep.subr.mxu0 0.0
        %1553 = vmatpush1.msra.mxu0 0.0
        %1554 = vmatprep.subr.mxu0 0.0
        %1555 = vmatpush1.msra.mxu0 0.0
        %1556 = vmatprep.mubr.f32.mxu0 0.0
        %1557 = vmatmul.mubr.f32.gmra.mrb[0].mxu0 %v1476
        %v1558 = vpop.f32.mrb[0].mxu0
        %v1559 = vadd.f32 0.0, %v1558
        %v1560 = vpop.f32.mrb[0].mxu0
        %1561 = vmatprep.mubr.f32.mxu0 0.0
        %1562 = vmatmul.mubr.f32.gmra.mrb[0].mxu0 %v1477
        %v1563 = vpop.f32.mrb[0].mxu0
        %v1564 = vadd.f32 0.0, %v1563
        %v1565 = vpop.f32.mrb[0].mxu0
        %1566 = vmatprep.mubr.f32.mxu0 0.0
        %1567 = vmatmul.mubr.f32.gmra.mrb[0].mxu0 %v1478
        %v1568 = vpop.f32.mrb[0].mxu0
        %v1569 = vadd.f32 0.0, %v1568
        %v1570 = vpop.f32.mrb[0].mxu0
        %1571 = vmatprep.mubr.f32.mxu0 0.0
        %1572 = vmatmul.mubr.f32.gmra.mrb[0].mxu0 %v1479
        %v1573 = vpop.f32.mrb[0].mxu0
        %v1574 = vadd.f32 0.0, %v1573
        %v1575 = vpop.f32.mrb[0].mxu0
        %1576 = vmatprep.mubr.f32.mxu0 0.0
        %1577 = vmatmul.mubr.f32.gmra.mrb[0].mxu0 %v1480
        %v1578 = vpop.f32.mrb[0].mxu0
        %v1579 = vadd.f32 0.0, %v1578
        %v1580 = vpop.f32.mrb[0].mxu0
        %1581 = vmatprep.mubr.f32.mxu0 0.0
        %1582 = vmatmul.mubr.f32.gmra.mrb[0].mxu0 %v1481
        %v1583 = vpop.f32.mrb[0].mxu0
        %v1584 = vadd.f32 0.0, %v1583
        %v1585 = vpop.f32.mrb[0].mxu0
        %1586 = vmatprep.mubr.f32.mxu0 0.0
        %1587 = vmatmul.mubr.f32.gmra.mrb[0].mxu0 %v1482
        %v1588 = vpop.f32.mrb[0].mxu0
        %v1589 = vadd.f32 0.0, %v1588
        %v1590 = vpop.f32.mrb[0].mxu0
        %1591 = vmatprep.mubr.f32.mxu0 0.0
        %1592 = vmatmul.mubr.f32.gmra.mrb[0].mxu0 %v1483
        %v1593 = vpop.f32.mrb[0].mxu0
        %v1594 = vadd.f32 0.0, %v1593
        %v1595 = vpop.f32.mrb[0].mxu0
        %1596 = vmatprep.mubr.f32.mxu0 0.0
        %1597 = vmatmul.mubr.f32.gmra.mrb[0].mxu0 %v1484
        %v1598 = vpop.f32.mrb[0].mxu0
        %v1599 = vadd.f32 0.0, %v1598
        %v1600 = vpop.f32.mrb[0].mxu0
        %1601 = vmatprep.mubr.f32.mxu0 0.0
        %1602 = vmatmul.mubr.f32.gmra.mrb[0].mxu0 %v1485
        %v1603 = vpop.f32.mrb[0].mxu0
        %v1604 = vadd.f32 0.0, %v1603
        %v1605 = vpop.f32.mrb[0].mxu0
        %1606 = vmatprep.mubr.f32.mxu0 0.0
        %1607 = vmatmul.mubr.f32.gmra.mrb[0].mxu0 %v1486
        %v1608 = vpop.f32.mrb[0].mxu0
        %v1609 = vadd.f32 0.0, %v1608
        %v1610 = vpop.f32.mrb[0].mxu0
        %1611 = vmatprep.mubr.f32.mxu0 0.0
        %1612 = vmatmul.mubr.f32.gmra.mrb[0].mxu0 %v1487
        %v1613 = vpop.f32.mrb[0].mxu0
        %v1614 = vadd.f32 0.0, %v1613
        %v1615 = vpop.f32.mrb[0].mxu0
        %1616 = vmatprep.mubr.f32.mxu0 0.0
        %1617 = vmatmul.mubr.f32.gmra.mrb[0].mxu0 %v1488
        %v1618 = vpop.f32.mrb[0].mxu0
        %v1619 = vadd.f32 0.0, %v1618
        %v1620 = vpop.f32.mrb[0].mxu0
        %1621 = vmatprep.mubr.f32.mxu0 0.0
        %1622 = vmatmul.mubr.f32.gmra.mrb[0].mxu0 %v1489
        %v1623 = vpop.f32.mrb[0].mxu0
        %v1624 = vadd.f32 0.0, %v1623
        %v1625 = vpop.f32.mrb[0].mxu0
        %1626 = vmatprep.mubr.f32.mxu0 0.0
        %1627 = vmatmul.mubr.f32.gmra.mrb[0].mxu0 %v1490
        %v1628 = vpop.f32.mrb[0].mxu0
        %v1629 = vadd.f32 0.0, %v1628
        %v1630 = vpop.f32.mrb[0].mxu0
        %1631 = vmatprep.mubr.f32.mxu0 0.0
        %1632 = vmatmul.mubr.f32.gmra.mrb[0].mxu0 %v1491
        %v1633 = vpop.f32.mrb[0].mxu0
        %v1634 = vadd.f32 0.0, %v1633
        %v1635 = vpop.f32.mrb[0].mxu0
        %1636 = vdwg.mxu0
        %1637 = vst.msk [vmem:[#allocation2] sm:$0xff] %vm1106, %v1559
        %1638 = vst.msk [vmem:[#allocation2 + $0x8] sm:$0xff] %vm1106, %v1564
        %1639 = vst.msk [vmem:[#allocation2 + $0x10] sm:$0xff] %vm1106, %v1569
        %1640 = vst.msk [vmem:[#allocation2 + $0x18] sm:$0xff] %vm1106, %v1574
        %1641 = vst.msk [vmem:[#allocation2 + $0x20] sm:$0xff] %vm1106, %v1579
        %1642 = vst.msk [vmem:[#allocation2 + $0x28] sm:$0xff] %vm1106, %v1584
        %1643 = vst.msk [vmem:[#allocation2 + $0x30] sm:$0xff] %vm1106, %v1589
        %1644 = vst.msk [vmem:[#allocation2 + $0x38] sm:$0xff] %vm1106, %v1594
        %1645 = vst.msk [vmem:[#allocation2 + $0x40] sm:$0xff] %vm1106, %v1599
        %1646 = vst.msk [vmem:[#allocation2 + $0x48] sm:$0xff] %vm1106, %v1604
        %1647 = vst.msk [vmem:[#allocation2 + $0x50] sm:$0xff] %vm1106, %v1609
        %1648 = vst.msk [vmem:[#allocation2 + $0x58] sm:$0xff] %vm1106, %v1614
        %1649 = vst.msk [vmem:[#allocation2 + $0x60] sm:$0xff] %vm1106, %v1619
        %1650 = vst.msk [vmem:[#allocation2 + $0x68] sm:$0xff] %vm1106, %v1624
        %1651 = vst.msk [vmem:[#allocation2 + $0x70] sm:$0xff] %vm1106, %v1629
        %1652 = vst.msk [vmem:[#allocation2 + $0x78] sm:$0xff] %vm1106, %v1634
        %1653 = vrot.lane.b32.xlu0 %v1086, 120
        %v1654 = vpop.permute.xlu0 %1653
        %1655 = vrot.lane.b32.xlu0 %v1087, 120
        %v1656 = vpop.permute.xlu0 %1655
        %1657 = vrot.lane.b32.xlu0 %v1088, 120
        %v1658 = vpop.permute.xlu0 %1657
        %1659 = vrot.lane.b32.xlu0 %v1089, 120
        %v1660 = vpop.permute.xlu0 %1659
        %1661 = vrot.lane.b32.xlu0 %v1090, 120
        %v1662 = vpop.permute.xlu0 %1661
        %1663 = vrot.lane.b32.xlu0 %v1091, 120
        %v1664 = vpop.permute.xlu0 %1663
        %1665 = vrot.lane.b32.xlu0 %v1092, 120
        %v1666 = vpop.permute.xlu0 %1665
        %1667 = vrot.lane.b32.xlu0 %v1093, 120
        %v1668 = vpop.permute.xlu0 %1667
        %1669 = vrot.lane.b32.xlu0 %v1094, 120
        %v1670 = vpop.permute.xlu0 %1669
        %1671 = vrot.lane.b32.xlu0 %v1095, 120
        %v1672 = vpop.permute.xlu0 %1671
        %1673 = vrot.lane.b32.xlu0 %v1096, 120
        %v1674 = vpop.permute.xlu0 %1673
        %1675 = vrot.lane.b32.xlu0 %v1097, 120
        %v1676 = vpop.permute.xlu0 %1675
        %1677 = vrot.lane.b32.xlu0 %v1098, 120
        %v1678 = vpop.permute.xlu0 %1677
        %1679 = vrot.lane.b32.xlu0 %v1099, 120
        %v1680 = vpop.permute.xlu0 %1679
        %1681 = vrot.lane.b32.xlu0 %v1100, 120
        %v1682 = vpop.permute.xlu0 %1681
        %1683 = vrot.lane.b32.xlu0 %v1101, 120
        %v1684 = vpop.permute.xlu0 %1683
        %1685 = vrot.lane.b32.xlu0 %v788, 120
        %v1686 = vpop.permute.xlu0 %1685
        %1687 = vrot.lane.b32.xlu0 %v793, 120
        %v1688 = vpop.permute.xlu0 %1687
        %1689 = vrot.lane.b32.xlu0 %v798, 120
        %v1690 = vpop.permute.xlu0 %1689
        %1691 = vrot.lane.b32.xlu0 %v803, 120
        %v1692 = vpop.permute.xlu0 %1691
        %1693 = vrot.lane.b32.xlu0 %v808, 120
        %v1694 = vpop.permute.xlu0 %1693
        %1695 = vrot.lane.b32.xlu0 %v813, 120
        %v1696 = vpop.permute.xlu0 %1695
        %1697 = vrot.lane.b32.xlu0 %v818, 120
        %v1698 = vpop.permute.xlu0 %1697
        %1699 = vrot.lane.b32.xlu0 %v823, 120
        %v1700 = vpop.permute.xlu0 %1699
        %1701 = vrot.lane.b32.xlu0 %v828, 120
        %v1702 = vpop.permute.xlu0 %1701
        %1703 = vrot.lane.b32.xlu0 %v833, 120
        %v1704 = vpop.permute.xlu0 %1703
        %1705 = vrot.lane.b32.xlu0 %v838, 120
        %v1706 = vpop.permute.xlu0 %1705
        %1707 = vrot.lane.b32.xlu0 %v843, 120
        %v1708 = vpop.permute.xlu0 %1707
        %1709 = vrot.lane.b32.xlu0 %v848, 120
        %v1710 = vpop.permute.xlu0 %1709
        %1711 = vrot.lane.b32.xlu0 %v853, 120
        %v1712 = vpop.permute.xlu0 %1711
        %1713 = vrot.lane.b32.xlu0 %v858, 120
        %v1714 = vpop.permute.xlu0 %1713
        %1715 = vrot.lane.b32.xlu0 %v863, 120
        %v1716 = vpop.permute.xlu0 %1715
        %v1717 = vsel %vm1106, %v1654, 0
        %v1719 = vsel %vm1106, %v1656, 0
        %v1721 = vsel %vm1106, %v1658, 0
        %v1723 = vsel %vm1106, %v1660, 0
        %v1725 = vsel %vm1106, %v1662, 0
        %v1727 = vsel %vm1106, %v1664, 0
        %v1729 = vsel %vm1106, %v1666, 0
        %v1731 = vsel %vm1106, %v1668, 0
        %v1733 = vsel %vm1106, %v1670, 0
        %v1735 = vsel %vm1106, %v1672, 0
        %v1737 = vsel %vm1106, %v1674, 0
        %v1739 = vsel %vm1106, %v1676, 0
        %v1741 = vsel %vm1106, %v1678, 0
        %v1743 = vsel %vm1106, %v1680, 0
        %v1745 = vsel %vm1106, %v1682, 0
        %v1747 = vsel %vm1106, %v1684, 0
        %v1749 = vsel %vm1106, %v1686, 0
        %v1751 = vsel %vm1106, %v1688, 0
        %v1753 = vsel %vm1106, %v1690, 0
        %v1755 = vsel %vm1106, %v1692, 0
        %v1757 = vsel %vm1106, %v1694, 0
        %v1759 = vsel %vm1106, %v1696, 0
        %v1761 = vsel %vm1106, %v1698, 0
        %v1763 = vsel %vm1106, %v1700, 0
        %v1765 = vsel %vm1106, %v1702, 0
        %v1767 = vsel %vm1106, %v1704, 0
        %v1769 = vsel %vm1106, %v1706, 0
        %v1771 = vsel %vm1106, %v1708, 0
        %v1773 = vsel %vm1106, %v1710, 0
        %v1775 = vsel %vm1106, %v1712, 0
        %v1777 = vsel %vm1106, %v1714, 0
        %v1779 = vsel %vm1106, %v1716, 0
        %1781 = vmatprep.subr.mxu0 0.0
        %1782 = vmatpush1.xpose.msra.mxu0 %v1749
        %1783 = vmatprep.subr.mxu0 0.0
        %1784 = vmatpush1.xpose.msra.mxu0 %v1751
        %1785 = vmatprep.subr.mxu0 0.0
        %1786 = vmatpush1.xpose.msra.mxu0 %v1753
        %1787 = vmatprep.subr.mxu0 0.0
        %1788 = vmatpush1.xpose.msra.mxu0 %v1755
        %1789 = vmatprep.subr.mxu0 0.0
        %1790 = vmatpush1.xpose.msra.mxu0 %v1757
        %1791 = vmatprep.subr.mxu0 0.0
        %1792 = vmatpush1.xpose.msra.mxu0 %v1759
        %1793 = vmatprep.subr.mxu0 0.0
        %1794 = vmatpush1.xpose.msra.mxu0 %v1761
        %1795 = vmatprep.subr.mxu0 0.0
        %1796 = vmatpush1.xpose.msra.mxu0 %v1763
        %1797 = vmatprep.subr.mxu0 0.0
        %1798 = vmatpush1.xpose.msra.mxu0 %v1765
        %1799 = vmatprep.subr.mxu0 0.0
        %1800 = vmatpush1.xpose.msra.mxu0 %v1767
        %1801 = vmatprep.subr.mxu0 0.0
        %1802 = vmatpush1.xpose.msra.mxu0 %v1769
        %1803 = vmatprep.subr.mxu0 0.0
        %1804 = vmatpush1.xpose.msra.mxu0 %v1771
        %1805 = vmatprep.subr.mxu0 0.0
        %1806 = vmatpush1.xpose.msra.mxu0 %v1773
        %1807 = vmatprep.subr.mxu0 0.0
        %1808 = vmatpush1.xpose.msra.mxu0 %v1775
        %1809 = vmatprep.subr.mxu0 0.0
        %1810 = vmatpush1.xpose.msra.mxu0 %v1777
        %1811 = vmatprep.subr.mxu0 0.0
        %1812 = vmatpush1.xpose.msra.mxu0 %v1779
        %1813 = vmatprep.subr.mxu0 0.0
        %1814 = vmatpush1.xpose.msra.mxu0 0.0
        %1815 = vmatprep.subr.mxu0 0.0
        %1816 = vmatpush1.xpose.msra.mxu0 0.0
        %1817 = vmatprep.subr.mxu0 0.0
        %1818 = vmatpush1.xpose.msra.mxu0 0.0
        %1819 = vmatprep.subr.mxu0 0.0
        %1820 = vmatpush1.xpose.msra.mxu0 0.0
        %1821 = vmatprep.subr.mxu0 0.0
        %1822 = vmatpush1.xpose.msra.mxu0 0.0
        %1823 = vmatprep.subr.mxu0 0.0
        %1824 = vmatpush1.xpose.msra.mxu0 0.0
        %1825 = vmatprep.subr.mxu0 0.0
        %1826 = vmatpush1.xpose.msra.mxu0 0.0
        %1827 = vmatprep.subr.mxu0 0.0
        %1828 = vmatpush1.xpose.msra.mxu0 0.0
        %1829 = vmatprep.subr.mxu0 0.0
        %1830 = vmatpush1.xpose.msra.mxu0 0.0
        %1831 = vmatprep.subr.mxu0 0.0
        %1832 = vmatpush1.xpose.msra.mxu0 0.0
        %1833 = vmatprep.subr.mxu0 0.0
        %1834 = vmatpush1.xpose.msra.mxu0 0.0
        %1835 = vmatprep.subr.mxu0 0.0
        %1836 = vmatpush1.xpose.msra.mxu0 0.0
        %1837 = vmatprep.subr.mxu0 0.0
        %1838 = vmatpush1.xpose.msra.mxu0 0.0
        %1839 = vmatprep.subr.mxu0 0.0
        %1840 = vmatpush1.xpose.msra.mxu0 0.0
        %1841 = vmatprep.subr.mxu0 0.0
        %1842 = vmatpush1.xpose.msra.mxu0 0.0
        %1843 = vmatprep.subr.mxu0 0.0
        %1844 = vmatpush1.xpose.msra.mxu0 0.0
        %1845 = vmatprep.mubr.f32.mxu0 0.0
        %1846 = vmatmul.mubr.f32.gmra.mrb[0].mxu0 %v1717
        %v1847 = vpop.f32.mrb[0].mxu0
        %v1848 = vadd.f32 %v1105, %v1847
        %v1849 = vpop.f32.mrb[0].mxu0
        %1850 = vmatprep.mubr.f32.mxu0 0.0
        %1851 = vmatmul.mubr.f32.gmra.mrb[0].mxu0 %v1719
        %v1852 = vpop.f32.mrb[0].mxu0
        %v1853 = vadd.f32 %v1105, %v1852
        %v1854 = vpop.f32.mrb[0].mxu0
        %1855 = vmatprep.mubr.f32.mxu0 0.0
        %1856 = vmatmul.mubr.f32.gmra.mrb[0].mxu0 %v1721
        %v1857 = vpop.f32.mrb[0].mxu0
        %v1858 = vadd.f32 %v1105, %v1857
        %v1859 = vpop.f32.mrb[0].mxu0
        %1860 = vmatprep.mubr.f32.mxu0 0.0
        %1861 = vmatmul.mubr.f32.gmra.mrb[0].mxu0 %v1723
        %v1862 = vpop.f32.mrb[0].mxu0
        %v1863 = vadd.f32 %v1105, %v1862
        %v1864 = vpop.f32.mrb[0].mxu0
        %1865 = vmatprep.mubr.f32.mxu0 0.0
        %1866 = vmatmul.mubr.f32.gmra.mrb[0].mxu0 %v1725
        %v1867 = vpop.f32.mrb[0].mxu0
        %v1868 = vadd.f32 %v1105, %v1867
        %v1869 = vpop.f32.mrb[0].mxu0
        %1870 = vmatprep.mubr.f32.mxu0 0.0
        %1871 = vmatmul.mubr.f32.gmra.mrb[0].mxu0 %v1727
        %v1872 = vpop.f32.mrb[0].mxu0
        %v1873 = vadd.f32 %v1105, %v1872
        %v1874 = vpop.f32.mrb[0].mxu0
        %1875 = vmatprep.mubr.f32.mxu0 0.0
        %1876 = vmatmul.mubr.f32.gmra.mrb[0].mxu0 %v1729
        %v1877 = vpop.f32.mrb[0].mxu0
        %v1878 = vadd.f32 %v1105, %v1877
        %v1879 = vpop.f32.mrb[0].mxu0
        %1880 = vmatprep.mubr.f32.mxu0 0.0
        %1881 = vmatmul.mubr.f32.gmra.mrb[0].mxu0 %v1731
        %v1882 = vpop.f32.mrb[0].mxu0
        %v1883 = vadd.f32 %v1105, %v1882
        %v1884 = vpop.f32.mrb[0].mxu0
        %1885 = vmatprep.mubr.f32.mxu0 0.0
        %1886 = vmatmul.mubr.f32.gmra.mrb[0].mxu0 %v1733
        %v1887 = vpop.f32.mrb[0].mxu0
        %v1888 = vadd.f32 %v1105, %v1887
        %v1889 = vpop.f32.mrb[0].mxu0
        %1890 = vmatprep.mubr.f32.mxu0 0.0
        %1891 = vmatmul.mubr.f32.gmra.mrb[0].mxu0 %v1735
        %v1892 = vpop.f32.mrb[0].mxu0
        %v1893 = vadd.f32 %v1105, %v1892
        %v1894 = vpop.f32.mrb[0].mxu0
        %1895 = vmatprep.mubr.f32.mxu0 0.0
        %1896 = vmatmul.mubr.f32.gmra.mrb[0].mxu0 %v1737
        %v1897 = vpop.f32.mrb[0].mxu0
        %v1898 = vadd.f32 %v1105, %v1897
        %v1899 = vpop.f32.mrb[0].mxu0
        %1900 = vmatprep.mubr.f32.mxu0 0.0
        %1901 = vmatmul.mubr.f32.gmra.mrb[0].mxu0 %v1739
        %v1902 = vpop.f32.mrb[0].mxu0
        %v1903 = vadd.f32 %v1105, %v1902
        %v1904 = vpop.f32.mrb[0].mxu0
        %1905 = vmatprep.mubr.f32.mxu0 0.0
        %1906 = vmatmul.mubr.f32.gmra.mrb[0].mxu0 %v1741
        %v1907 = vpop.f32.mrb[0].mxu0
        %v1908 = vadd.f32 %v1105, %v1907
        %v1909 = vpop.f32.mrb[0].mxu0
        %1910 = vmatprep.mubr.f32.mxu0 0.0
        %1911 = vmatmul.mubr.f32.gmra.mrb[0].mxu0 %v1743
        %v1912 = vpop.f32.mrb[0].mxu0
        %v1913 = vadd.f32 %v1105, %v1912
        %v1914 = vpop.f32.mrb[0].mxu0
        %1915 = vmatprep.mubr.f32.mxu0 0.0
        %1916 = vmatmul.mubr.f32.gmra.mrb[0].mxu0 %v1745
        %v1917 = vpop.f32.mrb[0].mxu0
        %v1918 = vadd.f32 %v1105, %v1917
        %v1919 = vpop.f32.mrb[0].mxu0
        %1920 = vmatprep.mubr.f32.mxu0 0.0
        %1921 = vmatmul.mubr.f32.gmra.mrb[0].mxu0 %v1747
        %v1922 = vpop.f32.mrb[0].mxu0
        %v1923 = vadd.f32 %v1105, %v1922
        %v1924 = vpop.f32.mrb[0].mxu0
        %1925 = vdwg.mxu0
        %1926 = vmax.xlane.f32.xlu0 %v1848
        %v1927 = vpop.xlane.xlu0 %1926
        %1928 = vmax.xlane.f32.xlu0 %v1853
        %v1929 = vpop.xlane.xlu0 %1928
        %1930 = vmax.xlane.f32.xlu0 %v1858
        %v1931 = vpop.xlane.xlu0 %1930
        %1932 = vmax.xlane.f32.xlu0 %v1863
        %v1933 = vpop.xlane.xlu0 %1932
        %1934 = vmax.xlane.f32.xlu0 %v1868
        %v1935 = vpop.xlane.xlu0 %1934
        %1936 = vmax.xlane.f32.xlu0 %v1873
        %v1937 = vpop.xlane.xlu0 %1936
        %1938 = vmax.xlane.f32.xlu0 %v1878
        %v1939 = vpop.xlane.xlu0 %1938
        %1940 = vmax.xlane.f32.xlu0 %v1883
        %v1941 = vpop.xlane.xlu0 %1940
        %1942 = vmax.xlane.f32.xlu0 %v1888
        %v1943 = vpop.xlane.xlu0 %1942
        %1944 = vmax.xlane.f32.xlu0 %v1893
        %v1945 = vpop.xlane.xlu0 %1944
        %1946 = vmax.xlane.f32.xlu0 %v1898
        %v1947 = vpop.xlane.xlu0 %1946
        %1948 = vmax.xlane.f32.xlu0 %v1903
        %v1949 = vpop.xlane.xlu0 %1948
        %1950 = vmax.xlane.f32.xlu0 %v1908
        %v1951 = vpop.xlane.xlu0 %1950
        %1952 = vmax.xlane.f32.xlu0 %v1913
        %v1953 = vpop.xlane.xlu0 %1952
        %1954 = vmax.xlane.f32.xlu0 %v1918
        %v1955 = vpop.xlane.xlu0 %1954
        %1956 = vmax.xlane.f32.xlu0 %v1923
        %v1957 = vpop.xlane.xlu0 %1956
        %v1958 = vsub.f32 %v1848, %v1927
        %v1959 = vsub.f32 %v1853, %v1929
        %v1960 = vsub.f32 %v1858, %v1931
        %v1961 = vsub.f32 %v1863, %v1933
        %v1962 = vsub.f32 %v1868, %v1935
        %v1963 = vsub.f32 %v1873, %v1937
        %v1964 = vsub.f32 %v1878, %v1939
        %v1965 = vsub.f32 %v1883, %v1941
        %v1966 = vsub.f32 %v1888, %v1943
        %v1967 = vsub.f32 %v1893, %v1945
        %v1968 = vsub.f32 %v1898, %v1947
        %v1969 = vsub.f32 %v1903, %v1949
        %v1970 = vsub.f32 %v1908, %v1951
        %v1971 = vsub.f32 %v1913, %v1953
        %v1972 = vsub.f32 %v1918, %v1955
        %v1973 = vsub.f32 %v1923, %v1957
        %v1974 = vmul.f32 %v1958, 1.442695
        %v1975 = vpow.pop %v1974
        %v1976 = vmul.f32 %v1959, 1.442695
        %v1977 = vpow.pop %v1976
        %v1978 = vmul.f32 %v1960, 1.442695
        %v1979 = vpow.pop %v1978
        %v1980 = vmul.f32 %v1961, 1.442695
        %v1981 = vpow.pop %v1980
        %v1982 = vmul.f32 %v1962, 1.442695
        %v1983 = vpow.pop %v1982
        %v1984 = vmul.f32 %v1963, 1.442695
        %v1985 = vpow.pop %v1984
        %v1986 = vmul.f32 %v1964, 1.442695
        %v1987 = vpow.pop %v1986
        %v1988 = vmul.f32 %v1965, 1.442695
        %v1989 = vpow.pop %v1988
        %v1990 = vmul.f32 %v1966, 1.442695
        %v1991 = vpow.pop %v1990
        %v1992 = vmul.f32 %v1967, 1.442695
        %v1993 = vpow.pop %v1992
        %v1994 = vmul.f32 %v1968, 1.442695
        %v1995 = vpow.pop %v1994
        %v1996 = vmul.f32 %v1969, 1.442695
        %v1997 = vpow.pop %v1996
        %v1998 = vmul.f32 %v1970, 1.442695
        %v1999 = vpow.pop %v1998
        %v2000 = vmul.f32 %v1971, 1.442695
        %v2001 = vpow.pop %v2000
        %v2002 = vmul.f32 %v1972, 1.442695
        %v2003 = vpow.pop %v2002
        %v2004 = vmul.f32 %v1973, 1.442695
        %v2005 = vpow.pop %v2004
        %2006 = vadd.xlane.f32.xlu0 %v1975
        %v2007 = vpop.xlane.xlu0 %2006
        %2008 = vadd.xlane.f32.xlu0 %v1977
        %v2009 = vpop.xlane.xlu0 %2008
        %2010 = vadd.xlane.f32.xlu0 %v1979
        %v2011 = vpop.xlane.xlu0 %2010
        %2012 = vadd.xlane.f32.xlu0 %v1981
        %v2013 = vpop.xlane.xlu0 %2012
        %2014 = vadd.xlane.f32.xlu0 %v1983
        %v2015 = vpop.xlane.xlu0 %2014
        %2016 = vadd.xlane.f32.xlu0 %v1985
        %v2017 = vpop.xlane.xlu0 %2016
        %2018 = vadd.xlane.f32.xlu0 %v1987
        %v2019 = vpop.xlane.xlu0 %2018
        %2020 = vadd.xlane.f32.xlu0 %v1989
        %v2021 = vpop.xlane.xlu0 %2020
        %2022 = vadd.xlane.f32.xlu0 %v1991
        %v2023 = vpop.xlane.xlu0 %2022
        %2024 = vadd.xlane.f32.xlu0 %v1993
        %v2025 = vpop.xlane.xlu0 %2024
        %2026 = vadd.xlane.f32.xlu0 %v1995
        %v2027 = vpop.xlane.xlu0 %2026
        %2028 = vadd.xlane.f32.xlu0 %v1997
        %v2029 = vpop.xlane.xlu0 %2028
        %2030 = vadd.xlane.f32.xlu0 %v1999
        %v2031 = vpop.xlane.xlu0 %2030
        %2032 = vadd.xlane.f32.xlu0 %v2001
        %v2033 = vpop.xlane.xlu0 %2032
        %2034 = vadd.xlane.f32.xlu0 %v2003
        %v2035 = vpop.xlane.xlu0 %2034
        %2036 = vadd.xlane.f32.xlu0 %v2005
        %v2037 = vpop.xlane.xlu0 %2036
        %v2038 = vrcp.pop %v2007
        %v2039 = vrcp.pop %v2009
        %v2040 = vrcp.pop %v2011
        %v2041 = vrcp.pop %v2013
        %v2042 = vrcp.pop %v2015
        %v2043 = vrcp.pop %v2017
        %v2044 = vrcp.pop %v2019
        %v2045 = vrcp.pop %v2021
        %v2046 = vrcp.pop %v2023
        %v2047 = vrcp.pop %v2025
        %v2048 = vrcp.pop %v2027
        %v2049 = vrcp.pop %v2029
        %v2050 = vrcp.pop %v2031
        %v2051 = vrcp.pop %v2033
        %v2052 = vrcp.pop %v2035
        %v2053 = vrcp.pop %v2037
        %v2054 = vmul.f32 %v1975, %v2038
        %v2055 = vmul.f32 %v1977, %v2039
        %v2056 = vmul.f32 %v1979, %v2040
        %v2057 = vmul.f32 %v1981, %v2041
        %v2058 = vmul.f32 %v1983, %v2042
        %v2059 = vmul.f32 %v1985, %v2043
        %v2060 = vmul.f32 %v1987, %v2044
        %v2061 = vmul.f32 %v1989, %v2045
        %v2062 = vmul.f32 %v1991, %v2046
        %v2063 = vmul.f32 %v1993, %v2047
        %v2064 = vmul.f32 %v1995, %v2048
        %v2065 = vmul.f32 %v1997, %v2049
        %v2066 = vmul.f32 %v1999, %v2050
        %v2067 = vmul.f32 %v2001, %v2051
        %v2068 = vmul.f32 %v2003, %v2052
        %v2069 = vmul.f32 %v2005, %v2053
        %2086 = vrot.lane.b32.xlu0 %v1008, 120
        %v2087 = vpop.permute.xlu0 %2086
        %2088 = vrot.lane.b32.xlu0 %v1013, 120
        %v2089 = vpop.permute.xlu0 %2088
        %2090 = vrot.lane.b32.xlu0 %v1018, 120
        %v2091 = vpop.permute.xlu0 %2090
        %2092 = vrot.lane.b32.xlu0 %v1023, 120
        %v2093 = vpop.permute.xlu0 %2092
        %2094 = vrot.lane.b32.xlu0 %v1028, 120
        %v2095 = vpop.permute.xlu0 %2094
        %2096 = vrot.lane.b32.xlu0 %v1033, 120
        %v2097 = vpop.permute.xlu0 %2096
        %2098 = vrot.lane.b32.xlu0 %v1038, 120
        %v2099 = vpop.permute.xlu0 %2098
        %2100 = vrot.lane.b32.xlu0 %v1043, 120
        %v2101 = vpop.permute.xlu0 %2100
        %2102 = vrot.lane.b32.xlu0 %v1048, 120
        %v2103 = vpop.permute.xlu0 %2102
        %2104 = vrot.lane.b32.xlu0 %v1053, 120
        %v2105 = vpop.permute.xlu0 %2104
        %2106 = vrot.lane.b32.xlu0 %v1058, 120
        %v2107 = vpop.permute.xlu0 %2106
        %2108 = vrot.lane.b32.xlu0 %v1063, 120
        %v2109 = vpop.permute.xlu0 %2108
        %2110 = vrot.lane.b32.xlu0 %v1068, 120
        %v2111 = vpop.permute.xlu0 %2110
        %2112 = vrot.lane.b32.xlu0 %v1073, 120
        %v2113 = vpop.permute.xlu0 %2112
        %2114 = vrot.lane.b32.xlu0 %v1078, 120
        %v2115 = vpop.permute.xlu0 %2114
        %2116 = vrot.lane.b32.xlu0 %v1083, 120
        %v2117 = vpop.permute.xlu0 %2116
        %2134 = vmatprep.subr.mxu0 0.0
        %2135 = vmatpush1.msra.mxu0 %v2087
        %2136 = vmatprep.subr.mxu0 0.0
        %2137 = vmatpush1.msra.mxu0 %v2089
        %2138 = vmatprep.subr.mxu0 0.0
        %2139 = vmatpush1.msra.mxu0 %v2091
        %2140 = vmatprep.subr.mxu0 0.0
        %2141 = vmatpush1.msra.mxu0 %v2093
        %2142 = vmatprep.subr.mxu0 0.0
        %2143 = vmatpush1.msra.mxu0 %v2095
        %2144 = vmatprep.subr.mxu0 0.0
        %2145 = vmatpush1.msra.mxu0 %v2097
        %2146 = vmatprep.subr.mxu0 0.0
        %2147 = vmatpush1.msra.mxu0 %v2099
        %2148 = vmatprep.subr.mxu0 0.0
        %2149 = vmatpush1.msra.mxu0 %v2101
        %2150 = vmatprep.subr.mxu0 0.0
        %2151 = vmatpush1.msra.mxu0 %v2103
        %2152 = vmatprep.subr.mxu0 0.0
        %2153 = vmatpush1.msra.mxu0 %v2105
        %2154 = vmatprep.subr.mxu0 0.0
        %2155 = vmatpush1.msra.mxu0 %v2107
        %2156 = vmatprep.subr.mxu0 0.0
        %2157 = vmatpush1.msra.mxu0 %v2109
        %2158 = vmatprep.subr.mxu0 0.0
        %2159 = vmatpush1.msra.mxu0 %v2111
        %2160 = vmatprep.subr.mxu0 0.0
        %2161 = vmatpush1.msra.mxu0 %v2113
        %2162 = vmatprep.subr.mxu0 0.0
        %2163 = vmatpush1.msra.mxu0 %v2115
        %2164 = vmatprep.subr.mxu0 0.0
        %2165 = vmatpush1.msra.mxu0 %v2117
        %2166 = vmatprep.subr.mxu0 0.0
        %2167 = vmatpush1.msra.mxu0 0.0
        %2168 = vmatprep.subr.mxu0 0.0
        %2169 = vmatpush1.msra.mxu0 0.0
        %2170 = vmatprep.subr.mxu0 0.0
        %2171 = vmatpush1.msra.mxu0 0.0
        %2172 = vmatprep.subr.mxu0 0.0
        %2173 = vmatpush1.msra.mxu0 0.0
        %2174 = vmatprep.subr.mxu0 0.0
        %2175 = vmatpush1.msra.mxu0 0.0
        %2176 = vmatprep.subr.mxu0 0.0
        %2177 = vmatpush1.msra.mxu0 0.0
        %2178 = vmatprep.subr.mxu0 0.0
        %2179 = vmatpush1.msra.mxu0 0.0
        %2180 = vmatprep.subr.mxu0 0.0
        %2181 = vmatpush1.msra.mxu0 0.0
        %2182 = vmatprep.subr.mxu0 0.0
        %2183 = vmatpush1.msra.mxu0 0.0
        %2184 = vmatprep.subr.mxu0 0.0
        %2185 = vmatpush1.msra.mxu0 0.0
        %2186 = vmatprep.subr.mxu0 0.0
        %2187 = vmatpush1.msra.mxu0 0.0
        %2188 = vmatprep.subr.mxu0 0.0
        %2189 = vmatpush1.msra.mxu0 0.0
        %2190 = vmatprep.subr.mxu0 0.0
        %2191 = vmatpush1.msra.mxu0 0.0
        %2192 = vmatprep.subr.mxu0 0.0
        %2193 = vmatpush1.msra.mxu0 0.0
        %2194 = vmatprep.subr.mxu0 0.0
        %2195 = vmatpush1.msra.mxu0 0.0
        %2196 = vmatprep.subr.mxu0 0.0
        %2197 = vmatpush1.msra.mxu0 0.0
        %2198 = vmatprep.mubr.f32.mxu0 0.0
        %2199 = vmatmul.mubr.f32.gmra.mrb[0].mxu0 %v2054
        %v2200 = vpop.f32.mrb[0].mxu0
        %v2201 = vadd.f32 0.0, %v2200
        %v2202 = vpop.f32.mrb[0].mxu0
        %2203 = vmatprep.mubr.f32.mxu0 0.0
        %2204 = vmatmul.mubr.f32.gmra.mrb[0].mxu0 %v2055
        %v2205 = vpop.f32.mrb[0].mxu0
        %v2206 = vadd.f32 0.0, %v2205
        %v2207 = vpop.f32.mrb[0].mxu0
        %2208 = vmatprep.mubr.f32.mxu0 0.0
        %2209 = vmatmul.mubr.f32.gmra.mrb[0].mxu0 %v2056
        %v2210 = vpop.f32.mrb[0].mxu0
        %v2211 = vadd.f32 0.0, %v2210
        %v2212 = vpop.f32.mrb[0].mxu0
        %2213 = vmatprep.mubr.f32.mxu0 0.0
        %2214 = vmatmul.mubr.f32.gmra.mrb[0].mxu0 %v2057
        %v2215 = vpop.f32.mrb[0].mxu0
        %v2216 = vadd.f32 0.0, %v2215
        %v2217 = vpop.f32.mrb[0].mxu0
        %2218 = vmatprep.mubr.f32.mxu0 0.0
        %2219 = vmatmul.mubr.f32.gmra.mrb[0].mxu0 %v2058
        %v2220 = vpop.f32.mrb[0].mxu0
        %v2221 = vadd.f32 0.0, %v2220
        %v2222 = vpop.f32.mrb[0].mxu0
        %2223 = vmatprep.mubr.f32.mxu0 0.0
        %2224 = vmatmul.mubr.f32.gmra.mrb[0].mxu0 %v2059
        %v2225 = vpop.f32.mrb[0].mxu0
        %v2226 = vadd.f32 0.0, %v2225
        %v2227 = vpop.f32.mrb[0].mxu0
        %2228 = vmatprep.mubr.f32.mxu0 0.0
        %2229 = vmatmul.mubr.f32.gmra.mrb[0].mxu0 %v2060
        %v2230 = vpop.f32.mrb[0].mxu0
        %v2231 = vadd.f32 0.0, %v2230
        %v2232 = vpop.f32.mrb[0].mxu0
        %2233 = vmatprep.mubr.f32.mxu0 0.0
        %2234 = vmatmul.mubr.f32.gmra.mrb[0].mxu0 %v2061
        %v2235 = vpop.f32.mrb[0].mxu0
        %v2236 = vadd.f32 0.0, %v2235
        %v2237 = vpop.f32.mrb[0].mxu0
        %2238 = vmatprep.mubr.f32.mxu0 0.0
        %2239 = vmatmul.mubr.f32.gmra.mrb[0].mxu0 %v2062
        %v2240 = vpop.f32.mrb[0].mxu0
        %v2241 = vadd.f32 0.0, %v2240
        %v2242 = vpop.f32.mrb[0].mxu0
        %2243 = vmatprep.mubr.f32.mxu0 0.0
        %2244 = vmatmul.mubr.f32.gmra.mrb[0].mxu0 %v2063
        %v2245 = vpop.f32.mrb[0].mxu0
        %v2246 = vadd.f32 0.0, %v2245
        %v2247 = vpop.f32.mrb[0].mxu0
        %2248 = vmatprep.mubr.f32.mxu0 0.0
        %2249 = vmatmul.mubr.f32.gmra.mrb[0].mxu0 %v2064
        %v2250 = vpop.f32.mrb[0].mxu0
        %v2251 = vadd.f32 0.0, %v2250
        %v2252 = vpop.f32.mrb[0].mxu0
        %2253 = vmatprep.mubr.f32.mxu0 0.0
        %2254 = vmatmul.mubr.f32.gmra.mrb[0].mxu0 %v2065
        %v2255 = vpop.f32.mrb[0].mxu0
        %v2256 = vadd.f32 0.0, %v2255
        %v2257 = vpop.f32.mrb[0].mxu0
        %2258 = vmatprep.mubr.f32.mxu0 0.0
        %2259 = vmatmul.mubr.f32.gmra.mrb[0].mxu0 %v2066
        %v2260 = vpop.f32.mrb[0].mxu0
        %v2261 = vadd.f32 0.0, %v2260
        %v2262 = vpop.f32.mrb[0].mxu0
        %2263 = vmatprep.mubr.f32.mxu0 0.0
        %2264 = vmatmul.mubr.f32.gmra.mrb[0].mxu0 %v2067
        %v2265 = vpop.f32.mrb[0].mxu0
        %v2266 = vadd.f32 0.0, %v2265
        %v2267 = vpop.f32.mrb[0].mxu0
        %2268 = vmatprep.mubr.f32.mxu0 0.0
        %2269 = vmatmul.mubr.f32.gmra.mrb[0].mxu0 %v2068
        %v2270 = vpop.f32.mrb[0].mxu0
        %v2271 = vadd.f32 0.0, %v2270
        %v2272 = vpop.f32.mrb[0].mxu0
        %2273 = vmatprep.mubr.f32.mxu0 0.0
        %2274 = vmatmul.mubr.f32.gmra.mrb[0].mxu0 %v2069
        %v2275 = vpop.f32.mrb[0].mxu0
        %v2276 = vadd.f32 0.0, %v2275
        %v2277 = vpop.f32.mrb[0].mxu0
        %2278 = vdwg.mxu0
        %2295 = vrot.lane.b32.xlu0 %v2201, 8
        %v2296 = vpop.permute.xlu0 %2295
        %2297 = vrot.lane.b32.xlu0 %v2206, 8
        %v2298 = vpop.permute.xlu0 %2297
        %2299 = vrot.lane.b32.xlu0 %v2211, 8
        %v2300 = vpop.permute.xlu0 %2299
        %2301 = vrot.lane.b32.xlu0 %v2216, 8
        %v2302 = vpop.permute.xlu0 %2301
        %2303 = vrot.lane.b32.xlu0 %v2221, 8
        %v2304 = vpop.permute.xlu0 %2303
        %2305 = vrot.lane.b32.xlu0 %v2226, 8
        %v2306 = vpop.permute.xlu0 %2305
        %2307 = vrot.lane.b32.xlu0 %v2231, 8
        %v2308 = vpop.permute.xlu0 %2307
        %2309 = vrot.lane.b32.xlu0 %v2236, 8
        %v2310 = vpop.permute.xlu0 %2309
        %2311 = vrot.lane.b32.xlu0 %v2241, 8
        %v2312 = vpop.permute.xlu0 %2311
        %2313 = vrot.lane.b32.xlu0 %v2246, 8
        %v2314 = vpop.permute.xlu0 %2313
        %2315 = vrot.lane.b32.xlu0 %v2251, 8
        %v2316 = vpop.permute.xlu0 %2315
        %2317 = vrot.lane.b32.xlu0 %v2256, 8
        %v2318 = vpop.permute.xlu0 %2317
        %2319 = vrot.lane.b32.xlu0 %v2261, 8
        %v2320 = vpop.permute.xlu0 %2319
        %2321 = vrot.lane.b32.xlu0 %v2266, 8
        %v2322 = vpop.permute.xlu0 %2321
        %2323 = vrot.lane.b32.xlu0 %v2271, 8
        %v2324 = vpop.permute.xlu0 %2323
        %2325 = vrot.lane.b32.xlu0 %v2276, 8
        %v2326 = vpop.permute.xlu0 %2325
        %vm2343 = vcmask 130112
        %2344 = vst.msk [vmem:[#allocation2] sm:$0xff] %vm2343, %v2296
        %2345 = vst.msk [vmem:[#allocation2 + $0x8] sm:$0xff] %vm2343, %v2298
        %2346 = vst.msk [vmem:[#allocation2 + $0x10] sm:$0xff] %vm2343, %v2300
        %2347 = vst.msk [vmem:[#allocation2 + $0x18] sm:$0xff] %vm2343, %v2302
        %2348 = vst.msk [vmem:[#allocation2 + $0x20] sm:$0xff] %vm2343, %v2304
        %2349 = vst.msk [vmem:[#allocation2 + $0x28] sm:$0xff] %vm2343, %v2306
        %2350 = vst.msk [vmem:[#allocation2 + $0x30] sm:$0xff] %vm2343, %v2308
        %2351 = vst.msk [vmem:[#allocation2 + $0x38] sm:$0xff] %vm2343, %v2310
        %2352 = vst.msk [vmem:[#allocation2 + $0x40] sm:$0xff] %vm2343, %v2312
        %2353 = vst.msk [vmem:[#allocation2 + $0x48] sm:$0xff] %vm2343, %v2314
        %2354 = vst.msk [vmem:[#allocation2 + $0x50] sm:$0xff] %vm2343, %v2316
        %2355 = vst.msk [vmem:[#allocation2 + $0x58] sm:$0xff] %vm2343, %v2318
        %2356 = vst.msk [vmem:[#allocation2 + $0x60] sm:$0xff] %vm2343, %v2320
        %2357 = vst.msk [vmem:[#allocation2 + $0x68] sm:$0xff] %vm2343, %v2322
        %2358 = vst.msk [vmem:[#allocation2 + $0x70] sm:$0xff] %vm2343, %v2324
        %2359 = vst.msk [vmem:[#allocation2 + $0x78] sm:$0xff] %vm2343, %v2326
        %2360 = vrot.lane.b32.xlu0 %v1086, 112
        %v2361 = vpop.permute.xlu0 %2360
        %2362 = vrot.lane.b32.xlu0 %v1087, 112
        %v2363 = vpop.permute.xlu0 %2362
        %2364 = vrot.lane.b32.xlu0 %v1088, 112
        %v2365 = vpop.permute.xlu0 %2364
        %2366 = vrot.lane.b32.xlu0 %v1089, 112
        %v2367 = vpop.permute.xlu0 %2366
        %2368 = vrot.lane.b32.xlu0 %v1090, 112
        %v2369 = vpop.permute.xlu0 %2368
        %2370 = vrot.lane.b32.xlu0 %v1091, 112
        %v2371 = vpop.permute.xlu0 %2370
        %2372 = vrot.lane.b32.xlu0 %v1092, 112
        %v2373 = vpop.permute.xlu0 %2372
        %2374 = vrot.lane.b32.xlu0 %v1093, 112
        %v2375 = vpop.permute.xlu0 %2374
        %2376 = vrot.lane.b32.xlu0 %v1094, 112
        %v2377 = vpop.permute.xlu0 %2376
        %2378 = vrot.lane.b32.xlu0 %v1095, 112
        %v2379 = vpop.permute.xlu0 %2378
        %2380 = vrot.lane.b32.xlu0 %v1096, 112
        %v2381 = vpop.permute.xlu0 %2380
        %2382 = vrot.lane.b32.xlu0 %v1097, 112
        %v2383 = vpop.permute.xlu0 %2382
        %2384 = vrot.lane.b32.xlu0 %v1098, 112
        %v2385 = vpop.permute.xlu0 %2384
        %2386 = vrot.lane.b32.xlu0 %v1099, 112
        %v2387 = vpop.permute.xlu0 %2386
        %2388 = vrot.lane.b32.xlu0 %v1100, 112
        %v2389 = vpop.permute.xlu0 %2388
        %2390 = vrot.lane.b32.xlu0 %v1101, 112
        %v2391 = vpop.permute.xlu0 %2390
        %2392 = vrot.lane.b32.xlu0 %v788, 112
        %v2393 = vpop.permute.xlu0 %2392
        %2394 = vrot.lane.b32.xlu0 %v793, 112
        %v2395 = vpop.permute.xlu0 %2394
        %2396 = vrot.lane.b32.xlu0 %v798, 112
        %v2397 = vpop.permute.xlu0 %2396
        %2398 = vrot.lane.b32.xlu0 %v803, 112
        %v2399 = vpop.permute.xlu0 %2398
        %2400 = vrot.lane.b32.xlu0 %v808, 112
        %v2401 = vpop.permute.xlu0 %2400
        %2402 = vrot.lane.b32.xlu0 %v813, 112
        %v2403 = vpop.permute.xlu0 %2402
        %2404 = vrot.lane.b32.xlu0 %v818, 112
        %v2405 = vpop.permute.xlu0 %2404
        %2406 = vrot.lane.b32.xlu0 %v823, 112
        %v2407 = vpop.permute.xlu0 %2406
        %2408 = vrot.lane.b32.xlu0 %v828, 112
        %v2409 = vpop.permute.xlu0 %2408
        %2410 = vrot.lane.b32.xlu0 %v833, 112
        %v2411 = vpop.permute.xlu0 %2410
        %2412 = vrot.lane.b32.xlu0 %v838, 112
        %v2413 = vpop.permute.xlu0 %2412
        %2414 = vrot.lane.b32.xlu0 %v843, 112
        %v2415 = vpop.permute.xlu0 %2414
        %2416 = vrot.lane.b32.xlu0 %v848, 112
        %v2417 = vpop.permute.xlu0 %2416
        %2418 = vrot.lane.b32.xlu0 %v853, 112
        %v2419 = vpop.permute.xlu0 %2418
        %2420 = vrot.lane.b32.xlu0 %v858, 112
        %v2421 = vpop.permute.xlu0 %2420
        %2422 = vrot.lane.b32.xlu0 %v863, 112
        %v2423 = vpop.permute.xlu0 %2422
        %v2424 = vsel %vm1106, %v2361, 0
        %v2426 = vsel %vm1106, %v2363, 0
        %v2428 = vsel %vm1106, %v2365, 0
        %v2430 = vsel %vm1106, %v2367, 0
        %v2432 = vsel %vm1106, %v2369, 0
        %v2434 = vsel %vm1106, %v2371, 0
        %v2436 = vsel %vm1106, %v2373, 0
        %v2438 = vsel %vm1106, %v2375, 0
        %v2440 = vsel %vm1106, %v2377, 0
        %v2442 = vsel %vm1106, %v2379, 0
        %v2444 = vsel %vm1106, %v2381, 0
        %v2446 = vsel %vm1106, %v2383, 0
        %v2448 = vsel %vm1106, %v2385, 0
        %v2450 = vsel %vm1106, %v2387, 0
        %v2452 = vsel %vm1106, %v2389, 0
        %v2454 = vsel %vm1106, %v2391, 0
        %v2456 = vsel %vm1106, %v2393, 0
        %v2458 = vsel %vm1106, %v2395, 0
        %v2460 = vsel %vm1106, %v2397, 0
        %v2462 = vsel %vm1106, %v2399, 0
        %v2464 = vsel %vm1106, %v2401, 0
        %v2466 = vsel %vm1106, %v2403, 0
        %v2468 = vsel %vm1106, %v2405, 0
        %v2470 = vsel %vm1106, %v2407, 0
        %v2472 = vsel %vm1106, %v2409, 0
        %v2474 = vsel %vm1106, %v2411, 0
        %v2476 = vsel %vm1106, %v2413, 0
        %v2478 = vsel %vm1106, %v2415, 0
        %v2480 = vsel %vm1106, %v2417, 0
        %v2482 = vsel %vm1106, %v2419, 0
        %v2484 = vsel %vm1106, %v2421, 0
        %v2486 = vsel %vm1106, %v2423, 0
        %2488 = vmatprep.subr.mxu0 0.0
        %2489 = vmatpush1.xpose.msra.mxu0 %v2456
        %2490 = vmatprep.subr.mxu0 0.0
        %2491 = vmatpush1.xpose.msra.mxu0 %v2458
        %2492 = vmatprep.subr.mxu0 0.0
        %2493 = vmatpush1.xpose.msra.mxu0 %v2460
        %2494 = vmatprep.subr.mxu0 0.0
        %2495 = vmatpush1.xpose.msra.mxu0 %v2462
        %2496 = vmatprep.subr.mxu0 0.0
        %2497 = vmatpush1.xpose.msra.mxu0 %v2464
        %2498 = vmatprep.subr.mxu0 0.0
        %2499 = vmatpush1.xpose.msra.mxu0 %v2466
        %2500 = vmatprep.subr.mxu0 0.0
        %2501 = vmatpush1.xpose.msra.mxu0 %v2468
        %2502 = vmatprep.subr.mxu0 0.0
        %2503 = vmatpush1.xpose.msra.mxu0 %v2470
        %2504 = vmatprep.subr.mxu0 0.0
        %2505 = vmatpush1.xpose.msra.mxu0 %v2472
        %2506 = vmatprep.subr.mxu0 0.0
        %2507 = vmatpush1.xpose.msra.mxu0 %v2474
        %2508 = vmatprep.subr.mxu0 0.0
        %2509 = vmatpush1.xpose.msra.mxu0 %v2476
        %2510 = vmatprep.subr.mxu0 0.0
        %2511 = vmatpush1.xpose.msra.mxu0 %v2478
        %2512 = vmatprep.subr.mxu0 0.0
        %2513 = vmatpush1.xpose.msra.mxu0 %v2480
        %2514 = vmatprep.subr.mxu0 0.0
        %2515 = vmatpush1.xpose.msra.mxu0 %v2482
        %2516 = vmatprep.subr.mxu0 0.0
        %2517 = vmatpush1.xpose.msra.mxu0 %v2484
        %2518 = vmatprep.subr.mxu0 0.0
        %2519 = vmatpush1.xpose.msra.mxu0 %v2486
        %2520 = vmatprep.subr.mxu0 0.0
        %2521 = vmatpush1.xpose.msra.mxu0 0.0
        %2522 = vmatprep.subr.mxu0 0.0
        %2523 = vmatpush1.xpose.msra.mxu0 0.0
        %2524 = vmatprep.subr.mxu0 0.0
        %2525 = vmatpush1.xpose.msra.mxu0 0.0
        %2526 = vmatprep.subr.mxu0 0.0
        %2527 = vmatpush1.xpose.msra.mxu0 0.0
        %2528 = vmatprep.subr.mxu0 0.0
        %2529 = vmatpush1.xpose.msra.mxu0 0.0
        %2530 = vmatprep.subr.mxu0 0.0
        %2531 = vmatpush1.xpose.msra.mxu0 0.0
        %2532 = vmatprep.subr.mxu0 0.0
        %2533 = vmatpush1.xpose.msra.mxu0 0.0
        %2534 = vmatprep.subr.mxu0 0.0
        %2535 = vmatpush1.xpose.msra.mxu0 0.0
        %2536 = vmatprep.subr.mxu0 0.0
        %2537 = vmatpush1.xpose.msra.mxu0 0.0
        %2538 = vmatprep.subr.mxu0 0.0
        %2539 = vmatpush1.xpose.msra.mxu0 0.0
        %2540 = vmatprep.subr.mxu0 0.0
        %2541 = vmatpush1.xpose.msra.mxu0 0.0
        %2542 = vmatprep.subr.mxu0 0.0
        %2543 = vmatpush1.xpose.msra.mxu0 0.0
        %2544 = vmatprep.subr.mxu0 0.0
        %2545 = vmatpush1.xpose.msra.mxu0 0.0
        %2546 = vmatprep.subr.mxu0 0.0
        %2547 = vmatpush1.xpose.msra.mxu0 0.0
        %2548 = vmatprep.subr.mxu0 0.0
        %2549 = vmatpush1.xpose.msra.mxu0 0.0
        %2550 = vmatprep.subr.mxu0 0.0
        %2551 = vmatpush1.xpose.msra.mxu0 0.0
        %2552 = vmatprep.mubr.f32.mxu0 0.0
        %2553 = vmatmul.mubr.f32.gmra.mrb[0].mxu0 %v2424
        %v2554 = vpop.f32.mrb[0].mxu0
        %v2555 = vadd.f32 %v1105, %v2554
        %v2556 = vpop.f32.mrb[0].mxu0
        %2557 = vmatprep.mubr.f32.mxu0 0.0
        %2558 = vmatmul.mubr.f32.gmra.mrb[0].mxu0 %v2426
        %v2559 = vpop.f32.mrb[0].mxu0
        %v2560 = vadd.f32 %v1105, %v2559
        %v2561 = vpop.f32.mrb[0].mxu0
        %2562 = vmatprep.mubr.f32.mxu0 0.0
        %2563 = vmatmul.mubr.f32.gmra.mrb[0].mxu0 %v2428
        %v2564 = vpop.f32.mrb[0].mxu0
        %v2565 = vadd.f32 %v1105, %v2564
        %v2566 = vpop.f32.mrb[0].mxu0
        %2567 = vmatprep.mubr.f32.mxu0 0.0
        %2568 = vmatmul.mubr.f32.gmra.mrb[0].mxu0 %v2430
        %v2569 = vpop.f32.mrb[0].mxu0
        %v2570 = vadd.f32 %v1105, %v2569
        %v2571 = vpop.f32.mrb[0].mxu0
        %2572 = vmatprep.mubr.f32.mxu0 0.0
        %2573 = vmatmul.mubr.f32.gmra.mrb[0].mxu0 %v2432
        %v2574 = vpop.f32.mrb[0].mxu0
        %v2575 = vadd.f32 %v1105, %v2574
        %v2576 = vpop.f32.mrb[0].mxu0
        %2577 = vmatprep.mubr.f32.mxu0 0.0
        %2578 = vmatmul.mubr.f32.gmra.mrb[0].mxu0 %v2434
        %v2579 = vpop.f32.mrb[0].mxu0
        %v2580 = vadd.f32 %v1105, %v2579
        %v2581 = vpop.f32.mrb[0].mxu0
        %2582 = vmatprep.mubr.f32.mxu0 0.0
        %2583 = vmatmul.mubr.f32.gmra.mrb[0].mxu0 %v2436
        %v2584 = vpop.f32.mrb[0].mxu0
        %v2585 = vadd.f32 %v1105, %v2584
        %v2586 = vpop.f32.mrb[0].mxu0
        %2587 = vmatprep.mubr.f32.mxu0 0.0
        %2588 = vmatmul.mubr.f32.gmra.mrb[0].mxu0 %v2438
        %v2589 = vpop.f32.mrb[0].mxu0
        %v2590 = vadd.f32 %v1105, %v2589
        %v2591 = vpop.f32.mrb[0].mxu0
        %2592 = vmatprep.mubr.f32.mxu0 0.0
        %2593 = vmatmul.mubr.f32.gmra.mrb[0].mxu0 %v2440
        %v2594 = vpop.f32.mrb[0].mxu0
        %v2595 = vadd.f32 %v1105, %v2594
        %v2596 = vpop.f32.mrb[0].mxu0
        %2597 = vmatprep.mubr.f32.mxu0 0.0
        %2598 = vmatmul.mubr.f32.gmra.mrb[0].mxu0 %v2442
        %v2599 = vpop.f32.mrb[0].mxu0
        %v2600 = vadd.f32 %v1105, %v2599
        %v2601 = vpop.f32.mrb[0].mxu0
        %2602 = vmatprep.mubr.f32.mxu0 0.0
        %2603 = vmatmul.mubr.f32.gmra.mrb[0].mxu0 %v2444
        %v2604 = vpop.f32.mrb[0].mxu0
        %v2605 = vadd.f32 %v1105, %v2604
        %v2606 = vpop.f32.mrb[0].mxu0
        %2607 = vmatprep.mubr.f32.mxu0 0.0
        %2608 = vmatmul.mubr.f32.gmra.mrb[0].mxu0 %v2446
        %v2609 = vpop.f32.mrb[0].mxu0
        %v2610 = vadd.f32 %v1105, %v2609
        %v2611 = vpop.f32.mrb[0].mxu0
        %2612 = vmatprep.mubr.f32.mxu0 0.0
        %2613 = vmatmul.mubr.f32.gmra.mrb[0].mxu0 %v2448
        %v2614 = vpop.f32.mrb[0].mxu0
        %v2615 = vadd.f32 %v1105, %v2614
        %v2616 = vpop.f32.mrb[0].mxu0
        %2617 = vmatprep.mubr.f32.mxu0 0.0
        %2618 = vmatmul.mubr.f32.gmra.mrb[0].mxu0 %v2450
        %v2619 = vpop.f32.mrb[0].mxu0
        %v2620 = vadd.f32 %v1105, %v2619
        %v2621 = vpop.f32.mrb[0].mxu0
        %2622 = vmatprep.mubr.f32.mxu0 0.0
        %2623 = vmatmul.mubr.f32.gmra.mrb[0].mxu0 %v2452
        %v2624 = vpop.f32.mrb[0].mxu0
        %v2625 = vadd.f32 %v1105, %v2624
        %v2626 = vpop.f32.mrb[0].mxu0
        %2627 = vmatprep.mubr.f32.mxu0 0.0
        %2628 = vmatmul.mubr.f32.gmra.mrb[0].mxu0 %v2454
        %v2629 = vpop.f32.mrb[0].mxu0
        %v2630 = vadd.f32 %v1105, %v2629
        %v2631 = vpop.f32.mrb[0].mxu0
        %2632 = vdwg.mxu0
        %2633 = vmax.xlane.f32.xlu0 %v2555
        %v2634 = vpop.xlane.xlu0 %2633
        %2635 = vmax.xlane.f32.xlu0 %v2560
        %v2636 = vpop.xlane.xlu0 %2635
        %2637 = vmax.xlane.f32.xlu0 %v2565
        %v2638 = vpop.xlane.xlu0 %2637
        %2639 = vmax.xlane.f32.xlu0 %v2570
        %v2640 = vpop.xlane.xlu0 %2639
        %2641 = vmax.xlane.f32.xlu0 %v2575
        %v2642 = vpop.xlane.xlu0 %2641
        %2643 = vmax.xlane.f32.xlu0 %v2580
        %v2644 = vpop.xlane.xlu0 %2643
        %2645 = vmax.xlane.f32.xlu0 %v2585
        %v2646 = vpop.xlane.xlu0 %2645
        %2647 = vmax.xlane.f32.xlu0 %v2590
        %v2648 = vpop.xlane.xlu0 %2647
        %2649 = vmax.xlane.f32.xlu0 %v2595
        %v2650 = vpop.xlane.xlu0 %2649
        %2651 = vmax.xlane.f32.xlu0 %v2600
        %v2652 = vpop.xlane.xlu0 %2651
        %2653 = vmax.xlane.f32.xlu0 %v2605
        %v2654 = vpop.xlane.xlu0 %2653
        %2655 = vmax.xlane.f32.xlu0 %v2610
        %v2656 = vpop.xlane.xlu0 %2655
        %2657 = vmax.xlane.f32.xlu0 %v2615
        %v2658 = vpop.xlane.xlu0 %2657
        %2659 = vmax.xlane.f32.xlu0 %v2620
        %v2660 = vpop.xlane.xlu0 %2659
        %2661 = vmax.xlane.f32.xlu0 %v2625
        %v2662 = vpop.xlane.xlu0 %2661
        %2663 = vmax.xlane.f32.xlu0 %v2630
        %v2664 = vpop.xlane.xlu0 %2663
        %v2665 = vsub.f32 %v2555, %v2634
        %v2666 = vsub.f32 %v2560, %v2636
        %v2667 = vsub.f32 %v2565, %v2638
        %v2668 = vsub.f32 %v2570, %v2640
        %v2669 = vsub.f32 %v2575, %v2642
        %v2670 = vsub.f32 %v2580, %v2644
        %v2671 = vsub.f32 %v2585, %v2646
        %v2672 = vsub.f32 %v2590, %v2648
        %v2673 = vsub.f32 %v2595, %v2650
        %v2674 = vsub.f32 %v2600, %v2652
        %v2675 = vsub.f32 %v2605, %v2654
        %v2676 = vsub.f32 %v2610, %v2656
        %v2677 = vsub.f32 %v2615, %v2658
        %v2678 = vsub.f32 %v2620, %v2660
        %v2679 = vsub.f32 %v2625, %v2662
        %v2680 = vsub.f32 %v2630, %v2664
        %v2681 = vmul.f32 %v2665, 1.442695
        %v2682 = vpow.pop %v2681
        %v2683 = vmul.f32 %v2666, 1.442695
        %v2684 = vpow.pop %v2683
        %v2685 = vmul.f32 %v2667, 1.442695
        %v2686 = vpow.pop %v2685
        %v2687 = vmul.f32 %v2668, 1.442695
        %v2688 = vpow.pop %v2687
        %v2689 = vmul.f32 %v2669, 1.442695
        %v2690 = vpow.pop %v2689
        %v2691 = vmul.f32 %v2670, 1.442695
        %v2692 = vpow.pop %v2691
        %v2693 = vmul.f32 %v2671, 1.442695
        %v2694 = vpow.pop %v2693
        %v2695 = vmul.f32 %v2672, 1.442695
        %v2696 = vpow.pop %v2695
        %v2697 = vmul.f32 %v2673, 1.442695
        %v2698 = vpow.pop %v2697
        %v2699 = vmul.f32 %v2674, 1.442695
        %v2700 = vpow.pop %v2699
        %v2701 = vmul.f32 %v2675, 1.442695
        %v2702 = vpow.pop %v2701
        %v2703 = vmul.f32 %v2676, 1.442695
        %v2704 = vpow.pop %v2703
        %v2705 = vmul.f32 %v2677, 1.442695
        %v2706 = vpow.pop %v2705
        %v2707 = vmul.f32 %v2678, 1.442695
        %v2708 = vpow.pop %v2707
        %v2709 = vmul.f32 %v2679, 1.442695
        %v2710 = vpow.pop %v2709
        %v2711 = vmul.f32 %v2680, 1.442695
        %v2712 = vpow.pop %v2711
        %2713 = vadd.xlane.f32.xlu0 %v2682
        %v2714 = vpop.xlane.xlu0 %2713
        %2715 = vadd.xlane.f32.xlu0 %v2684
        %v2716 = vpop.xlane.xlu0 %2715
        %2717 = vadd.xlane.f32.xlu0 %v2686
        %v2718 = vpop.xlane.xlu0 %2717
        %2719 = vadd.xlane.f32.xlu0 %v2688
        %v2720 = vpop.xlane.xlu0 %2719
        %2721 = vadd.xlane.f32.xlu0 %v2690
        %v2722 = vpop.xlane.xlu0 %2721
        %2723 = vadd.xlane.f32.xlu0 %v2692
        %v2724 = vpop.xlane.xlu0 %2723
        %2725 = vadd.xlane.f32.xlu0 %v2694
        %v2726 = vpop.xlane.xlu0 %2725
        %2727 = vadd.xlane.f32.xlu0 %v2696
        %v2728 = vpop.xlane.xlu0 %2727
        %2729 = vadd.xlane.f32.xlu0 %v2698
        %v2730 = vpop.xlane.xlu0 %2729
        %2731 = vadd.xlane.f32.xlu0 %v2700
        %v2732 = vpop.xlane.xlu0 %2731
        %2733 = vadd.xlane.f32.xlu0 %v2702
        %v2734 = vpop.xlane.xlu0 %2733
        %2735 = vadd.xlane.f32.xlu0 %v2704
        %v2736 = vpop.xlane.xlu0 %2735
        %2737 = vadd.xlane.f32.xlu0 %v2706
        %v2738 = vpop.xlane.xlu0 %2737
        %2739 = vadd.xlane.f32.xlu0 %v2708
        %v2740 = vpop.xlane.xlu0 %2739
        %2741 = vadd.xlane.f32.xlu0 %v2710
        %v2742 = vpop.xlane.xlu0 %2741
        %2743 = vadd.xlane.f32.xlu0 %v2712
        %v2744 = vpop.xlane.xlu0 %2743
        %v2745 = vrcp.pop %v2714
        %v2746 = vrcp.pop %v2716
        %v2747 = vrcp.pop %v2718
        %v2748 = vrcp.pop %v2720
        %v2749 = vrcp.pop %v2722
        %v2750 = vrcp.pop %v2724
        %v2751 = vrcp.pop %v2726
        %v2752 = vrcp.pop %v2728
        %v2753 = vrcp.pop %v2730
        %v2754 = vrcp.pop %v2732
        %v2755 = vrcp.pop %v2734
        %v2756 = vrcp.pop %v2736
        %v2757 = vrcp.pop %v2738
        %v2758 = vrcp.pop %v2740
        %v2759 = vrcp.pop %v2742
        %v2760 = vrcp.pop %v2744
        %v2761 = vmul.f32 %v2682, %v2745
        %v2762 = vmul.f32 %v2684, %v2746
        %v2763 = vmul.f32 %v2686, %v2747
        %v2764 = vmul.f32 %v2688, %v2748
        %v2765 = vmul.f32 %v2690, %v2749
        %v2766 = vmul.f32 %v2692, %v2750
        %v2767 = vmul.f32 %v2694, %v2751
        %v2768 = vmul.f32 %v2696, %v2752
        %v2769 = vmul.f32 %v2698, %v2753
        %v2770 = vmul.f32 %v2700, %v2754
        %v2771 = vmul.f32 %v2702, %v2755
        %v2772 = vmul.f32 %v2704, %v2756
        %v2773 = vmul.f32 %v2706, %v2757
        %v2774 = vmul.f32 %v2708, %v2758
        %v2775 = vmul.f32 %v2710, %v2759
        %v2776 = vmul.f32 %v2712, %v2760
        %2777 = vrot.lane.b32.xlu0 %v1008, 112
        %v2778 = vpop.permute.xlu0 %2777
        %2779 = vrot.lane.b32.xlu0 %v1013, 112
        %v2780 = vpop.permute.xlu0 %2779
        %2781 = vrot.lane.b32.xlu0 %v1018, 112
        %v2782 = vpop.permute.xlu0 %2781
        %2783 = vrot.lane.b32.xlu0 %v1023, 112
        %v2784 = vpop.permute.xlu0 %2783
        %2785 = vrot.lane.b32.xlu0 %v1028, 112
        %v2786 = vpop.permute.xlu0 %2785
        %2787 = vrot.lane.b32.xlu0 %v1033, 112
        %v2788 = vpop.permute.xlu0 %2787
        %2789 = vrot.lane.b32.xlu0 %v1038, 112
        %v2790 = vpop.permute.xlu0 %2789
        %2791 = vrot.lane.b32.xlu0 %v1043, 112
        %v2792 = vpop.permute.xlu0 %2791
        %2793 = vrot.lane.b32.xlu0 %v1048, 112
        %v2794 = vpop.permute.xlu0 %2793
        %2795 = vrot.lane.b32.xlu0 %v1053, 112
        %v2796 = vpop.permute.xlu0 %2795
        %2797 = vrot.lane.b32.xlu0 %v1058, 112
        %v2798 = vpop.permute.xlu0 %2797
        %2799 = vrot.lane.b32.xlu0 %v1063, 112
        %v2800 = vpop.permute.xlu0 %2799
        %2801 = vrot.lane.b32.xlu0 %v1068, 112
        %v2802 = vpop.permute.xlu0 %2801
        %2803 = vrot.lane.b32.xlu0 %v1073, 112
        %v2804 = vpop.permute.xlu0 %2803
        %2805 = vrot.lane.b32.xlu0 %v1078, 112
        %v2806 = vpop.permute.xlu0 %2805
        %2807 = vrot.lane.b32.xlu0 %v1083, 112
        %v2808 = vpop.permute.xlu0 %2807
        %2825 = vmatprep.subr.mxu0 0.0
        %2826 = vmatpush1.msra.mxu0 %v2778
        %2827 = vmatprep.subr.mxu0 0.0
        %2828 = vmatpush1.msra.mxu0 %v2780
        %2829 = vmatprep.subr.mxu0 0.0
        %2830 = vmatpush1.msra.mxu0 %v2782
        %2831 = vmatprep.subr.mxu0 0.0
        %2832 = vmatpush1.msra.mxu0 %v2784
        %2833 = vmatprep.subr.mxu0 0.0
        %2834 = vmatpush1.msra.mxu0 %v2786
        %2835 = vmatprep.subr.mxu0 0.0
        %2836 = vmatpush1.msra.mxu0 %v2788
        %2837 = vmatprep.subr.mxu0 0.0
        %2838 = vmatpush1.msra.mxu0 %v2790
        %2839 = vmatprep.subr.mxu0 0.0
        %2840 = vmatpush1.msra.mxu0 %v2792
        %2841 = vmatprep.subr.mxu0 0.0
        %2842 = vmatpush1.msra.mxu0 %v2794
        %2843 = vmatprep.subr.mxu0 0.0
        %2844 = vmatpush1.msra.mxu0 %v2796
        %2845 = vmatprep.subr.mxu0 0.0
        %2846 = vmatpush1.msra.mxu0 %v2798
        %2847 = vmatprep.subr.mxu0 0.0
        %2848 = vmatpush1.msra.mxu0 %v2800
        %2849 = vmatprep.subr.mxu0 0.0
        %2850 = vmatpush1.msra.mxu0 %v2802
        %2851 = vmatprep.subr.mxu0 0.0
        %2852 = vmatpush1.msra.mxu0 %v2804
        %2853 = vmatprep.subr.mxu0 0.0
        %2854 = vmatpush1.msra.mxu0 %v2806
        %2855 = vmatprep.subr.mxu0 0.0
        %2856 = vmatpush1.msra.mxu0 %v2808
        %2857 = vmatprep.subr.mxu0 0.0
        %2858 = vmatpush1.msra.mxu0 0.0
        %2859 = vmatprep.subr.mxu0 0.0
        %2860 = vmatpush1.msra.mxu0 0.0
        %2861 = vmatprep.subr.mxu0 0.0
        %2862 = vmatpush1.msra.mxu0 0.0
        %2863 = vmatprep.subr.mxu0 0.0
        %2864 = vmatpush1.msra.mxu0 0.0
        %2865 = vmatprep.subr.mxu0 0.0
        %2866 = vmatpush1.msra.mxu0 0.0
        %2867 = vmatprep.subr.mxu0 0.0
        %2868 = vmatpush1.msra.mxu0 0.0
        %2869 = vmatprep.subr.mxu0 0.0
        %2870 = vmatpush1.msra.mxu0 0.0
        %2871 = vmatprep.subr.mxu0 0.0
        %2872 = vmatpush1.msra.mxu0 0.0
        %2873 = vmatprep.subr.mxu0 0.0
        %2874 = vmatpush1.msra.mxu0 0.0
        %2875 = vmatprep.subr.mxu0 0.0
        %2876 = vmatpush1.msra.mxu0 0.0
        %2877 = vmatprep.subr.mxu0 0.0
        %2878 = vmatpush1.msra.mxu0 0.0
        %2879 = vmatprep.subr.mxu0 0.0
        %2880 = vmatpush1.msra.mxu0 0.0
        %2881 = vmatprep.subr.mxu0 0.0
        %2882 = vmatpush1.msra.mxu0 0.0
        %2883 = vmatprep.subr.mxu0 0.0
        %2884 = vmatpush1.msra.mxu0 0.0
        %2885 = vmatprep.subr.mxu0 0.0
        %2886 = vmatpush1.msra.mxu0 0.0
        %2887 = vmatprep.subr.mxu0 0.0
        %2888 = vmatpush1.msra.mxu0 0.0
        %2889 = vmatprep.mubr.f32.mxu0 0.0
        %2890 = vmatmul.mubr.f32.gmra.mrb[0].mxu0 %v2761
        %v2891 = vpop.f32.mrb[0].mxu0
        %v2892 = vadd.f32 0.0, %v2891
        %v2893 = vpop.f32.mrb[0].mxu0
        %2894 = vmatprep.mubr.f32.mxu0 0.0
        %2895 = vmatmul.mubr.f32.gmra.mrb[0].mxu0 %v2762
        %v2896 = vpop.f32.mrb[0].mxu0
        %v2897 = vadd.f32 0.0, %v2896
        %v2898 = vpop.f32.mrb[0].mxu0
        %2899 = vmatprep.mubr.f32.mxu0 0.0
        %2900 = vmatmul.mubr.f32.gmra.mrb[0].mxu0 %v2763
        %v2901 = vpop.f32.mrb[0].mxu0
        %v2902 = vadd.f32 0.0, %v2901
        %v2903 = vpop.f32.mrb[0].mxu0
        %2904 = vmatprep.mubr.f32.mxu0 0.0
        %2905 = vmatmul.mubr.f32.gmra.mrb[0].mxu0 %v2764
        %v2906 = vpop.f32.mrb[0].mxu0
        %v2907 = vadd.f32 0.0, %v2906
        %v2908 = vpop.f32.mrb[0].mxu0
        %2909 = vmatprep.mubr.f32.mxu0 0.0
        %2910 = vmatmul.mubr.f32.gmra.mrb[0].mxu0 %v2765
        %v2911 = vpop.f32.mrb[0].mxu0
        %v2912 = vadd.f32 0.0, %v2911
        %v2913 = vpop.f32.mrb[0].mxu0
        %2914 = vmatprep.mubr.f32.mxu0 0.0
        %2915 = vmatmul.mubr.f32.gmra.mrb[0].mxu0 %v2766
        %v2916 = vpop.f32.mrb[0].mxu0
        %v2917 = vadd.f32 0.0, %v2916
        %v2918 = vpop.f32.mrb[0].mxu0
        %2919 = vmatprep.mubr.f32.mxu0 0.0
        %2920 = vmatmul.mubr.f32.gmra.mrb[0].mxu0 %v2767
        %v2921 = vpop.f32.mrb[0].mxu0
        %v2922 = vadd.f32 0.0, %v2921
        %v2923 = vpop.f32.mrb[0].mxu0
        %2924 = vmatprep.mubr.f32.mxu0 0.0
        %2925 = vmatmul.mubr.f32.gmra.mrb[0].mxu0 %v2768
        %v2926 = vpop.f32.mrb[0].mxu0
        %v2927 = vadd.f32 0.0, %v2926
        %v2928 = vpop.f32.mrb[0].mxu0
        %2929 = vmatprep.mubr.f32.mxu0 0.0
        %2930 = vmatmul.mubr.f32.gmra.mrb[0].mxu0 %v2769
        %v2931 = vpop.f32.mrb[0].mxu0
        %v2932 = vadd.f32 0.0, %v2931
        %v2933 = vpop.f32.mrb[0].mxu0
        %2934 = vmatprep.mubr.f32.mxu0 0.0
        %2935 = vmatmul.mubr.f32.gmra.mrb[0].mxu0 %v2770
        %v2936 = vpop.f32.mrb[0].mxu0
        %v2937 = vadd.f32 0.0, %v2936
        %v2938 = vpop.f32.mrb[0].mxu0
        %2939 = vmatprep.mubr.f32.mxu0 0.0
        %2940 = vmatmul.mubr.f32.gmra.mrb[0].mxu0 %v2771
        %v2941 = vpop.f32.mrb[0].mxu0
        %v2942 = vadd.f32 0.0, %v2941
        %v2943 = vpop.f32.mrb[0].mxu0
        %2944 = vmatprep.mubr.f32.mxu0 0.0
        %2945 = vmatmul.mubr.f32.gmra.mrb[0].mxu0 %v2772
        %v2946 = vpop.f32.mrb[0].mxu0
        %v2947 = vadd.f32 0.0, %v2946
        %v2948 = vpop.f32.mrb[0].mxu0
        %2949 = vmatprep.mubr.f32.mxu0 0.0
        %2950 = vmatmul.mubr.f32.gmra.mrb[0].mxu0 %v2773
        %v2951 = vpop.f32.mrb[0].mxu0
        %v2952 = vadd.f32 0.0, %v2951
        %v2953 = vpop.f32.mrb[0].mxu0
        %2954 = vmatprep.mubr.f32.mxu0 0.0
        %2955 = vmatmul.mubr.f32.gmra.mrb[0].mxu0 %v2774
        %v2956 = vpop.f32.mrb[0].mxu0
        %v2957 = vadd.f32 0.0, %v2956
        %v2958 = vpop.f32.mrb[0].mxu0
        %2959 = vmatprep.mubr.f32.mxu0 0.0
        %2960 = vmatmul.mubr.f32.gmra.mrb[0].mxu0 %v2775
        %v2961 = vpop.f32.mrb[0].mxu0
        %v2962 = vadd.f32 0.0, %v2961
        %v2963 = vpop.f32.mrb[0].mxu0
        %2964 = vmatprep.mubr.f32.mxu0 0.0
        %2965 = vmatmul.mubr.f32.gmra.mrb[0].mxu0 %v2776
        %v2966 = vpop.f32.mrb[0].mxu0
        %v2967 = vadd.f32 0.0, %v2966
        %v2968 = vpop.f32.mrb[0].mxu0
        %2969 = vdwg.mxu0
        %2986 = vrot.lane.b32.xlu0 %v2892, 16
        %v2987 = vpop.permute.xlu0 %2986
        %2988 = vrot.lane.b32.xlu0 %v2897, 16
        %v2989 = vpop.permute.xlu0 %2988
        %2990 = vrot.lane.b32.xlu0 %v2902, 16
        %v2991 = vpop.permute.xlu0 %2990
        %2992 = vrot.lane.b32.xlu0 %v2907, 16
        %v2993 = vpop.permute.xlu0 %2992
        %2994 = vrot.lane.b32.xlu0 %v2912, 16
        %v2995 = vpop.permute.xlu0 %2994
        %2996 = vrot.lane.b32.xlu0 %v2917, 16
        %v2997 = vpop.permute.xlu0 %2996
        %2998 = vrot.lane.b32.xlu0 %v2922, 16
        %v2999 = vpop.permute.xlu0 %2998
        %3000 = vrot.lane.b32.xlu0 %v2927, 16
        %v3001 = vpop.permute.xlu0 %3000
        %3002 = vrot.lane.b32.xlu0 %v2932, 16
        %v3003 = vpop.permute.xlu0 %3002
        %3004 = vrot.lane.b32.xlu0 %v2937, 16
        %v3005 = vpop.permute.xlu0 %3004
        %3006 = vrot.lane.b32.xlu0 %v2942, 16
        %v3007 = vpop.permute.xlu0 %3006
        %3008 = vrot.lane.b32.xlu0 %v2947, 16
        %v3009 = vpop.permute.xlu0 %3008
        %3010 = vrot.lane.b32.xlu0 %v2952, 16
        %v3011 = vpop.permute.xlu0 %3010
        %3012 = vrot.lane.b32.xlu0 %v2957, 16
        %v3013 = vpop.permute.xlu0 %3012
        %3014 = vrot.lane.b32.xlu0 %v2962, 16
        %v3015 = vpop.permute.xlu0 %3014
        %3016 = vrot.lane.b32.xlu0 %v2967, 16
        %v3017 = vpop.permute.xlu0 %3016
        %vm3034 = vcmask 195712
        %3035 = vst.msk [vmem:[#allocation2] sm:$0xff] %vm3034, %v2987
        %3036 = vst.msk [vmem:[#allocation2 + $0x8] sm:$0xff] %vm3034, %v2989
        %3037 = vst.msk [vmem:[#allocation2 + $0x10] sm:$0xff] %vm3034, %v2991
        %3038 = vst.msk [vmem:[#allocation2 + $0x18] sm:$0xff] %vm3034, %v2993
        %3039 = vst.msk [vmem:[#allocation2 + $0x20] sm:$0xff] %vm3034, %v2995
        %3040 = vst.msk [vmem:[#allocation2 + $0x28] sm:$0xff] %vm3034, %v2997
        %3041 = vst.msk [vmem:[#allocation2 + $0x30] sm:$0xff] %vm3034, %v2999
        %3042 = vst.msk [vmem:[#allocation2 + $0x38] sm:$0xff] %vm3034, %v3001
        %3043 = vst.msk [vmem:[#allocation2 + $0x40] sm:$0xff] %vm3034, %v3003
        %3044 = vst.msk [vmem:[#allocation2 + $0x48] sm:$0xff] %vm3034, %v3005
        %3045 = vst.msk [vmem:[#allocation2 + $0x50] sm:$0xff] %vm3034, %v3007
        %3046 = vst.msk [vmem:[#allocation2 + $0x58] sm:$0xff] %vm3034, %v3009
        %3047 = vst.msk [vmem:[#allocation2 + $0x60] sm:$0xff] %vm3034, %v3011
        %3048 = vst.msk [vmem:[#allocation2 + $0x68] sm:$0xff] %vm3034, %v3013
        %3049 = vst.msk [vmem:[#allocation2 + $0x70] sm:$0xff] %vm3034, %v3015
        %3050 = vst.msk [vmem:[#allocation2 + $0x78] sm:$0xff] %vm3034, %v3017
        %3051 = vrot.lane.b32.xlu0 %v1086, 104
        %v3052 = vpop.permute.xlu0 %3051
        %3053 = vrot.lane.b32.xlu0 %v1087, 104
        %v3054 = vpop.permute.xlu0 %3053
        %3055 = vrot.lane.b32.xlu0 %v1088, 104
        %v3056 = vpop.permute.xlu0 %3055
        %3057 = vrot.lane.b32.xlu0 %v1089, 104
        %v3058 = vpop.permute.xlu0 %3057
        %3059 = vrot.lane.b32.xlu0 %v1090, 104
        %v3060 = vpop.permute.xlu0 %3059
        %3061 = vrot.lane.b32.xlu0 %v1091, 104
        %v3062 = vpop.permute.xlu0 %3061
        %3063 = vrot.lane.b32.xlu0 %v1092, 104
        %v3064 = vpop.permute.xlu0 %3063
        %3065 = vrot.lane.b32.xlu0 %v1093, 104
        %v3066 = vpop.permute.xlu0 %3065
        %3067 = vrot.lane.b32.xlu0 %v1094, 104
        %v3068 = vpop.permute.xlu0 %3067
        %3069 = vrot.lane.b32.xlu0 %v1095, 104
        %v3070 = vpop.permute.xlu0 %3069
        %3071 = vrot.lane.b32.xlu0 %v1096, 104
        %v3072 = vpop.permute.xlu0 %3071
        %3073 = vrot.lane.b32.xlu0 %v1097, 104
        %v3074 = vpop.permute.xlu0 %3073
        %3075 = vrot.lane.b32.xlu0 %v1098, 104
        %v3076 = vpop.permute.xlu0 %3075
        %3077 = vrot.lane.b32.xlu0 %v1099, 104
        %v3078 = vpop.permute.xlu0 %3077
        %3079 = vrot.lane.b32.xlu0 %v1100, 104
        %v3080 = vpop.permute.xlu0 %3079
        %3081 = vrot.lane.b32.xlu0 %v1101, 104
        %v3082 = vpop.permute.xlu0 %3081
        %3083 = vrot.lane.b32.xlu0 %v788, 104
        %v3084 = vpop.permute.xlu0 %3083
        %3085 = vrot.lane.b32.xlu0 %v793, 104
        %v3086 = vpop.permute.xlu0 %3085
        %3087 = vrot.lane.b32.xlu0 %v798, 104
        %v3088 = vpop.permute.xlu0 %3087
        %3089 = vrot.lane.b32.xlu0 %v803, 104
        %v3090 = vpop.permute.xlu0 %3089
        %3091 = vrot.lane.b32.xlu0 %v808, 104
        %v3092 = vpop.permute.xlu0 %3091
        %3093 = vrot.lane.b32.xlu0 %v813, 104
        %v3094 = vpop.permute.xlu0 %3093
        %3095 = vrot.lane.b32.xlu0 %v818, 104
        %v3096 = vpop.permute.xlu0 %3095
        %3097 = vrot.lane.b32.xlu0 %v823, 104
        %v3098 = vpop.permute.xlu0 %3097
        %3099 = vrot.lane.b32.xlu0 %v828, 104
        %v3100 = vpop.permute.xlu0 %3099
        %3101 = vrot.lane.b32.xlu0 %v833, 104
        %v3102 = vpop.permute.xlu0 %3101
        %3103 = vrot.lane.b32.xlu0 %v838, 104
        %v3104 = vpop.permute.xlu0 %3103
        %3105 = vrot.lane.b32.xlu0 %v843, 104
        %v3106 = vpop.permute.xlu0 %3105
        %3107 = vrot.lane.b32.xlu0 %v848, 104
        %v3108 = vpop.permute.xlu0 %3107
        %3109 = vrot.lane.b32.xlu0 %v853, 104
        %v3110 = vpop.permute.xlu0 %3109
        %3111 = vrot.lane.b32.xlu0 %v858, 104
        %v3112 = vpop.permute.xlu0 %3111
        %3113 = vrot.lane.b32.xlu0 %v863, 104
        %v3114 = vpop.permute.xlu0 %3113
        %v3115 = vsel %vm1106, %v3052, 0
        %v3117 = vsel %vm1106, %v3054, 0
        %v3119 = vsel %vm1106, %v3056, 0
        %v3121 = vsel %vm1106, %v3058, 0
        %v3123 = vsel %vm1106, %v3060, 0
        %v3125 = vsel %vm1106, %v3062, 0
        %v3127 = vsel %vm1106, %v3064, 0
        %v3129 = vsel %vm1106, %v3066, 0
        %v3131 = vsel %vm1106, %v3068, 0
        %v3133 = vsel %vm1106, %v3070, 0
        %v3135 = vsel %vm1106, %v3072, 0
        %v3137 = vsel %vm1106, %v3074, 0
        %v3139 = vsel %vm1106, %v3076, 0
        %v3141 = vsel %vm1106, %v3078, 0
        %v3143 = vsel %vm1106, %v3080, 0
        %v3145 = vsel %vm1106, %v3082, 0
        %v3147 = vsel %vm1106, %v3084, 0
        %v3149 = vsel %vm1106, %v3086, 0
        %v3151 = vsel %vm1106, %v3088, 0
        %v3153 = vsel %vm1106, %v3090, 0
        %v3155 = vsel %vm1106, %v3092, 0
        %v3157 = vsel %vm1106, %v3094, 0
        %v3159 = vsel %vm1106, %v3096, 0
        %v3161 = vsel %vm1106, %v3098, 0
        %v3163 = vsel %vm1106, %v3100, 0
        %v3165 = vsel %vm1106, %v3102, 0
        %v3167 = vsel %vm1106, %v3104, 0
        %v3169 = vsel %vm1106, %v3106, 0
        %v3171 = vsel %vm1106, %v3108, 0
        %v3173 = vsel %vm1106, %v3110, 0
        %v3175 = vsel %vm1106, %v3112, 0
        %v3177 = vsel %vm1106, %v3114, 0
        %3179 = vmatprep.subr.mxu0 0.0
        %3180 = vmatpush1.xpose.msra.mxu0 %v3147
        %3181 = vmatprep.subr.mxu0 0.0
        %3182 = vmatpush1.xpose.msra.mxu0 %v3149
        %3183 = vmatprep.subr.mxu0 0.0
        %3184 = vmatpush1.xpose.msra.mxu0 %v3151
        %3185 = vmatprep.subr.mxu0 0.0
        %3186 = vmatpush1.xpose.msra.mxu0 %v3153
        %3187 = vmatprep.subr.mxu0 0.0
        %3188 = vmatpush1.xpose.msra.mxu0 %v3155
        %3189 = vmatprep.subr.mxu0 0.0
        %3190 = vmatpush1.xpose.msra.mxu0 %v3157
        %3191 = vmatprep.subr.mxu0 0.0
        %3192 = vmatpush1.xpose.msra.mxu0 %v3159
        %3193 = vmatprep.subr.mxu0 0.0
        %3194 = vmatpush1.xpose.msra.mxu0 %v3161
        %3195 = vmatprep.subr.mxu0 0.0
        %3196 = vmatpush1.xpose.msra.mxu0 %v3163
        %3197 = vmatprep.subr.mxu0 0.0
        %3198 = vmatpush1.xpose.msra.mxu0 %v3165
        %3199 = vmatprep.subr.mxu0 0.0
        %3200 = vmatpush1.xpose.msra.mxu0 %v3167
        %3201 = vmatprep.subr.mxu0 0.0
        %3202 = vmatpush1.xpose.msra.mxu0 %v3169
        %3203 = vmatprep.subr.mxu0 0.0
        %3204 = vmatpush1.xpose.msra.mxu0 %v3171
        %3205 = vmatprep.subr.mxu0 0.0
        %3206 = vmatpush1.xpose.msra.mxu0 %v3173
        %3207 = vmatprep.subr.mxu0 0.0
        %3208 = vmatpush1.xpose.msra.mxu0 %v3175
        %3209 = vmatprep.subr.mxu0 0.0
        %3210 = vmatpush1.xpose.msra.mxu0 %v3177
        %3211 = vmatprep.subr.mxu0 0.0
        %3212 = vmatpush1.xpose.msra.mxu0 0.0
        %3213 = vmatprep.subr.mxu0 0.0
        %3214 = vmatpush1.xpose.msra.mxu0 0.0
        %3215 = vmatprep.subr.mxu0 0.0
        %3216 = vmatpush1.xpose.msra.mxu0 0.0
        %3217 = vmatprep.subr.mxu0 0.0
        %3218 = vmatpush1.xpose.msra.mxu0 0.0
        %3219 = vmatprep.subr.mxu0 0.0
        %3220 = vmatpush1.xpose.msra.mxu0 0.0
        %3221 = vmatprep.subr.mxu0 0.0
        %3222 = vmatpush1.xpose.msra.mxu0 0.0
        %3223 = vmatprep.subr.mxu0 0.0
        %3224 = vmatpush1.xpose.msra.mxu0 0.0
        %3225 = vmatprep.subr.mxu0 0.0
        %3226 = vmatpush1.xpose.msra.mxu0 0.0
        %3227 = vmatprep.subr.mxu0 0.0
        %3228 = vmatpush1.xpose.msra.mxu0 0.0
        %3229 = vmatprep.subr.mxu0 0.0
        %3230 = vmatpush1.xpose.msra.mxu0 0.0
        %3231 = vmatprep.subr.mxu0 0.0
        %3232 = vmatpush1.xpose.msra.mxu0 0.0
        %3233 = vmatprep.subr.mxu0 0.0
        %3234 = vmatpush1.xpose.msra.mxu0 0.0
        %3235 = vmatprep.subr.mxu0 0.0
        %3236 = vmatpush1.xpose.msra.mxu0 0.0
        %3237 = vmatprep.subr.mxu0 0.0
        %3238 = vmatpush1.xpose.msra.mxu0 0.0
        %3239 = vmatprep.subr.mxu0 0.0
        %3240 = vmatpush1.xpose.msra.mxu0 0.0
        %3241 = vmatprep.subr.mxu0 0.0
        %3242 = vmatpush1.xpose.msra.mxu0 0.0
        %3243 = vmatprep.mubr.f32.mxu0 0.0
        %3244 = vmatmul.mubr.f32.gmra.mrb[0].mxu0 %v3115
        %v3245 = vpop.f32.mrb[0].mxu0
        %v3246 = vadd.f32 %v1105, %v3245
        %v3247 = vpop.f32.mrb[0].mxu0
        %3248 = vmatprep.mubr.f32.mxu0 0.0
        %3249 = vmatmul.mubr.f32.gmra.mrb[0].mxu0 %v3117
        %v3250 = vpop.f32.mrb[0].mxu0
        %v3251 = vadd.f32 %v1105, %v3250
        %v3252 = vpop.f32.mrb[0].mxu0
        %3253 = vmatprep.mubr.f32.mxu0 0.0
        %3254 = vmatmul.mubr.f32.gmra.mrb[0].mxu0 %v3119
        %v3255 = vpop.f32.mrb[0].mxu0
        %v3256 = vadd.f32 %v1105, %v3255
        %v3257 = vpop.f32.mrb[0].mxu0
        %3258 = vmatprep.mubr.f32.mxu0 0.0
        %3259 = vmatmul.mubr.f32.gmra.mrb[0].mxu0 %v3121
        %v3260 = vpop.f32.mrb[0].mxu0
        %v3261 = vadd.f32 %v1105, %v3260
        %v3262 = vpop.f32.mrb[0].mxu0
        %3263 = vmatprep.mubr.f32.mxu0 0.0
        %3264 = vmatmul.mubr.f32.gmra.mrb[0].mxu0 %v3123
        %v3265 = vpop.f32.mrb[0].mxu0
        %v3266 = vadd.f32 %v1105, %v3265
        %v3267 = vpop.f32.mrb[0].mxu0
        %3268 = vmatprep.mubr.f32.mxu0 0.0
        %3269 = vmatmul.mubr.f32.gmra.mrb[0].mxu0 %v3125
        %v3270 = vpop.f32.mrb[0].mxu0
        %v3271 = vadd.f32 %v1105, %v3270
        %v3272 = vpop.f32.mrb[0].mxu0
        %3273 = vmatprep.mubr.f32.mxu0 0.0
        %3274 = vmatmul.mubr.f32.gmra.mrb[0].mxu0 %v3127
        %v3275 = vpop.f32.mrb[0].mxu0
        %v3276 = vadd.f32 %v1105, %v3275
        %v3277 = vpop.f32.mrb[0].mxu0
        %3278 = vmatprep.mubr.f32.mxu0 0.0
        %3279 = vmatmul.mubr.f32.gmra.mrb[0].mxu0 %v3129
        %v3280 = vpop.f32.mrb[0].mxu0
        %v3281 = vadd.f32 %v1105, %v3280
        %v3282 = vpop.f32.mrb[0].mxu0
        %3283 = vmatprep.mubr.f32.mxu0 0.0
        %3284 = vmatmul.mubr.f32.gmra.mrb[0].mxu0 %v3131
        %v3285 = vpop.f32.mrb[0].mxu0
        %v3286 = vadd.f32 %v1105, %v3285
        %v3287 = vpop.f32.mrb[0].mxu0
        %3288 = vmatprep.mubr.f32.mxu0 0.0
        %3289 = vmatmul.mubr.f32.gmra.mrb[0].mxu0 %v3133
        %v3290 = vpop.f32.mrb[0].mxu0
        %v3291 = vadd.f32 %v1105, %v3290
        %v3292 = vpop.f32.mrb[0].mxu0
        %3293 = vmatprep.mubr.f32.mxu0 0.0
        %3294 = vmatmul.mubr.f32.gmra.mrb[0].mxu0 %v3135
        %v3295 = vpop.f32.mrb[0].mxu0
        %v3296 = vadd.f32 %v1105, %v3295
        %v3297 = vpop.f32.mrb[0].mxu0
        %3298 = vmatprep.mubr.f32.mxu0 0.0
        %3299 = vmatmul.mubr.f32.gmra.mrb[0].mxu0 %v3137
        %v3300 = vpop.f32.mrb[0].mxu0
        %v3301 = vadd.f32 %v1105, %v3300
        %v3302 = vpop.f32.mrb[0].mxu0
        %3303 = vmatprep.mubr.f32.mxu0 0.0
        %3304 = vmatmul.mubr.f32.gmra.mrb[0].mxu0 %v3139
        %v3305 = vpop.f32.mrb[0].mxu0
        %v3306 = vadd.f32 %v1105, %v3305
        %v3307 = vpop.f32.mrb[0].mxu0
        %3308 = vmatprep.mubr.f32.mxu0 0.0
        %3309 = vmatmul.mubr.f32.gmra.mrb[0].mxu0 %v3141
        %v3310 = vpop.f32.mrb[0].mxu0
        %v3311 = vadd.f32 %v1105, %v3310
        %v3312 = vpop.f32.mrb[0].mxu0
        %3313 = vmatprep.mubr.f32.mxu0 0.0
        %3314 = vmatmul.mubr.f32.gmra.mrb[0].mxu0 %v3143
        %v3315 = vpop.f32.mrb[0].mxu0
        %v3316 = vadd.f32 %v1105, %v3315
        %v3317 = vpop.f32.mrb[0].mxu0
        %3318 = vmatprep.mubr.f32.mxu0 0.0
        %3319 = vmatmul.mubr.f32.gmra.mrb[0].mxu0 %v3145
        %v3320 = vpop.f32.mrb[0].mxu0
        %v3321 = vadd.f32 %v1105, %v3320
        %v3322 = vpop.f32.mrb[0].mxu0
        %3323 = vdwg.mxu0
        %3324 = vmax.xlane.f32.xlu0 %v3246
        %v3325 = vpop.xlane.xlu0 %3324
        %3326 = vmax.xlane.f32.xlu0 %v3251
        %v3327 = vpop.xlane.xlu0 %3326
        %3328 = vmax.xlane.f32.xlu0 %v3256
        %v3329 = vpop.xlane.xlu0 %3328
        %3330 = vmax.xlane.f32.xlu0 %v3261
        %v3331 = vpop.xlane.xlu0 %3330
        %3332 = vmax.xlane.f32.xlu0 %v3266
        %v3333 = vpop.xlane.xlu0 %3332
        %3334 = vmax.xlane.f32.xlu0 %v3271
        %v3335 = vpop.xlane.xlu0 %3334
        %3336 = vmax.xlane.f32.xlu0 %v3276
        %v3337 = vpop.xlane.xlu0 %3336
        %3338 = vmax.xlane.f32.xlu0 %v3281
        %v3339 = vpop.xlane.xlu0 %3338
        %3340 = vmax.xlane.f32.xlu0 %v3286
        %v3341 = vpop.xlane.xlu0 %3340
        %3342 = vmax.xlane.f32.xlu0 %v3291
        %v3343 = vpop.xlane.xlu0 %3342
        %3344 = vmax.xlane.f32.xlu0 %v3296
        %v3345 = vpop.xlane.xlu0 %3344
        %3346 = vmax.xlane.f32.xlu0 %v3301
        %v3347 = vpop.xlane.xlu0 %3346
        %3348 = vmax.xlane.f32.xlu0 %v3306
        %v3349 = vpop.xlane.xlu0 %3348
        %3350 = vmax.xlane.f32.xlu0 %v3311
        %v3351 = vpop.xlane.xlu0 %3350
        %3352 = vmax.xlane.f32.xlu0 %v3316
        %v3353 = vpop.xlane.xlu0 %3352
        %3354 = vmax.xlane.f32.xlu0 %v3321
        %v3355 = vpop.xlane.xlu0 %3354
        %v3356 = vsub.f32 %v3246, %v3325
        %v3357 = vsub.f32 %v3251, %v3327
        %v3358 = vsub.f32 %v3256, %v3329
        %v3359 = vsub.f32 %v3261, %v3331
        %v3360 = vsub.f32 %v3266, %v3333
        %v3361 = vsub.f32 %v3271, %v3335
        %v3362 = vsub.f32 %v3276, %v3337
        %v3363 = vsub.f32 %v3281, %v3339
        %v3364 = vsub.f32 %v3286, %v3341
        %v3365 = vsub.f32 %v3291, %v3343
        %v3366 = vsub.f32 %v3296, %v3345
        %v3367 = vsub.f32 %v3301, %v3347
        %v3368 = vsub.f32 %v3306, %v3349
        %v3369 = vsub.f32 %v3311, %v3351
        %v3370 = vsub.f32 %v3316, %v3353
        %v3371 = vsub.f32 %v3321, %v3355
        %v3372 = vmul.f32 %v3356, 1.442695
        %v3373 = vpow.pop %v3372
        %v3374 = vmul.f32 %v3357, 1.442695
        %v3375 = vpow.pop %v3374
        %v3376 = vmul.f32 %v3358, 1.442695
        %v3377 = vpow.pop %v3376
        %v3378 = vmul.f32 %v3359, 1.442695
        %v3379 = vpow.pop %v3378
        %v3380 = vmul.f32 %v3360, 1.442695
        %v3381 = vpow.pop %v3380
        %v3382 = vmul.f32 %v3361, 1.442695
        %v3383 = vpow.pop %v3382
        %v3384 = vmul.f32 %v3362, 1.442695
        %v3385 = vpow.pop %v3384
        %v3386 = vmul.f32 %v3363, 1.442695
        %v3387 = vpow.pop %v3386
        %v3388 = vmul.f32 %v3364, 1.442695
        %v3389 = vpow.pop %v3388
        %v3390 = vmul.f32 %v3365, 1.442695
        %v3391 = vpow.pop %v3390
        %v3392 = vmul.f32 %v3366, 1.442695
        %v3393 = vpow.pop %v3392
        %v3394 = vmul.f32 %v3367, 1.442695
        %v3395 = vpow.pop %v3394
        %v3396 = vmul.f32 %v3368, 1.442695
        %v3397 = vpow.pop %v3396
        %v3398 = vmul.f32 %v3369, 1.442695
        %v3399 = vpow.pop %v3398
        %v3400 = vmul.f32 %v3370, 1.442695
        %v3401 = vpow.pop %v3400
        %v3402 = vmul.f32 %v3371, 1.442695
        %v3403 = vpow.pop %v3402
        %3404 = vadd.xlane.f32.xlu0 %v3373
        %v3405 = vpop.xlane.xlu0 %3404
        %3406 = vadd.xlane.f32.xlu0 %v3375
        %v3407 = vpop.xlane.xlu0 %3406
        %3408 = vadd.xlane.f32.xlu0 %v3377
        %v3409 = vpop.xlane.xlu0 %3408
        %3410 = vadd.xlane.f32.xlu0 %v3379
        %v3411 = vpop.xlane.xlu0 %3410
        %3412 = vadd.xlane.f32.xlu0 %v3381
        %v3413 = vpop.xlane.xlu0 %3412
        %3414 = vadd.xlane.f32.xlu0 %v3383
        %v3415 = vpop.xlane.xlu0 %3414
        %3416 = vadd.xlane.f32.xlu0 %v3385
        %v3417 = vpop.xlane.xlu0 %3416
        %3418 = vadd.xlane.f32.xlu0 %v3387
        %v3419 = vpop.xlane.xlu0 %3418
        %3420 = vadd.xlane.f32.xlu0 %v3389
        %v3421 = vpop.xlane.xlu0 %3420
        %3422 = vadd.xlane.f32.xlu0 %v3391
        %v3423 = vpop.xlane.xlu0 %3422
        %3424 = vadd.xlane.f32.xlu0 %v3393
        %v3425 = vpop.xlane.xlu0 %3424
        %3426 = vadd.xlane.f32.xlu0 %v3395
        %v3427 = vpop.xlane.xlu0 %3426
        %3428 = vadd.xlane.f32.xlu0 %v3397
        %v3429 = vpop.xlane.xlu0 %3428
        %3430 = vadd.xlane.f32.xlu0 %v3399
        %v3431 = vpop.xlane.xlu0 %3430
        %3432 = vadd.xlane.f32.xlu0 %v3401
        %v3433 = vpop.xlane.xlu0 %3432
        %3434 = vadd.xlane.f32.xlu0 %v3403
        %v3435 = vpop.xlane.xlu0 %3434
        %v3436 = vrcp.pop %v3405
        %v3437 = vrcp.pop %v3407
        %v3438 = vrcp.pop %v3409
        %v3439 = vrcp.pop %v3411
        %v3440 = vrcp.pop %v3413
        %v3441 = vrcp.pop %v3415
        %v3442 = vrcp.pop %v3417
        %v3443 = vrcp.pop %v3419
        %v3444 = vrcp.pop %v3421
        %v3445 = vrcp.pop %v3423
        %v3446 = vrcp.pop %v3425
        %v3447 = vrcp.pop %v3427
        %v3448 = vrcp.pop %v3429
        %v3449 = vrcp.pop %v3431
        %v3450 = vrcp.pop %v3433
        %v3451 = vrcp.pop %v3435
        %v3452 = vmul.f32 %v3373, %v3436
        %v3453 = vmul.f32 %v3375, %v3437
        %v3454 = vmul.f32 %v3377, %v3438
        %v3455 = vmul.f32 %v3379, %v3439
        %v3456 = vmul.f32 %v3381, %v3440
        %v3457 = vmul.f32 %v3383, %v3441
        %v3458 = vmul.f32 %v3385, %v3442
        %v3459 = vmul.f32 %v3387, %v3443
        %v3460 = vmul.f32 %v3389, %v3444
        %v3461 = vmul.f32 %v3391, %v3445
        %v3462 = vmul.f32 %v3393, %v3446
        %v3463 = vmul.f32 %v3395, %v3447
        %v3464 = vmul.f32 %v3397, %v3448
        %v3465 = vmul.f32 %v3399, %v3449
        %v3466 = vmul.f32 %v3401, %v3450
        %v3467 = vmul.f32 %v3403, %v3451
        %3468 = vrot.lane.b32.xlu0 %v1008, 104
        %v3469 = vpop.permute.xlu0 %3468
        %3470 = vrot.lane.b32.xlu0 %v1013, 104
        %v3471 = vpop.permute.xlu0 %3470
        %3472 = vrot.lane.b32.xlu0 %v1018, 104
        %v3473 = vpop.permute.xlu0 %3472
        %3474 = vrot.lane.b32.xlu0 %v1023, 104
        %v3475 = vpop.permute.xlu0 %3474
        %3476 = vrot.lane.b32.xlu0 %v1028, 104
        %v3477 = vpop.permute.xlu0 %3476
        %3478 = vrot.lane.b32.xlu0 %v1033, 104
        %v3479 = vpop.permute.xlu0 %3478
        %3480 = vrot.lane.b32.xlu0 %v1038, 104
        %v3481 = vpop.permute.xlu0 %3480
        %3482 = vrot.lane.b32.xlu0 %v1043, 104
        %v3483 = vpop.permute.xlu0 %3482
        %3484 = vrot.lane.b32.xlu0 %v1048, 104
        %v3485 = vpop.permute.xlu0 %3484
        %3486 = vrot.lane.b32.xlu0 %v1053, 104
        %v3487 = vpop.permute.xlu0 %3486
        %3488 = vrot.lane.b32.xlu0 %v1058, 104
        %v3489 = vpop.permute.xlu0 %3488
        %3490 = vrot.lane.b32.xlu0 %v1063, 104
        %v3491 = vpop.permute.xlu0 %3490
        %3492 = vrot.lane.b32.xlu0 %v1068, 104
        %v3493 = vpop.permute.xlu0 %3492
        %3494 = vrot.lane.b32.xlu0 %v1073, 104
        %v3495 = vpop.permute.xlu0 %3494
        %3496 = vrot.lane.b32.xlu0 %v1078, 104
        %v3497 = vpop.permute.xlu0 %3496
        %3498 = vrot.lane.b32.xlu0 %v1083, 104
        %v3499 = vpop.permute.xlu0 %3498
        %3516 = vmatprep.subr.mxu0 0.0
        %3517 = vmatpush1.msra.mxu0 %v3469
        %3518 = vmatprep.subr.mxu0 0.0
        %3519 = vmatpush1.msra.mxu0 %v3471
        %3520 = vmatprep.subr.mxu0 0.0
        %3521 = vmatpush1.msra.mxu0 %v3473
        %3522 = vmatprep.subr.mxu0 0.0
        %3523 = vmatpush1.msra.mxu0 %v3475
        %3524 = vmatprep.subr.mxu0 0.0
        %3525 = vmatpush1.msra.mxu0 %v3477
        %3526 = vmatprep.subr.mxu0 0.0
        %3527 = vmatpush1.msra.mxu0 %v3479
        %3528 = vmatprep.subr.mxu0 0.0
        %3529 = vmatpush1.msra.mxu0 %v3481
        %3530 = vmatprep.subr.mxu0 0.0
        %3531 = vmatpush1.msra.mxu0 %v3483
        %3532 = vmatprep.subr.mxu0 0.0
        %3533 = vmatpush1.msra.mxu0 %v3485
        %3534 = vmatprep.subr.mxu0 0.0
        %3535 = vmatpush1.msra.mxu0 %v3487
        %3536 = vmatprep.subr.mxu0 0.0
        %3537 = vmatpush1.msra.mxu0 %v3489
        %3538 = vmatprep.subr.mxu0 0.0
        %3539 = vmatpush1.msra.mxu0 %v3491
        %3540 = vmatprep.subr.mxu0 0.0
        %3541 = vmatpush1.msra.mxu0 %v3493
        %3542 = vmatprep.subr.mxu0 0.0
        %3543 = vmatpush1.msra.mxu0 %v3495
        %3544 = vmatprep.subr.mxu0 0.0
        %3545 = vmatpush1.msra.mxu0 %v3497
        %3546 = vmatprep.subr.mxu0 0.0
        %3547 = vmatpush1.msra.mxu0 %v3499
        %3548 = vmatprep.subr.mxu0 0.0
        %3549 = vmatpush1.msra.mxu0 0.0
        %3550 = vmatprep.subr.mxu0 0.0
        %3551 = vmatpush1.msra.mxu0 0.0
        %3552 = vmatprep.subr.mxu0 0.0
        %3553 = vmatpush1.msra.mxu0 0.0
        %3554 = vmatprep.subr.mxu0 0.0
        %3555 = vmatpush1.msra.mxu0 0.0
        %3556 = vmatprep.subr.mxu0 0.0
        %3557 = vmatpush1.msra.mxu0 0.0
        %3558 = vmatprep.subr.mxu0 0.0
        %3559 = vmatpush1.msra.mxu0 0.0
        %3560 = vmatprep.subr.mxu0 0.0
        %3561 = vmatpush1.msra.mxu0 0.0
        %3562 = vmatprep.subr.mxu0 0.0
        %3563 = vmatpush1.msra.mxu0 0.0
        %3564 = vmatprep.subr.mxu0 0.0
        %3565 = vmatpush1.msra.mxu0 0.0
        %3566 = vmatprep.subr.mxu0 0.0
        %3567 = vmatpush1.msra.mxu0 0.0
        %3568 = vmatprep.subr.mxu0 0.0
        %3569 = vmatpush1.msra.mxu0 0.0
        %3570 = vmatprep.subr.mxu0 0.0
        %3571 = vmatpush1.msra.mxu0 0.0
        %3572 = vmatprep.subr.mxu0 0.0
        %3573 = vmatpush1.msra.mxu0 0.0
        %3574 = vmatprep.subr.mxu0 0.0
        %3575 = vmatpush1.msra.mxu0 0.0
        %3576 = vmatprep.subr.mxu0 0.0
        %3577 = vmatpush1.msra.mxu0 0.0
        %3578 = vmatprep.subr.mxu0 0.0
        %3579 = vmatpush1.msra.mxu0 0.0
        %3580 = vmatprep.mubr.f32.mxu0 0.0
        %3581 = vmatmul.mubr.f32.gmra.mrb[0].mxu0 %v3452
        %v3582 = vpop.f32.mrb[0].mxu0
        %v3583 = vadd.f32 0.0, %v3582
        %v3584 = vpop.f32.mrb[0].mxu0
        %3585 = vmatprep.mubr.f32.mxu0 0.0
        %3586 = vmatmul.mubr.f32.gmra.mrb[0].mxu0 %v3453
        %v3587 = vpop.f32.mrb[0].mxu0
        %v3588 = vadd.f32 0.0, %v3587
        %v3589 = vpop.f32.mrb[0].mxu0
        %3590 = vmatprep.mubr.f32.mxu0 0.0
        %3591 = vmatmul.mubr.f32.gmra.mrb[0].mxu0 %v3454
        %v3592 = vpop.f32.mrb[0].mxu0
        %v3593 = vadd.f32 0.0, %v3592
        %v3594 = vpop.f32.mrb[0].mxu0
        %3595 = vmatprep.mubr.f32.mxu0 0.0
        %3596 = vmatmul.mubr.f32.gmra.mrb[0].mxu0 %v3455
        %v3597 = vpop.f32.mrb[0].mxu0
        %v3598 = vadd.f32 0.0, %v3597
        %v3599 = vpop.f32.mrb[0].mxu0
        %3600 = vmatprep.mubr.f32.mxu0 0.0
        %3601 = vmatmul.mubr.f32.gmra.mrb[0].mxu0 %v3456
        %v3602 = vpop.f32.mrb[0].mxu0
        %v3603 = vadd.f32 0.0, %v3602
        %v3604 = vpop.f32.mrb[0].mxu0
        %3605 = vmatprep.mubr.f32.mxu0 0.0
        %3606 = vmatmul.mubr.f32.gmra.mrb[0].mxu0 %v3457
        %v3607 = vpop.f32.mrb[0].mxu0
        %v3608 = vadd.f32 0.0, %v3607
        %v3609 = vpop.f32.mrb[0].mxu0
        %3610 = vmatprep.mubr.f32.mxu0 0.0
        %3611 = vmatmul.mubr.f32.gmra.mrb[0].mxu0 %v3458
        %v3612 = vpop.f32.mrb[0].mxu0
        %v3613 = vadd.f32 0.0, %v3612
        %v3614 = vpop.f32.mrb[0].mxu0
        %3615 = vmatprep.mubr.f32.mxu0 0.0
        %3616 = vmatmul.mubr.f32.gmra.mrb[0].mxu0 %v3459
        %v3617 = vpop.f32.mrb[0].mxu0
        %v3618 = vadd.f32 0.0, %v3617
        %v3619 = vpop.f32.mrb[0].mxu0
        %3620 = vmatprep.mubr.f32.mxu0 0.0
        %3621 = vmatmul.mubr.f32.gmra.mrb[0].mxu0 %v3460
        %v3622 = vpop.f32.mrb[0].mxu0
        %v3623 = vadd.f32 0.0, %v3622
        %v3624 = vpop.f32.mrb[0].mxu0
        %3625 = vmatprep.mubr.f32.mxu0 0.0
        %3626 = vmatmul.mubr.f32.gmra.mrb[0].mxu0 %v3461
        %v3627 = vpop.f32.mrb[0].mxu0
        %v3628 = vadd.f32 0.0, %v3627
        %v3629 = vpop.f32.mrb[0].mxu0
        %3630 = vmatprep.mubr.f32.mxu0 0.0
        %3631 = vmatmul.mubr.f32.gmra.mrb[0].mxu0 %v3462
        %v3632 = vpop.f32.mrb[0].mxu0
        %v3633 = vadd.f32 0.0, %v3632
        %v3634 = vpop.f32.mrb[0].mxu0
        %3635 = vmatprep.mubr.f32.mxu0 0.0
        %3636 = vmatmul.mubr.f32.gmra.mrb[0].mxu0 %v3463
        %v3637 = vpop.f32.mrb[0].mxu0
        %v3638 = vadd.f32 0.0, %v3637
        %v3639 = vpop.f32.mrb[0].mxu0
        %3640 = vmatprep.mubr.f32.mxu0 0.0
        %3641 = vmatmul.mubr.f32.gmra.mrb[0].mxu0 %v3464
        %v3642 = vpop.f32.mrb[0].mxu0
        %v3643 = vadd.f32 0.0, %v3642
        %v3644 = vpop.f32.mrb[0].mxu0
        %3645 = vmatprep.mubr.f32.mxu0 0.0
        %3646 = vmatmul.mubr.f32.gmra.mrb[0].mxu0 %v3465
        %v3647 = vpop.f32.mrb[0].mxu0
        %v3648 = vadd.f32 0.0, %v3647
        %v3649 = vpop.f32.mrb[0].mxu0
        %3650 = vmatprep.mubr.f32.mxu0 0.0
        %3651 = vmatmul.mubr.f32.gmra.mrb[0].mxu0 %v3466
        %v3652 = vpop.f32.mrb[0].mxu0
        %v3653 = vadd.f32 0.0, %v3652
        %v3654 = vpop.f32.mrb[0].mxu0
        %3655 = vmatprep.mubr.f32.mxu0 0.0
        %3656 = vmatmul.mubr.f32.gmra.mrb[0].mxu0 %v3467
        %v3657 = vpop.f32.mrb[0].mxu0
        %v3658 = vadd.f32 0.0, %v3657
        %v3659 = vpop.f32.mrb[0].mxu0
        %3660 = vdwg.mxu0
        %3677 = vrot.lane.b32.xlu0 %v3583, 24
        %v3678 = vpop.permute.xlu0 %3677
        %3679 = vrot.lane.b32.xlu0 %v3588, 24
        %v3680 = vpop.permute.xlu0 %3679
        %3681 = vrot.lane.b32.xlu0 %v3593, 24
        %v3682 = vpop.permute.xlu0 %3681
        %3683 = vrot.lane.b32.xlu0 %v3598, 24
        %v3684 = vpop.permute.xlu0 %3683
        %3685 = vrot.lane.b32.xlu0 %v3603, 24
        %v3686 = vpop.permute.xlu0 %3685
        %3687 = vrot.lane.b32.xlu0 %v3608, 24
        %v3688 = vpop.permute.xlu0 %3687
        %3689 = vrot.lane.b32.xlu0 %v3613, 24
        %v3690 = vpop.permute.xlu0 %3689
        %3691 = vrot.lane.b32.xlu0 %v3618, 24
        %v3692 = vpop.permute.xlu0 %3691
        %3693 = vrot.lane.b32.xlu0 %v3623, 24
        %v3694 = vpop.permute.xlu0 %3693
        %3695 = vrot.lane.b32.xlu0 %v3628, 24
        %v3696 = vpop.permute.xlu0 %3695
        %3697 = vrot.lane.b32.xlu0 %v3633, 24
        %v3698 = vpop.permute.xlu0 %3697
        %3699 = vrot.lane.b32.xlu0 %v3638, 24
        %v3700 = vpop.permute.xlu0 %3699
        %3701 = vrot.lane.b32.xlu0 %v3643, 24
        %v3702 = vpop.permute.xlu0 %3701
        %3703 = vrot.lane.b32.xlu0 %v3648, 24
        %v3704 = vpop.permute.xlu0 %3703
        %3705 = vrot.lane.b32.xlu0 %v3653, 24
        %v3706 = vpop.permute.xlu0 %3705
        %3707 = vrot.lane.b32.xlu0 %v3658, 24
        %v3708 = vpop.permute.xlu0 %3707
        %vm3725 = vcmask 261312
        %3726 = vst.msk [vmem:[#allocation2] sm:$0xff] %vm3725, %v3678
        %3727 = vst.msk [vmem:[#allocation2 + $0x8] sm:$0xff] %vm3725, %v3680
        %3728 = vst.msk [vmem:[#allocation2 + $0x10] sm:$0xff] %vm3725, %v3682
        %3729 = vst.msk [vmem:[#allocation2 + $0x18] sm:$0xff] %vm3725, %v3684
        %3730 = vst.msk [vmem:[#allocation2 + $0x20] sm:$0xff] %vm3725, %v3686
        %3731 = vst.msk [vmem:[#allocation2 + $0x28] sm:$0xff] %vm3725, %v3688
        %3732 = vst.msk [vmem:[#allocation2 + $0x30] sm:$0xff] %vm3725, %v3690
        %3733 = vst.msk [vmem:[#allocation2 + $0x38] sm:$0xff] %vm3725, %v3692
        %3734 = vst.msk [vmem:[#allocation2 + $0x40] sm:$0xff] %vm3725, %v3694
        %3735 = vst.msk [vmem:[#allocation2 + $0x48] sm:$0xff] %vm3725, %v3696
        %3736 = vst.msk [vmem:[#allocation2 + $0x50] sm:$0xff] %vm3725, %v3698
        %3737 = vst.msk [vmem:[#allocation2 + $0x58] sm:$0xff] %vm3725, %v3700
        %3738 = vst.msk [vmem:[#allocation2 + $0x60] sm:$0xff] %vm3725, %v3702
        %3739 = vst.msk [vmem:[#allocation2 + $0x68] sm:$0xff] %vm3725, %v3704
        %3740 = vst.msk [vmem:[#allocation2 + $0x70] sm:$0xff] %vm3725, %v3706
        %3741 = vst.msk [vmem:[#allocation2 + $0x78] sm:$0xff] %vm3725, %v3708
        %v3742 = vld [vmem:[#allocation2] sm:$0xff]
        %v3743 = vld [vmem:[#allocation2 + $0x8] sm:$0xff]
        %v3744 = vld [vmem:[#allocation2 + $0x10] sm:$0xff]
        %v3745 = vld [vmem:[#allocation2 + $0x18] sm:$0xff]
        %v3746 = vld [vmem:[#allocation2 + $0x20] sm:$0xff]
        %v3747 = vld [vmem:[#allocation2 + $0x28] sm:$0xff]
        %v3748 = vld [vmem:[#allocation2 + $0x30] sm:$0xff]
        %v3749 = vld [vmem:[#allocation2 + $0x38] sm:$0xff]
        %v3750 = vld [vmem:[#allocation2 + $0x40] sm:$0xff]
        %v3751 = vld [vmem:[#allocation2 + $0x48] sm:$0xff]
        %v3752 = vld [vmem:[#allocation2 + $0x50] sm:$0xff]
        %v3753 = vld [vmem:[#allocation2 + $0x58] sm:$0xff]
        %v3754 = vld [vmem:[#allocation2 + $0x60] sm:$0xff]
        %v3755 = vld [vmem:[#allocation2 + $0x68] sm:$0xff]
        %v3756 = vld [vmem:[#allocation2 + $0x70] sm:$0xff]
        %v3757 = vld [vmem:[#allocation2 + $0x78] sm:$0xff]
        %v3758 = vld [vmem:[%s9] sm:$0xff]
        %v3759 = vld [vmem:[%s9 + $0x8] sm:$0xff]
        %v3760 = vld [vmem:[%s9 + $0x10] sm:$0xff]
        %v3761 = vld [vmem:[%s9 + $0x18] sm:$0xff]
        %v3762 = vld [vmem:[%s10] sm:$0xff]
        %v3763 = vld [vmem:[%s10 + $0x8] sm:$0xff]
        %v3764 = vld [vmem:[%s10 + $0x10] sm:$0xff]
        %v3765 = vld [vmem:[%s10 + $0x18] sm:$0xff]
        %3767 = vset.pattern.permute.xlu0 0
        %3768 = vperm.xlu0 %3767, %v3762
        %v3769 = vpop.permute.xlu0 %3768
        %3772 = vset.pattern.permute.xlu0 0
        %3773 = vperm.xlu0 %3772, %v3763
        %v3774 = vpop.permute.xlu0 %3773
        %3777 = vset.pattern.permute.xlu0 0
        %3778 = vperm.xlu0 %3777, %v3764
        %v3779 = vpop.permute.xlu0 %3778
        %3782 = vset.pattern.permute.xlu0 0
        %3783 = vperm.xlu0 %3782, %v3765
        %v3784 = vpop.permute.xlu0 %3783
        %v3787 = vsel %vm452, %v3758, 0
        %v3790 = vsel %vm452, %v3759, 0
        %v3793 = vsel %vm452, %v3760, 0
        %v3796 = vsel %vm452, %v3761, 0
        %v3799 = vsel %vm452, %v3742, 0
        %v3802 = vsel %vm452, %v3743, 0
        %v3805 = vsel %vm452, %v3744, 0
        %v3808 = vsel %vm452, %v3745, 0
        %v3811 = vsel %vm452, %v3746, 0
        %v3814 = vsel %vm452, %v3747, 0
        %v3817 = vsel %vm452, %v3748, 0
        %v3820 = vsel %vm452, %v3749, 0
        %v3823 = vsel %vm452, %v3750, 0
        %v3826 = vsel %vm452, %v3751, 0
        %v3829 = vsel %vm452, %v3752, 0
        %v3832 = vsel %vm452, %v3753, 0
        %v3835 = vsel %vm452, %v3754, 0
        %v3838 = vsel %vm452, %v3755, 0
        %v3841 = vsel %vm452, %v3756, 0
        %v3844 = vsel %vm452, %v3757, 0
        %3846 = vmatprep.subr.mxu0 0.0
        %3847 = vmatpush1.xpose.msra.mxu0 %v3799
        %3848 = vmatprep.subr.mxu0 0.0
        %3849 = vmatpush1.xpose.msra.mxu0 %v3802
        %3850 = vmatprep.subr.mxu0 0.0
        %3851 = vmatpush1.xpose.msra.mxu0 %v3805
        %3852 = vmatprep.subr.mxu0 0.0
        %3853 = vmatpush1.xpose.msra.mxu0 %v3808
        %3854 = vmatprep.subr.mxu0 0.0
        %3855 = vmatpush1.xpose.msra.mxu0 %v3811
        %3856 = vmatprep.subr.mxu0 0.0
        %3857 = vmatpush1.xpose.msra.mxu0 %v3814
        %3858 = vmatprep.subr.mxu0 0.0
        %3859 = vmatpush1.xpose.msra.mxu0 %v3817
        %3860 = vmatprep.subr.mxu0 0.0
        %3861 = vmatpush1.xpose.msra.mxu0 %v3820
        %3862 = vmatprep.subr.mxu0 0.0
        %3863 = vmatpush1.xpose.msra.mxu0 %v3823
        %3864 = vmatprep.subr.mxu0 0.0
        %3865 = vmatpush1.xpose.msra.mxu0 %v3826
        %3866 = vmatprep.subr.mxu0 0.0
        %3867 = vmatpush1.xpose.msra.mxu0 %v3829
        %3868 = vmatprep.subr.mxu0 0.0
        %3869 = vmatpush1.xpose.msra.mxu0 %v3832
        %3870 = vmatprep.subr.mxu0 0.0
        %3871 = vmatpush1.xpose.msra.mxu0 %v3835
        %3872 = vmatprep.subr.mxu0 0.0
        %3873 = vmatpush1.xpose.msra.mxu0 %v3838
        %3874 = vmatprep.subr.mxu0 0.0
        %3875 = vmatpush1.xpose.msra.mxu0 %v3841
        %3876 = vmatprep.subr.mxu0 0.0
        %3877 = vmatpush1.xpose.msra.mxu0 %v3844
        %3878 = vmatprep.subr.mxu0 0.0
        %3879 = vmatpush1.xpose.msra.mxu0 0.0
        %3880 = vmatprep.subr.mxu0 0.0
        %3881 = vmatpush1.xpose.msra.mxu0 0.0
        %3882 = vmatprep.subr.mxu0 0.0
        %3883 = vmatpush1.xpose.msra.mxu0 0.0
        %3884 = vmatprep.subr.mxu0 0.0
        %3885 = vmatpush1.xpose.msra.mxu0 0.0
        %3886 = vmatprep.subr.mxu0 0.0
        %3887 = vmatpush1.xpose.msra.mxu0 0.0
        %3888 = vmatprep.subr.mxu0 0.0
        %3889 = vmatpush1.xpose.msra.mxu0 0.0
        %3890 = vmatprep.subr.mxu0 0.0
        %3891 = vmatpush1.xpose.msra.mxu0 0.0
        %3892 = vmatprep.subr.mxu0 0.0
        %3893 = vmatpush1.xpose.msra.mxu0 0.0
        %3894 = vmatprep.subr.mxu0 0.0
        %3895 = vmatpush1.xpose.msra.mxu0 0.0
        %3896 = vmatprep.subr.mxu0 0.0
        %3897 = vmatpush1.xpose.msra.mxu0 0.0
        %3898 = vmatprep.subr.mxu0 0.0
        %3899 = vmatpush1.xpose.msra.mxu0 0.0
        %3900 = vmatprep.subr.mxu0 0.0
        %3901 = vmatpush1.xpose.msra.mxu0 0.0
        %3902 = vmatprep.subr.mxu0 0.0
        %3903 = vmatpush1.xpose.msra.mxu0 0.0
        %3904 = vmatprep.subr.mxu0 0.0
        %3905 = vmatpush1.xpose.msra.mxu0 0.0
        %3906 = vmatprep.subr.mxu0 0.0
        %3907 = vmatpush1.xpose.msra.mxu0 0.0
        %3908 = vmatprep.subr.mxu0 0.0
        %3909 = vmatpush1.xpose.msra.mxu0 0.0
        %3910 = vmatprep.mubr.f32.mxu0 0.0
        %3911 = vmatmul.mubr.f32.gmra.mrb[0].mxu0 %v3787
        %v3912 = vpop.f32.mrb[0].mxu0
        %v3913 = vadd.f32 %v3769, %v3912
        %v3914 = vpop.f32.mrb[0].mxu0
        %3915 = vmatprep.mubr.f32.mxu0 0.0
        %3916 = vmatmul.mubr.f32.gmra.mrb[0].mxu0 %v3790
        %v3917 = vpop.f32.mrb[0].mxu0
        %v3918 = vadd.f32 %v3774, %v3917
        %v3919 = vpop.f32.mrb[0].mxu0
        %3920 = vmatprep.mubr.f32.mxu0 0.0
        %3921 = vmatmul.mubr.f32.gmra.mrb[0].mxu0 %v3793
        %v3922 = vpop.f32.mrb[0].mxu0
        %v3923 = vadd.f32 %v3779, %v3922
        %v3924 = vpop.f32.mrb[0].mxu0
        %3925 = vmatprep.mubr.f32.mxu0 0.0
        %3926 = vmatmul.mubr.f32.gmra.mrb[0].mxu0 %v3796
        %v3927 = vpop.f32.mrb[0].mxu0
        %v3928 = vadd.f32 %v3784, %v3927
        %v3929 = vpop.f32.mrb[0].mxu0
        %3930 = vdwg.mxu0
        %3931 = vst [vmem:[%s409] sm:$0xff] %v3913
        %3932 = vst [vmem:[%s409 + $0x8] sm:$0xff] %v3918
        %3933 = vst [vmem:[%s409 + $0x10] sm:$0xff] %v3923
        %3934 = vst [vmem:[%s409 + $0x18] sm:$0xff] %v3928
        %s3935 = sand.u32 %s279, 1
        %s3936 = scalar_lea.sflag [#allocation4], %s3935
        %s3937 = sand.u32 %s279, 1
        %s3938 = smul.addr %s3937, 32
        %s3939 = scalar_lea.vmem [#allocation3], %s3938
        // Predicated region
        $region65: #{tpu_custom_call.1} parent=63 // pred_check
          %p3940 = pneg %p289
        $region66: #{tpu_custom_call.1} parent=63 // pred_check_branch
          %3942 = sbr.rel (%p3940) target = $region68
        $region67: #{tpu_custom_call.1} parent=63 // pred_region
          %s3944 = ssub.s32 512, 512
          %3945 = vsyncadd %s3936, %s3944
          %s3946 = smul.addr %s25, 4
          %s3947 = smul.addr %s3946, 128
          %s3948 = scalar_lea.hbm %s11, %s3947
          %s3949 = sshll.u32 %s3939, 4
          %s3950 = int_to_ptr.vmem [resolvable:$true] %s3949
          %3955 = dma.vmem_to_hbm [thread:$0]  %s3950, 512, %s3948, %s3936, 128, 128, 8
        $region68: #{tpu_custom_call.1} parent=63 // pred_fallthru
          _
      $region64: #{tpu_custom_call.1} parent=5 // pred_fallthru
        _
      %p3956 = scmp.le.s32.totalorder 2, %s20
      // Predicated region
      $region69: #{tpu_custom_call.1} parent=5 // pred_check
        %p3957 = pneg %p3956
      $region70: #{tpu_custom_call.1} parent=5 // pred_check_branch
        %3959 = sbr.rel (%p3957) target = $region72
      $region71: #{tpu_custom_call.1} parent=5 // pred_region
        %s3960 = ssub.s32 %s20, 2
        // Predicated region
        $region73: #{tpu_custom_call.1} parent=71 // pred_check
          %p3961 = pneg %p295
        $region74: #{tpu_custom_call.1} parent=71 // pred_check_branch
          %3963 = sbr.rel (%p3961) target = $region76
        $region75: #{tpu_custom_call.1} parent=71 // pred_region
          %s3964 = sand.u32 %s280, 1
          %s3965 = scalar_lea.sflag [#allocation4], %s3964
          %s3966 = sand.u32 %s280, 1
          %s3967 = smul.addr %s3966, 32
          %s3968 = scalar_lea.vmem [#allocation3], %s3967
          %3969 = dma.done %s3965, 512
        $region76: #{tpu_custom_call.1} parent=71 // pred_fallthru
          _
      $region72: #{tpu_custom_call.1} parent=5 // pred_fallthru
        _
    $region6: #{tpu_custom_call.1} parent=1 // loop_footer
      %s24 = sadd.s32 1, %s20
    $region7: #{tpu_custom_call.1} parent=1 // loop_footer_branch
      %19 = sbr.rel target = $region3
    $region8: #{tpu_custom_call.1} parent=1 // loop_exit
      _
    %3970 = vsyncpa [#allocation4], 1
    %s3971 = scalar_lea.sflag [#allocation4], 1
    %3972 = vsyncpa %s3971, 1

</llo_original>
